<compile_context>
chip_gen: v5e
topology: v5e:2x2
jax: 0.10.0
libtpu: 0.0.40
codegen_flags: <defaults>
</compile_context>

<pallas_src>
import functools

import jax
import jax.numpy as jnp
from jax.experimental import pallas as pl
from jax.experimental.pallas import tpu as pltpu


# ----------------------------- Linear (matmul) ------------------------------ #

def _linear_kernel(x_ref, w_ref, b_ref, o_ref):
    # (TILE_R, K) @ (K, Nout) on the MXU, f32 accumulation, bias add, cast.
    acc = jnp.dot(x_ref[...], w_ref[...], preferred_element_type=jnp.float32)
    o_ref[...] = (acc + b_ref[...]).astype(o_ref.dtype)


def pallas_linear(x, w, b, *, out_dtype, tile_r=128):
    """y = x @ w + b.  x:(R,K) bf16, w:(K,Nout) bf16, b:(1,Nout) f32."""
    R, K = x.shape
    Nout = w.shape[1]
    pad = (-R) % tile_r
    if pad:
        x = jnp.pad(x, ((0, pad), (0, 0)))
    Rp = x.shape[0]

    out = pl.pallas_call(
        _linear_kernel,
        out_shape=jax.ShapeDtypeStruct((Rp, Nout), out_dtype),
        grid=(Rp // tile_r,),
        in_specs=[
            pl.BlockSpec((tile_r, K), lambda i: (i, 0)),   # row tile, pipelined
            pl.BlockSpec((K, Nout), lambda i: (0, 0)),     # weights resident
            pl.BlockSpec((1, Nout), lambda i: (0, 0)),     # bias resident
        ],
        out_specs=pl.BlockSpec((tile_r, Nout), lambda i: (i, 0)),
        compiler_params=pltpu.CompilerParams(
            dimension_semantics=("parallel",)),            # megacore on v7x
        cost_estimate=pl.CostEstimate(
            flops=2 * Rp * K * Nout,
            transcendentals=0,
            bytes_accessed=(Rp * K * x.dtype.itemsize
                            + K * Nout * w.dtype.itemsize
                            + Rp * Nout * jnp.dtype(out_dtype).itemsize)),
    )(x, w, b)

    if pad:
        out = out[:R]
    return out


# ------------------------------ Attention core ------------------------------ #

def _make_attention_kernel(num_heads, head_dim, scale):
    def kernel(q_ref, k_ref, v_ref, o_ref):
        q = q_ref[0]            # (TILE_Q, C)  bf16, heads packed along lanes
        k = k_ref[0]            # (M, C)       bf16
        v = v_ref[0]            # (M, C)       bf16
        outs = []
        for h in range(num_heads):                      # static, unrolled
            sl = slice(h * head_dim, (h + 1) * head_dim)
            qh, kh, vh = q[:, sl], k[:, sl], v[:, sl]
            # scores: (TILE_Q, M) f32 on the MXU
            s = jax.lax.dot_general(
                qh, kh, (((1,), (1,)), ((), ())),
                preferred_element_type=jnp.float32) * scale
            m = jnp.max(s, axis=-1, keepdims=True)
            p = jnp.exp(s - m)
            l = jnp.sum(p, axis=-1, keepdims=True)
            oh = jnp.dot(p.astype(vh.dtype), vh,
                         preferred_element_type=jnp.float32)
            outs.append(oh / l)
        # single lane-dense (TILE_Q, C) store
        o_ref[0] = jnp.concatenate(outs, axis=-1).astype(o_ref.dtype)
    return kernel


def pallas_attention(q, k, v, *, num_heads, scale, tile_q=128):
    """q:(B,N,C), k/v:(B,M,C) bf16 -> (B,N,C) bf16 (heads kept packed in C)."""
    B, N, C = q.shape
    M = k.shape[1]
    head_dim = C // num_heads
    if N % tile_q != 0:
        tile_q = N

    kernel = _make_attention_kernel(num_heads, head_dim, scale)
    return pl.pallas_call(
        kernel,
        out_shape=jax.ShapeDtypeStruct((B, N, C), jnp.bfloat16),
        grid=(B, N // tile_q),
        in_specs=[
            pl.BlockSpec((1, tile_q, C), lambda b, i: (b, i, 0)),  # q tile
            pl.BlockSpec((1, M, C), lambda b, i: (b, 0, 0)),       # full K
            pl.BlockSpec((1, M, C), lambda b, i: (b, 0, 0)),       # full V
        ],
        out_specs=pl.BlockSpec((1, tile_q, C), lambda b, i: (b, i, 0)),
        compiler_params=pltpu.CompilerParams(
            dimension_semantics=("parallel", "parallel")),
        cost_estimate=pl.CostEstimate(
            flops=4 * B * N * M * C,
            transcendentals=B * N * M * num_heads,
            bytes_accessed=(3 * B * M * C + 2 * B * N * C) * 2),
    )(q, k, v)


# ------------------------------- Full forward ------------------------------- #

@functools.partial(jax.jit, static_argnames=("num_heads",))
def attention_forward(x, wq, wkv, wproj, bproj, *, num_heads):
    """PyTorch Attention.forward for sr_ratio=1 (dropout p=0 -> identity)."""
    B, N, C = x.shape
    head_dim = C // num_heads
    scale = head_dim ** (-0.5)

    # PyTorch Linear: y = x @ W.T ; fuse q and kv projections into one matmul.
    w_qkv = jnp.concatenate([wq, wkv], axis=0).T.astype(jnp.bfloat16)   # (C, 3C)
    xf = x.reshape(B * N, C).astype(jnp.bfloat16)
    zero_bias = jnp.zeros((1, 3 * C), jnp.float32)                      # qkv_bias=False
    qkv = pallas_linear(xf, w_qkv, zero_bias, out_dtype=jnp.bfloat16)   # (B*N, 3C)

    q = qkv[:, :C].reshape(B, N, C)
    k = qkv[:, C:2 * C].reshape(B, N, C)
    v = qkv[:, 2 * C:].reshape(B, N, C)

    attn_out = pallas_attention(q, k, v, num_heads=num_heads, scale=scale)

    out = pallas_linear(attn_out.reshape(B * N, C),
                        wproj.T.astype(jnp.bfloat16),
                        bproj.reshape(1, C).astype(jnp.float32),
                        out_dtype=jnp.float32)
    return out.reshape(B, N, C)


# ---------------------------- pure-JAX reference ----------------------------- #

def _reference(x, wq, wkv, wproj, bproj, num_heads):
    B, N, C = x.shape
    dh = C // num_heads
    scale = dh ** (-0.5)
    q = (x @ wq.T).reshape(B, N, num_heads, dh).transpose(0, 2, 1, 3)
    kv = (x @ wkv.T).reshape(B, N, 2, num_heads, dh).transpose(2, 0, 3, 1, 4)
    k, v = kv[0], kv[1]
    attn = jnp.einsum("bhqd,bhkd->bhqk", q, k) * scale
    attn = jax.nn.softmax(attn, axis=-1)
    o = jnp.einsum("bhqk,bhkd->bhqd", attn, v)
    o = o.transpose(0, 2, 1, 3).reshape(B, N, C)
    return o @ wproj.T + bproj


# ---------------------------------- main ------------------------------------- #

if __name__ == "__main__":
    key = jax.random.PRNGKey(0)
    B, N, C, H = 2, 128, 128, 8          # batch, seq, dim, num_heads
    k1, k2, k3, k4, k5 = jax.random.split(key, 5)

    bound = 1.0 / (C ** 0.5)             # PyTorch Linear default init range
    x = jax.random.normal(k1, (B, N, C), jnp.float32)
    wq = jax.random.uniform(k2, (C, C), jnp.float32, -bound, bound)
    wkv = jax.random.uniform(k3, (2 * C, C), jnp.float32, -bound, bound)
    wproj = jax.random.uniform(k4, (C, C), jnp.float32, -bound, bound)
    bproj = jax.random.uniform(k5, (C,), jnp.float32, -bound, bound)

    out = jax.block_until_ready(
        attention_forward(x, wq, wkv, wproj, bproj, num_heads=H))
    ref = jax.block_until_ready(_reference(x, wq, wkv, wproj, bproj, H))

    assert out.shape == (B, N, C), out.shape
    max_err = float(jnp.max(jnp.abs(out - ref)))
    # bf16 MXU inputs with f32 accumulation -> small rounding vs f32 reference.
    assert jnp.allclose(out, ref, atol=2e-2, rtol=2e-2), max_err
    print("KERNEL_OK")
</pallas_src>

<mosaic_0001>
module attributes {stable_mosaic.version = 11 : i64} {
  func.func @_linear_kernel(%arg0: i32, %arg1: memref<128x128xbf16, #tpu.memory_space<vmem>>, %arg2: memref<128x384xbf16, #tpu.memory_space<vmem>>, %arg3: memref<1x384xf32, #tpu.memory_space<vmem>>, %arg4: memref<128x384xbf16, #tpu.memory_space<vmem>>) attributes {dimension_semantics = [#tpu.dimension_semantics<parallel>], iteration_bounds = array<i64: 2>, scalar_prefetch = 0 : i64, scratch_operands = 0 : i64, tpu.core_type = #tpu.core_type<tc>, window_params = [{transform_indices = @transform_0, window_bounds = array<i64: 128, 128>}, {pipeline_mode = #tpu.pipeline_mode<synchronous>, transform_indices = @transform_1, window_bounds = array<i64: 128, 384>}, {pipeline_mode = #tpu.pipeline_mode<synchronous>, transform_indices = @transform_2, window_bounds = array<i64: 1, 384>}, {transform_indices = @transform_3, window_bounds = array<i64: 128, 384>}]} {
    %c0 = arith.constant 0 : index
    %c0_0 = arith.constant 0 : index
    %0 = vector.load %arg1[%c0, %c0_0] : memref<128x128xbf16, #tpu.memory_space<vmem>>, vector<128x128xbf16>
    %c0_1 = arith.constant 0 : index
    %c0_2 = arith.constant 0 : index
    %1 = vector.load %arg2[%c0_1, %c0_2] : memref<128x384xbf16, #tpu.memory_space<vmem>>, vector<128x384xbf16>
    %cst = arith.constant dense<0.000000e+00> : vector<128x384xf32>
    %2 = tpu.matmul %0, %1, %cst {dimension_numbers = #tpu.dot_dimension_numbers<[1], [0], [0], [1], [0, 0, 1, 1], [], []>} : vector<128x128xbf16>, vector<128x384xbf16>, vector<128x384xf32> -> vector<128x384xf32>
    %c0_3 = arith.constant 0 : index
    %c0_4 = arith.constant 0 : index
    %3 = vector.load %arg3[%c0_3, %c0_4] : memref<1x384xf32, #tpu.memory_space<vmem>>, vector<1x384xf32>
    %4 = vector.broadcast %3 : vector<1x384xf32> to vector<128x384xf32>
    %5 = arith.addf %2, %4 : vector<128x384xf32>
    %6 = arith.truncf %5 : vector<128x384xf32> to vector<128x384xbf16>
    %c0_5 = arith.constant 0 : index
    %c0_6 = arith.constant 0 : index
    %7 = vector.load %arg4[%c0_5, %c0_6] : memref<128x384xbf16, #tpu.memory_space<vmem>>, vector<128x384xbf16>
    tpu.vector_store %arg4[%c0_5, %c0_6], %6 {strides = array<i32>} : memref<128x384xbf16, #tpu.memory_space<vmem>>, vector<128x384xbf16>,
    return
  }
  func.func @transform_0(%arg0: i32) -> (i32, i32) {
    %c0_i32 = arith.constant 0 : i32
    %c0_i32_0 = arith.constant 0 : i32
    return %arg0, %c0_i32 : i32, i32
  }
  func.func @transform_1(%arg0: i32) -> (i32, i32) {
    %c0_i32 = arith.constant 0 : i32
    %c0_i32_0 = arith.constant 0 : i32
    %c0_i32_1 = arith.constant 0 : i32
    return %c0_i32, %c0_i32_0 : i32, i32
  }
  func.func @transform_2(%arg0: i32) -> (i32, i32) {
    %c0_i32 = arith.constant 0 : i32
    %c0_i32_0 = arith.constant 0 : i32
    %c0_i32_1 = arith.constant 0 : i32
    return %c0_i32, %c0_i32_0 : i32, i32
  }
  func.func @transform_3(%arg0: i32) -> (i32, i32) {
    %c0_i32 = arith.constant 0 : i32
    %c0_i32_0 = arith.constant 0 : i32
    return %arg0, %c0_i32 : i32, i32
  }
}

module attributes {stable_mosaic.version = 11 : i64} {
  func.func @_linear_kernel(%arg0: i32, %arg1: memref<128x128xbf16, #tpu.memory_space<vmem>>, %arg2: memref<128x128xbf16, #tpu.memory_space<vmem>>, %arg3: memref<1x128xf32, #tpu.memory_space<vmem>>, %arg4: memref<128x128xf32, #tpu.memory_space<vmem>>) attributes {dimension_semantics = [#tpu.dimension_semantics<parallel>], iteration_bounds = array<i64: 2>, scalar_prefetch = 0 : i64, scratch_operands = 0 : i64, tpu.core_type = #tpu.core_type<tc>, window_params = [{transform_indices = @transform_0, window_bounds = array<i64: 128, 128>}, {pipeline_mode = #tpu.pipeline_mode<synchronous>, transform_indices = @transform_1, window_bounds = array<i64: 128, 128>}, {pipeline_mode = #tpu.pipeline_mode<synchronous>, transform_indices = @transform_2, window_bounds = array<i64: 1, 128>}, {transform_indices = @transform_3, window_bounds = array<i64: 128, 128>}]} {
    %c0 = arith.constant 0 : index
    %c0_0 = arith.constant 0 : index
    %0 = vector.load %arg1[%c0, %c0_0] : memref<128x128xbf16, #tpu.memory_space<vmem>>, vector<128x128xbf16>
    %c0_1 = arith.constant 0 : index
    %c0_2 = arith.constant 0 : index
    %1 = vector.load %arg2[%c0_1, %c0_2] : memref<128x128xbf16, #tpu.memory_space<vmem>>, vector<128x128xbf16>
    %cst = arith.constant dense<0.000000e+00> : vector<128x128xf32>
    %2 = tpu.matmul %0, %1, %cst {dimension_numbers = #tpu.dot_dimension_numbers<[1], [0], [0], [1], [0, 0, 1, 1], [], []>} : vector<128x128xbf16>, vector<128x128xbf16>, vector<128x128xf32> -> vector<128x128xf32>
    %c0_3 = arith.constant 0 : index
    %c0_4 = arith.constant 0 : index
    %3 = vector.load %arg3[%c0_3, %c0_4] : memref<1x128xf32, #tpu.memory_space<vmem>>, vector<1x128xf32>
    %4 = vector.broadcast %3 : vector<1x128xf32> to vector<128x128xf32>
    %5 = arith.addf %2, %4 : vector<128x128xf32>
    %c0_5 = arith.constant 0 : index
    %c0_6 = arith.constant 0 : index
    %6 = vector.load %arg4[%c0_5, %c0_6] : memref<128x128xf32, #tpu.memory_space<vmem>>, vector<128x128xf32>
    tpu.vector_store %arg4[%c0_5, %c0_6], %5 {strides = array<i32>} : memref<128x128xf32, #tpu.memory_space<vmem>>, vector<128x128xf32>,
    return
  }
  func.func @transform_0(%arg0: i32) -> (i32, i32) {
    %c0_i32 = arith.constant 0 : i32
    %c0_i32_0 = arith.constant 0 : i32
    return %arg0, %c0_i32 : i32, i32
  }
  func.func @transform_1(%arg0: i32) -> (i32, i32) {
    %c0_i32 = arith.constant 0 : i32
    %c0_i32_0 = arith.constant 0 : i32
    %c0_i32_1 = arith.constant 0 : i32
    return %c0_i32, %c0_i32_0 : i32, i32
  }
  func.func @transform_2(%arg0: i32) -> (i32, i32) {
    %c0_i32 = arith.constant 0 : i32
    %c0_i32_0 = arith.constant 0 : i32
    %c0_i32_1 = arith.constant 0 : i32
    return %c0_i32, %c0_i32_0 : i32, i32
  }
  func.func @transform_3(%arg0: i32) -> (i32, i32) {
    %c0_i32 = arith.constant 0 : i32
    %c0_i32_0 = arith.constant 0 : i32
    return %arg0, %c0_i32 : i32, i32
  }
}

module attributes {stable_mosaic.version = 11 : i64} {
  func.func @kernel(%arg0: i32, %arg1: i32, %arg2: memref<1x128x128xbf16, #tpu.memory_space<vmem>>, %arg3: memref<1x128x128xbf16, #tpu.memory_space<vmem>>, %arg4: memref<1x128x128xbf16, #tpu.memory_space<vmem>>, %arg5: memref<1x128x128xbf16, #tpu.memory_space<vmem>>) attributes {dimension_semantics = [#tpu.dimension_semantics<parallel>, #tpu.dimension_semantics<parallel>], iteration_bounds = array<i64: 2, 1>, scalar_prefetch = 0 : i64, scratch_operands = 0 : i64, tpu.core_type = #tpu.core_type<tc>, window_params = [{transform_indices = @transform_0, window_bounds = array<i64: 1, 128, 128>}, {transform_indices = @transform_1, window_bounds = array<i64: 1, 128, 128>}, {transform_indices = @transform_2, window_bounds = array<i64: 1, 128, 128>}, {transform_indices = @transform_3, window_bounds = array<i64: 1, 128, 128>}]} {
    %c0 = arith.constant 0 : index
    %c0_0 = arith.constant 0 : index
    %c0_1 = arith.constant 0 : index
    %0 = vector.load %arg2[%c0, %c0_0, %c0_1] : memref<1x128x128xbf16, #tpu.memory_space<vmem>>, vector<1x128x128xbf16>
    %1 = vector.shape_cast %0 : vector<1x128x128xbf16> to vector<128x128xbf16>
    %c0_2 = arith.constant 0 : index
    %c0_3 = arith.constant 0 : index
    %c0_4 = arith.constant 0 : index
    %2 = vector.load %arg3[%c0_2, %c0_3, %c0_4] : memref<1x128x128xbf16, #tpu.memory_space<vmem>>, vector<1x128x128xbf16>
    %3 = vector.shape_cast %2 : vector<1x128x128xbf16> to vector<128x128xbf16>
    %c0_5 = arith.constant 0 : index
    %c0_6 = arith.constant 0 : index
    %c0_7 = arith.constant 0 : index
    %4 = vector.load %arg4[%c0_5, %c0_6, %c0_7] : memref<1x128x128xbf16, #tpu.memory_space<vmem>>, vector<1x128x128xbf16>
    %5 = vector.shape_cast %4 : vector<1x128x128xbf16> to vector<128x128xbf16>
    %6 = vector.extract_strided_slice %1 {offsets = [0, 0], sizes = [128, 16], strides = [1, 1]} : vector<128x128xbf16> to vector<128x16xbf16>
    %7 = vector.extract_strided_slice %3 {offsets = [0, 0], sizes = [128, 16], strides = [1, 1]} : vector<128x128xbf16> to vector<128x16xbf16>
    %8 = vector.extract_strided_slice %5 {offsets = [0, 0], sizes = [128, 16], strides = [1, 1]} : vector<128x128xbf16> to vector<128x16xbf16>
    %cst = arith.constant dense<0.000000e+00> : vector<128x128xf32>
    %9 = tpu.matmul %6, %7, %cst {dimension_numbers = #tpu.dot_dimension_numbers<[1], [1], [0], [0], [0, 0, 1, 0], [], []>} : vector<128x16xbf16>, vector<128x16xbf16>, vector<128x128xf32> -> vector<128x128xf32>
    %cst_8 = arith.constant 2.500000e-01 : f32
    %10 = vector.broadcast %cst_8 : f32 to vector<128x128xf32>
    %11 = arith.mulf %9, %10 : vector<128x128xf32>
    %cst_9 = arith.constant dense<0xFF800000> : vector<128xf32>
    %12 = vector.multi_reduction <maximumf>, %11, %cst_9 [1] : vector<128x128xf32> to vector<128xf32>
    %13 = vector.shape_cast %12 : vector<128xf32> to vector<128x1xf32>
    %14 = vector.broadcast %13 : vector<128x1xf32> to vector<128x128xf32>
    %15 = arith.subf %11, %14 : vector<128x128xf32>
    %16 = math.exp %15 : vector<128x128xf32>
    %cst_10 = arith.constant dense<0.000000e+00> : vector<128xf32>
    %17 = vector.multi_reduction <add>, %16, %cst_10 [1] : vector<128x128xf32> to vector<128xf32>
    %18 = vector.shape_cast %17 : vector<128xf32> to vector<128x1xf32>
    %19 = arith.truncf %16 : vector<128x128xf32> to vector<128x128xbf16>
    %cst_11 = arith.constant dense<0.000000e+00> : vector<128x16xf32>
    %20 = tpu.matmul %19, %8, %cst_11 {dimension_numbers = #tpu.dot_dimension_numbers<[1], [0], [0], [1], [0, 0, 1, 1], [], []>} : vector<128x128xbf16>, vector<128x16xbf16>, vector<128x16xf32> -> vector<128x16xf32>
    %21 = vector.broadcast %18 : vector<128x1xf32> to vector<128x16xf32>
    %22 = arith.divf %20, %21 : vector<128x16xf32>
    %23 = vector.extract_strided_slice %1 {offsets = [0, 16], sizes = [128, 16], strides = [1, 1]} : vector<128x128xbf16> to vector<128x16xbf16>
    %24 = vector.extract_strided_slice %3 {offsets = [0, 16], sizes = [128, 16], strides = [1, 1]} : vector<128x128xbf16> to vector<128x16xbf16>
    %25 = vector.extract_strided_slice %5 {offsets = [0, 16], sizes = [128, 16], strides = [1, 1]} : vector<128x128xbf16> to vector<128x16xbf16>
    %cst_12 = arith.constant dense<0.000000e+00> : vector<128x128xf32>
    %26 = tpu.matmul %23, %24, %cst_12 {dimension_numbers = #tpu.dot_dimension_numbers<[1], [1], [0], [0], [0, 0, 1, 0], [], []>} : vector<128x16xbf16>, vector<128x16xbf16>, vector<128x128xf32> -> vector<128x128xf32>
    %cst_13 = arith.constant 2.500000e-01 : f32
    %27 = vector.broadcast %cst_13 : f32 to vector<128x128xf32>
    %28 = arith.mulf %26, %27 : vector<128x128xf32>
    %cst_14 = arith.constant dense<0xFF800000> : vector<128xf32>
    %29 = vector.multi_reduction <maximumf>, %28, %cst_14 [1] : vector<128x128xf32> to vector<128xf32>
    %30 = vector.shape_cast %29 : vector<128xf32> to vector<128x1xf32>
    %31 = vector.broadcast %30 : vector<128x1xf32> to vector<128x128xf32>
    %32 = arith.subf %28, %31 : vector<128x128xf32>
    %33 = math.exp %32 : vector<128x128xf32>
    %cst_15 = arith.constant dense<0.000000e+00> : vector<128xf32>
    %34 = vector.multi_reduction <add>, %33, %cst_15 [1] : vector<128x128xf32> to vector<128xf32>
    %35 = vector.shape_cast %34 : vector<128xf32> to vector<128x1xf32>
    %36 = arith.truncf %33 : vector<128x128xf32> to vector<128x128xbf16>
    %cst_16 = arith.constant dense<0.000000e+00> : vector<128x16xf32>
    %37 = tpu.matmul %36, %25, %cst_16 {dimension_numbers = #tpu.dot_dimension_numbers<[1], [0], [0], [1], [0, 0, 1, 1], [], []>} : vector<128x128xbf16>, vector<128x16xbf16>, vector<128x16xf32> -> vector<128x16xf32>
    %38 = vector.broadcast %35 : vector<128x1xf32> to vector<128x16xf32>
    %39 = arith.divf %37, %38 : vector<128x16xf32>
    %40 = vector.extract_strided_slice %1 {offsets = [0, 32], sizes = [128, 16], strides = [1, 1]} : vector<128x128xbf16> to vector<128x16xbf16>
    %41 = vector.extract_strided_slice %3 {offsets = [0, 32], sizes = [128, 16], strides = [1, 1]} : vector<128x128xbf16> to vector<128x16xbf16>
    %42 = vector.extract_strided_slice %5 {offsets = [0, 32], sizes = [128, 16], strides = [1, 1]} : vector<128x128xbf16> to vector<128x16xbf16>
    %cst_17 = arith.constant dense<0.000000e+00> : vector<128x128xf32>
    %43 = tpu.matmul %40, %41, %cst_17 {dimension_numbers = #tpu.dot_dimension_numbers<[1], [1], [0], [0], [0, 0, 1, 0], [], []>} : vector<128x16xbf16>, vector<128x16xbf16>, vector<128x128xf32> -> vector<128x128xf32>
    %cst_18 = arith.constant 2.500000e-01 : f32
    %44 = vector.broadcast %cst_18 : f32 to vector<128x128xf32>
    %45 = arith.mulf %43, %44 : vector<128x128xf32>
    %cst_19 = arith.constant dense<0xFF800000> : vector<128xf32>
    %46 = vector.multi_reduction <maximumf>, %45, %cst_19 [1] : vector<128x128xf32> to vector<128xf32>
    %47 = vector.shape_cast %46 : vector<128xf32> to vector<128x1xf32>
    %48 = vector.broadcast %47 : vector<128x1xf32> to vector<128x128xf32>
    %49 = arith.subf %45, %48 : vector<128x128xf32>
    %50 = math.exp %49 : vector<128x128xf32>
    %cst_20 = arith.constant dense<0.000000e+00> : vector<128xf32>
    %51 = vector.multi_reduction <add>, %50, %cst_20 [1] : vector<128x128xf32> to vector<128xf32>
    %52 = vector.shape_cast %51 : vector<128xf32> to vector<128x1xf32>
    %53 = arith.truncf %50 : vector<128x128xf32> to vector<128x128xbf16>
    %cst_21 = arith.constant dense<0.000000e+00> : vector<128x16xf32>
    %54 = tpu.matmul %53, %42, %cst_21 {dimension_numbers = #tpu.dot_dimension_numbers<[1], [0], [0], [1], [0, 0, 1, 1], [], []>} : vector<128x128xbf16>, vector<128x16xbf16>, vector<128x16xf32> -> vector<128x16xf32>
    %55 = vector.broadcast %52 : vector<128x1xf32> to vector<128x16xf32>
    %56 = arith.divf %54, %55 : vector<128x16xf32>
    %57 = vector.extract_strided_slice %1 {offsets = [0, 48], sizes = [128, 16], strides = [1, 1]} : vector<128x128xbf16> to vector<128x16xbf16>
    %58 = vector.extract_strided_slice %3 {offsets = [0, 48], sizes = [128, 16], strides = [1, 1]} : vector<128x128xbf16> to vector<128x16xbf16>
    %59 = vector.extract_strided_slice %5 {offsets = [0, 48], sizes = [128, 16], strides = [1, 1]} : vector<128x128xbf16> to vector<128x16xbf16>
    %cst_22 = arith.constant dense<0.000000e+00> : vector<128x128xf32>
    %60 = tpu.matmul %57, %58, %cst_22 {dimension_numbers = #tpu.dot_dimension_numbers<[1], [1], [0], [0], [0, 0, 1, 0], [], []>} : vector<128x16xbf16>, vector<128x16xbf16>, vector<128x128xf32> -> vector<128x128xf32>
    %cst_23 = arith.constant 2.500000e-01 : f32
    %61 = vector.broadcast %cst_23 : f32 to vector<128x128xf32>
    %62 = arith.mulf %60, %61 : vector<128x128xf32>
    %cst_24 = arith.constant dense<0xFF800000> : vector<128xf32>
    %63 = vector.multi_reduction <maximumf>, %62, %cst_24 [1] : vector<128x128xf32> to vector<128xf32>
    %64 = vector.shape_cast %63 : vector<128xf32> to vector<128x1xf32>
    %65 = vector.broadcast %64 : vector<128x1xf32> to vector<128x128xf32>
    %66 = arith.subf %62, %65 : vector<128x128xf32>
    %67 = math.exp %66 : vector<128x128xf32>
    %cst_25 = arith.constant dense<0.000000e+00> : vector<128xf32>
    %68 = vector.multi_reduction <add>, %67, %cst_25 [1] : vector<128x128xf32> to vector<128xf32>
    %69 = vector.shape_cast %68 : vector<128xf32> to vector<128x1xf32>
    %70 = arith.truncf %67 : vector<128x128xf32> to vector<128x128xbf16>
    %cst_26 = arith.constant dense<0.000000e+00> : vector<128x16xf32>
    %71 = tpu.matmul %70, %59, %cst_26 {dimension_numbers = #tpu.dot_dimension_numbers<[1], [0], [0], [1], [0, 0, 1, 1], [], []>} : vector<128x128xbf16>, vector<128x16xbf16>, vector<128x16xf32> -> vector<128x16xf32>
    %72 = vector.broadcast %69 : vector<128x1xf32> to vector<128x16xf32>
    %73 = arith.divf %71, %72 : vector<128x16xf32>
    %74 = vector.extract_strided_slice %1 {offsets = [0, 64], sizes = [128, 16], strides = [1, 1]} : vector<128x128xbf16> to vector<128x16xbf16>
    %75 = vector.extract_strided_slice %3 {offsets = [0, 64], sizes = [128, 16], strides = [1, 1]} : vector<128x128xbf16> to vector<128x16xbf16>
    %76 = vector.extract_strided_slice %5 {offsets = [0, 64], sizes = [128, 16], strides = [1, 1]} : vector<128x128xbf16> to vector<128x16xbf16>
    %cst_27 = arith.constant dense<0.000000e+00> : vector<128x128xf32>
    %77 = tpu.matmul %74, %75, %cst_27 {dimension_numbers = #tpu.dot_dimension_numbers<[1], [1], [0], [0], [0, 0, 1, 0], [], []>} : vector<128x16xbf16>, vector<128x16xbf16>, vector<128x128xf32> -> vector<128x128xf32>
    %cst_28 = arith.constant 2.500000e-01 : f32
    %78 = vector.broadcast %cst_28 : f32 to vector<128x128xf32>
    %79 = arith.mulf %77, %78 : vector<128x128xf32>
    %cst_29 = arith.constant dense<0xFF800000> : vector<128xf32>
    %80 = vector.multi_reduction <maximumf>, %79, %cst_29 [1] : vector<128x128xf32> to vector<128xf32>
    %81 = vector.shape_cast %80 : vector<128xf32> to vector<128x1xf32>
    %82 = vector.broadcast %81 : vector<128x1xf32> to vector<128x128xf32>
    %83 = arith.subf %79, %82 : vector<128x128xf32>
    %84 = math.exp %83 : vector<128x128xf32>
    %cst_30 = arith.constant dense<0.000000e+00> : vector<128xf32>
    %85 = vector.multi_reduction <add>, %84, %cst_30 [1] : vector<128x128xf32> to vector<128xf32>
    %86 = vector.shape_cast %85 : vector<128xf32> to vector<128x1xf32>
    %87 = arith.truncf %84 : vector<128x128xf32> to vector<128x128xbf16>
    %cst_31 = arith.constant dense<0.000000e+00> : vector<128x16xf32>
    %88 = tpu.matmul %87, %76, %cst_31 {dimension_numbers = #tpu.dot_dimension_numbers<[1], [0], [0], [1], [0, 0, 1, 1], [], []>} : vector<128x128xbf16>, vector<128x16xbf16>, vector<128x16xf32> -> vector<128x16xf32>
    %89 = vector.broadcast %86 : vector<128x1xf32> to vector<128x16xf32>
    %90 = arith.divf %88, %89 : vector<128x16xf32>
    %91 = vector.extract_strided_slice %1 {offsets = [0, 80], sizes = [128, 16], strides = [1, 1]} : vector<128x128xbf16> to vector<128x16xbf16>
    %92 = vector.extract_strided_slice %3 {offsets = [0, 80], sizes = [128, 16], strides = [1, 1]} : vector<128x128xbf16> to vector<128x16xbf16>
    %93 = vector.extract_strided_slice %5 {offsets = [0, 80], sizes = [128, 16], strides = [1, 1]} : vector<128x128xbf16> to vector<128x16xbf16>
    %cst_32 = arith.constant dense<0.000000e+00> : vector<128x128xf32>
    %94 = tpu.matmul %91, %92, %cst_32 {dimension_numbers = #tpu.dot_dimension_numbers<[1], [1], [0], [0], [0, 0, 1, 0], [], []>} : vector<128x16xbf16>, vector<128x16xbf16>, vector<128x128xf32> -> vector<128x128xf32>
    %cst_33 = arith.constant 2.500000e-01 : f32
    %95 = vector.broadcast %cst_33 : f32 to vector<128x128xf32>
    %96 = arith.mulf %94, %95 : vector<128x128xf32>
    %cst_34 = arith.constant dense<0xFF800000> : vector<128xf32>
    %97 = vector.multi_reduction <maximumf>, %96, %cst_34 [1] : vector<128x128xf32> to vector<128xf32>
    %98 = vector.shape_cast %97 : vector<128xf32> to vector<128x1xf32>
    %99 = vector.broadcast %98 : vector<128x1xf32> to vector<128x128xf32>
    %100 = arith.subf %96, %99 : vector<128x128xf32>
    %101 = math.exp %100 : vector<128x128xf32>
    %cst_35 = arith.constant dense<0.000000e+00> : vector<128xf32>
    %102 = vector.multi_reduction <add>, %101, %cst_35 [1] : vector<128x128xf32> to vector<128xf32>
    %103 = vector.shape_cast %102 : vector<128xf32> to vector<128x1xf32>
    %104 = arith.truncf %101 : vector<128x128xf32> to vector<128x128xbf16>
    %cst_36 = arith.constant dense<0.000000e+00> : vector<128x16xf32>
    %105 = tpu.matmul %104, %93, %cst_36 {dimension_numbers = #tpu.dot_dimension_numbers<[1], [0], [0], [1], [0, 0, 1, 1], [], []>} : vector<128x128xbf16>, vector<128x16xbf16>, vector<128x16xf32> -> vector<128x16xf32>
    %106 = vector.broadcast %103 : vector<128x1xf32> to vector<128x16xf32>
    %107 = arith.divf %105, %106 : vector<128x16xf32>
    %108 = vector.extract_strided_slice %1 {offsets = [0, 96], sizes = [128, 16], strides = [1, 1]} : vector<128x128xbf16> to vector<128x16xbf16>
    %109 = vector.extract_strided_slice %3 {offsets = [0, 96], sizes = [128, 16], strides = [1, 1]} : vector<128x128xbf16> to vector<128x16xbf16>
    %110 = vector.extract_strided_slice %5 {offsets = [0, 96], sizes = [128, 16], strides = [1, 1]} : vector<128x128xbf16> to vector<128x16xbf16>
    %cst_37 = arith.constant dense<0.000000e+00> : vector<128x128xf32>
    %111 = tpu.matmul %108, %109, %cst_37 {dimension_numbers = #tpu.dot_dimension_numbers<[1], [1], [0], [0], [0, 0, 1, 0], [], []>} : vector<128x16xbf16>, vector<128x16xbf16>, vector<128x128xf32> -> vector<128x128xf32>
    %cst_38 = arith.constant 2.500000e-01 : f32
    %112 = vector.broadcast %cst_38 : f32 to vector<128x128xf32>
    %113 = arith.mulf %111, %112 : vector<128x128xf32>
    %cst_39 = arith.constant dense<0xFF800000> : vector<128xf32>
    %114 = vector.multi_reduction <maximumf>, %113, %cst_39 [1] : vector<128x128xf32> to vector<128xf32>
    %115 = vector.shape_cast %114 : vector<128xf32> to vector<128x1xf32>
    %116 = vector.broadcast %115 : vector<128x1xf32> to vector<128x128xf32>
    %117 = arith.subf %113, %116 : vector<128x128xf32>
    %118 = math.exp %117 : vector<128x128xf32>
    %cst_40 = arith.constant dense<0.000000e+00> : vector<128xf32>
    %119 = vector.multi_reduction <add>, %118, %cst_40 [1] : vector<128x128xf32> to vector<128xf32>
    %120 = vector.shape_cast %119 : vector<128xf32> to vector<128x1xf32>
    %121 = arith.truncf %118 : vector<128x128xf32> to vector<128x128xbf16>
    %cst_41 = arith.constant dense<0.000000e+00> : vector<128x16xf32>
    %122 = tpu.matmul %121, %110, %cst_41 {dimension_numbers = #tpu.dot_dimension_numbers<[1], [0], [0], [1], [0, 0, 1, 1], [], []>} : vector<128x128xbf16>, vector<128x16xbf16>, vector<128x16xf32> -> vector<128x16xf32>
    %123 = vector.broadcast %120 : vector<128x1xf32> to vector<128x16xf32>
    %124 = arith.divf %122, %123 : vector<128x16xf32>
    %125 = vector.extract_strided_slice %1 {offsets = [0, 112], sizes = [128, 16], strides = [1, 1]} : vector<128x128xbf16> to vector<128x16xbf16>
    %126 = vector.extract_strided_slice %3 {offsets = [0, 112], sizes = [128, 16], strides = [1, 1]} : vector<128x128xbf16> to vector<128x16xbf16>
    %127 = vector.extract_strided_slice %5 {offsets = [0, 112], sizes = [128, 16], strides = [1, 1]} : vector<128x128xbf16> to vector<128x16xbf16>
    %cst_42 = arith.constant dense<0.000000e+00> : vector<128x128xf32>
    %128 = tpu.matmul %125, %126, %cst_42 {dimension_numbers = #tpu.dot_dimension_numbers<[1], [1], [0], [0], [0, 0, 1, 0], [], []>} : vector<128x16xbf16>, vector<128x16xbf16>, vector<128x128xf32> -> vector<128x128xf32>
    %cst_43 = arith.constant 2.500000e-01 : f32
    %129 = vector.broadcast %cst_43 : f32 to vector<128x128xf32>
    %130 = arith.mulf %128, %129 : vector<128x128xf32>
    %cst_44 = arith.constant dense<0xFF800000> : vector<128xf32>
    %131 = vector.multi_reduction <maximumf>, %130, %cst_44 [1] : vector<128x128xf32> to vector<128xf32>
    %132 = vector.shape_cast %131 : vector<128xf32> to vector<128x1xf32>
    %133 = vector.broadcast %132 : vector<128x1xf32> to vector<128x128xf32>
    %134 = arith.subf %130, %133 : vector<128x128xf32>
    %135 = math.exp %134 : vector<128x128xf32>
    %cst_45 = arith.constant dense<0.000000e+00> : vector<128xf32>
    %136 = vector.multi_reduction <add>, %135, %cst_45 [1] : vector<128x128xf32> to vector<128xf32>
    %137 = vector.shape_cast %136 : vector<128xf32> to vector<128x1xf32>
    %138 = arith.truncf %135 : vector<128x128xf32> to vector<128x128xbf16>
    %cst_46 = arith.constant dense<0.000000e+00> : vector<128x16xf32>
    %139 = tpu.matmul %138, %127, %cst_46 {dimension_numbers = #tpu.dot_dimension_numbers<[1], [0], [0], [1], [0, 0, 1, 1], [], []>} : vector<128x128xbf16>, vector<128x16xbf16>, vector<128x16xf32> -> vector<128x16xf32>
    %140 = vector.broadcast %137 : vector<128x1xf32> to vector<128x16xf32>
    %141 = arith.divf %139, %140 : vector<128x16xf32>
    %142 = tpu.concatenate %22, %39, %56, %73, %90, %107, %124, %141 in 1 : vector<128x16xf32>, vector<128x16xf32>, vector<128x16xf32>, vector<128x16xf32>, vector<128x16xf32>, vector<128x16xf32>, vector<128x16xf32>, vector<128x16xf32> -> vector<128x128xf32>
    %143 = arith.truncf %142 : vector<128x128xf32> to vector<128x128xbf16>
    %c0_47 = arith.constant 0 : index
    %c0_48 = arith.constant 0 : index
    %c0_49 = arith.constant 0 : index
    %144 = vector.load %arg5[%c0_47, %c0_48, %c0_49] : memref<1x128x128xbf16, #tpu.memory_space<vmem>>, vector<1x128x128xbf16>
    %145 = vector.shape_cast %144 : vector<1x128x128xbf16> to vector<128x128xbf16>
    %146 = vector.shape_cast %143 : vector<128x128xbf16> to vector<1x128x128xbf16>
    tpu.vector_store %arg5[%c0_47, %c0_48, %c0_49], %146 {strides = array<i32>} : memref<1x128x128xbf16, #tpu.memory_space<vmem>>, vector<1x128x128xbf16>,
    return
  }
  func.func @transform_0(%arg0: i32, %arg1: i32) -> (i32, i32, i32) {
    %c0_i32 = arith.constant 0 : i32
    %c0_i32_0 = arith.constant 0 : i32
    return %arg0, %arg1, %c0_i32 : i32, i32, i32
  }
  func.func @transform_1(%arg0: i32, %arg1: i32) -> (i32, i32, i32) {
    %c0_i32 = arith.constant 0 : i32
    %c0_i32_0 = arith.constant 0 : i32
    %c0_i32_1 = arith.constant 0 : i32
    return %arg0, %c0_i32, %c0_i32_0 : i32, i32, i32
  }
  func.func @transform_2(%arg0: i32, %arg1: i32) -> (i32, i32, i32) {
    %c0_i32 = arith.constant 0 : i32
    %c0_i32_0 = arith.constant 0 : i32
    %c0_i32_1 = arith.constant 0 : i32
    return %arg0, %c0_i32, %c0_i32_0 : i32, i32, i32
  }
  func.func @transform_3(%arg0: i32, %arg1: i32) -> (i32, i32, i32) {
    %c0_i32 = arith.constant 0 : i32
    %c0_i32_0 = arith.constant 0 : i32
    return %arg0, %arg1, %c0_i32 : i32, i32, i32
  }
}

</mosaic_0001>

<llo_original>
// kernel: attention_forward.3
$region0: #{attention_forward.3}
  #allocation0 [shape = 'u32[]', space=smem, size = 0x4, offset = 0x4, fixed_abs, tag = 'smem constant byte address 0x4 - core index']
  #allocation1 [shape = 'u32[72,128]{1,0:T(1,128)}', space=vmem, size = 0x9000, scoped, tag = 'internal scratch']
  %s0 = inlined_call_operand.vmem [shape: bf16[256,128], index: 0, kind: input, shape index: {}]
  %s1 = inlined_call_operand.vmem [shape: bf16[128,384], index: 1, kind: input, shape index: {}]
  %s2 = inlined_call_operand.vmem [shape: f32[1,384], index: 2, kind: input, shape index: {}]
  %s3 = inlined_call_operand.vmem [shape: bf16[256,384], index: 3, kind: output, shape index: {}]
  %s4 = sld [smem:[#allocation0]]
  $region45: #{attention_forward.3} parent=0
    _
  %s6 = ssub.s32 1, %s4
  %s7 = scalar_select 0, %s6, %s4
  loop: start=0, step=1, limit=4
  $region2: #{attention_forward.3} parent=0 // loop_pre_header
    _
  $region3: #{attention_forward.3} parent=0 // loop_header
    %s9 = sphi 0, %s13
    %p10 = scmp.ge.s32.totalorder %s9, 4
    %s19 = sphi 0, %s21
    %s22 = sphi 0, %s19
    %s23 = sphi 0, %s22
    %s39 = sphi 0, %s23
    %s43 = sphi 0, %s43
    %s45 = sphi 0, %s43
    %s46 = sphi 0, %s45
    %s60 = sphi 0, %s46
    %s64 = sphi 0, %s64
    %s66 = sphi 0, %s64
    %s67 = sphi 0, %s66
    %s81 = sphi 0, %s67
    %s87 = sphi 0, %s89
    %s90 = sphi 0, %s87
    %s91 = sphi 0, %s90
    %s107 = sphi 0, %s91
  $region4: #{attention_forward.3} parent=0 // loop_header_branch
    %12 = sbr.rel (%p10) target = $region8
  $region5: #{attention_forward.3} parent=0 // loop_body
    %s14 = ssub.s32 %s9, 1
    %s15 = ssub.s32 %s9, 2
    %s16 = sadd.s32 %s9, 1
    %s17 = ssub.s32 %s9, %s16
    %p18 = scmp.eq.s32.totalorder %s17, 0
    %s20 = sadd.s32 %s19, 1
    %s21 = scalar_select %p18, %s19, %s20
    %p24 = pneg %p18
    %p25 = scmp.eq.s32.totalorder %s9, 1
    %p26 = por %p24, %p25
    %p27 = scmp.ne.s32.totalorder %s19, %s22
    %p28 = scmp.eq.s32.totalorder %s9, 0
    %p29 = por %p27, %p28
    %p30 = scmp.ne.s32.totalorder %s19, %s22
    %p31 = scmp.eq.s32.totalorder %s14, 1
    %p32 = por %p30, %p31
    %p33 = scmp.ne.s32.totalorder %s22, %s23
    %p34 = scmp.eq.s32.totalorder %s14, 0
    %p35 = por %p33, %p34
    %p36 = scmp.ne.s32.totalorder %s22, %s23
    %p37 = scmp.eq.s32.totalorder %s15, 1
    %p38 = por %p36, %p37
    %p40 = scmp.ne.s32.totalorder %s23, %s39
    %p41 = scmp.eq.s32.totalorder %s15, 0
    %p42 = por %p40, %p41
    %s44 = sadd.s32 %s43, 1
    %p47 = scmp.eq.s32.totalorder %s9, 1
    %p48 = scmp.ne.s32.totalorder %s43, %s45
    %p49 = scmp.eq.s32.totalorder %s9, 0
    %p50 = por %p48, %p49
    %p51 = scmp.ne.s32.totalorder %s43, %s45
    %p52 = scmp.eq.s32.totalorder %s14, 1
    %p53 = por %p51, %p52
    %p54 = scmp.ne.s32.totalorder %s45, %s46
    %p55 = scmp.eq.s32.totalorder %s14, 0
    %p56 = por %p54, %p55
    %p57 = scmp.ne.s32.totalorder %s45, %s46
    %p58 = scmp.eq.s32.totalorder %s15, 1
    %p59 = por %p57, %p58
    %p61 = scmp.ne.s32.totalorder %s46, %s60
    %p62 = scmp.eq.s32.totalorder %s15, 0
    %p63 = por %p61, %p62
    %s65 = sadd.s32 %s64, 1
    %p68 = scmp.eq.s32.totalorder %s9, 1
    %p69 = scmp.ne.s32.totalorder %s64, %s66
    %p70 = scmp.eq.s32.totalorder %s9, 0
    %p71 = por %p69, %p70
    %p72 = scmp.ne.s32.totalorder %s64, %s66
    %p73 = scmp.eq.s32.totalorder %s14, 1
    %p74 = por %p72, %p73
    %p75 = scmp.ne.s32.totalorder %s66, %s67
    %p76 = scmp.eq.s32.totalorder %s14, 0
    %p77 = por %p75, %p76
    %p78 = scmp.ne.s32.totalorder %s66, %s67
    %p79 = scmp.eq.s32.totalorder %s15, 1
    %p80 = por %p78, %p79
    %p82 = scmp.ne.s32.totalorder %s67, %s81
    %p83 = scmp.eq.s32.totalorder %s15, 0
    %p84 = por %p82, %p83
    %s85 = ssub.s32 %s9, %s16
    %p86 = scmp.eq.s32.totalorder %s85, 0
    %s88 = sadd.s32 %s87, 1
    %s89 = scalar_select %p86, %s87, %s88
    %p92 = pneg %p86
    %p93 = scmp.eq.s32.totalorder %s9, 1
    %p94 = por %p92, %p93
    %p95 = scmp.ne.s32.totalorder %s87, %s90
    %p96 = scmp.eq.s32.totalorder %s9, 0
    %p97 = por %p95, %p96
    %p98 = scmp.ne.s32.totalorder %s87, %s90
    %p99 = scmp.eq.s32.totalorder %s14, 1
    %p100 = por %p98, %p99
    %p101 = scmp.ne.s32.totalorder %s90, %s91
    %p102 = scmp.eq.s32.totalorder %s14, 0
    %p103 = por %p101, %p102
    %p104 = scmp.ne.s32.totalorder %s90, %s91
    %p105 = scmp.eq.s32.totalorder %s15, 1
    %p106 = por %p104, %p105
    %p108 = scmp.ne.s32.totalorder %s91, %s107
    %p109 = scmp.eq.s32.totalorder %s15, 0
    %p110 = por %p108, %p109
    %p111 = scmp.le.s32.totalorder 1, %s9
    %p112 = scmp.lt.s32.totalorder %s9, 3
    %p113 = pnand %p111, %p112
    %p114 = pneg %p113
    // Predicated region
    $region9: #{attention_forward.3} parent=5 // pred_check
      _
    $region10: #{attention_forward.3} parent=5 // pred_check_branch
      %116 = sbr.rel (%p113) target = $region12
    $region11: #{attention_forward.3} parent=5 // pred_region
      %s117 = ssub.s32 %s9, 1
      // Predicated region
      $region13: #{attention_forward.3} parent=11 // pred_check
        %p118 = pneg %p56
      $region14: #{attention_forward.3} parent=11 // pred_check_branch
        %120 = sbr.rel (%p118) target = $region16
      $region15: #{attention_forward.3} parent=11 // pred_region
        _
      $region16: #{attention_forward.3} parent=11 // pred_fallthru
        _
      // Predicated region
      $region17: #{attention_forward.3} parent=11 // pred_check
        %p121 = pneg %p77
      $region18: #{attention_forward.3} parent=11 // pred_check_branch
        %123 = sbr.rel (%p121) target = $region20
      $region19: #{attention_forward.3} parent=11 // pred_region
        _
      $region20: #{attention_forward.3} parent=11 // pred_fallthru
        _
    $region12: #{attention_forward.3} parent=5 // pred_fallthru
      _
    %p124 = scmp.lt.s32.totalorder %s9, 2
    // Predicated region
    $region21: #{attention_forward.3} parent=5 // pred_check
      %p125 = pneg %p124
    $region22: #{attention_forward.3} parent=5 // pred_check_branch
      %127 = sbr.rel (%p125) target = $region24
    $region23: #{attention_forward.3} parent=5 // pred_region
      // Predicated region
      $region25: #{attention_forward.3} parent=23 // pred_check
        %p128 = pneg %p29
      $region26: #{attention_forward.3} parent=23 // pred_check_branch
        %130 = sbr.rel (%p128) target = $region28
      $region27: #{attention_forward.3} parent=23 // pred_region
        %s131 = smul.u32 16, %s9
        %p132 = scmp.lt.s32.totalorder %s131, 31
        %s133 = scalar_select %p132, %s131, 31
        %s134 = smul.addr %s133, 4
        %s135 = scalar_lea.vmem %s0, %s134
        %s136 = smul.u32 16, %s9
      $region28: #{attention_forward.3} parent=23 // pred_fallthru
        _
    $region24: #{attention_forward.3} parent=5 // pred_fallthru
      _
    %p137 = scmp.le.s32.totalorder 1, %s9
    %p138 = scmp.lt.s32.totalorder %s9, 3
    %p139 = pnand %p137, %p138
    %p140 = pneg %p139
    // Predicated region
    $region29: #{attention_forward.3} parent=5 // pred_check
      _
    $region30: #{attention_forward.3} parent=5 // pred_check_branch
      %142 = sbr.rel (%p139) target = $region32
    $region31: #{attention_forward.3} parent=5 // pred_region
      %s143 = ssub.s32 %s9, 1
      %s144 = smul.u32 16, %s14
      %p145 = scmp.lt.s32.totalorder %s144, 31
      %s146 = scalar_select %p145, %s144, 31
      %s147 = smul.addr %s146, 4
      %s148 = scalar_lea.vmem %s0, %s147
      %p149 = pneg %p35
      %p150 = pneg %p32
      %p151 = pneg %p56
      %p152 = pneg %p53
      %p153 = pneg %p77
      %p154 = pneg %p74
      %p155 = pneg %p103
      %p156 = pneg %p100
      %s157 = smul.u32 16, %s14
      %p158 = scmp.lt.s32.totalorder %s157, 31
      %s159 = scalar_select %p158, %s157, 31
      %s160 = smul.addr %s159, 3
      %s161 = smul.addr %s160, 4
      %s162 = scalar_lea.vmem %s3, %s161
      %s163 = smul.u32 16, %s14
      %p164 = scmp.lt.s32.totalorder %s163, 31
      %s165 = scalar_select %p164, %s163, 31
      %s166 = smul.addr %s165, 4
      %s167 = scalar_lea.vmem %s0, %s166
      %s168 = smul.u32 16, %s14
      %s169 = smul.u32 16, %s14
      %p170 = scmp.lt.s32.totalorder %s169, 31
      %s171 = scalar_select %p170, %s169, 31
      %s172 = smul.addr %s171, 3
      %s173 = smul.addr %s172, 4
      %s174 = scalar_lea.vmem %s3, %s173
      %s175 = smul.u32 16, %s14
      %v176 = vld [vmem:[%s167] sm:$0xf]
      %v177 = vld [vmem:[%s167 + $0x4] sm:$0xf]
      %v178 = vld [vmem:[%s167 + $0x8] sm:$0xf]
      %v179 = vld [vmem:[%s167 + $0xc] sm:$0xf]
      %v180 = vld [vmem:[%s167 + $0x10] sm:$0xf]
      %v181 = vld [vmem:[%s167 + $0x14] sm:$0xf]
      %v182 = vld [vmem:[%s167 + $0x18] sm:$0xf]
      %v183 = vld [vmem:[%s167 + $0x1c] sm:$0xf]
      %v184 = vld [vmem:[%s167 + $0x20] sm:$0xf]
      %v185 = vld [vmem:[%s167 + $0x24] sm:$0xf]
      %v186 = vld [vmem:[%s167 + $0x28] sm:$0xf]
      %v187 = vld [vmem:[%s167 + $0x2c] sm:$0xf]
      %v188 = vld [vmem:[%s167 + $0x30] sm:$0xf]
      %v189 = vld [vmem:[%s167 + $0x34] sm:$0xf]
      %v190 = vld [vmem:[%s167 + $0x38] sm:$0xf]
      %v191 = vld [vmem:[%s167 + $0x3c] sm:$0xf]
      %v192 = vld [vmem:[%s1] sm:$0xff]
      %v193 = vld [vmem:[%s1 + $0x8] sm:$0xf]
      %v194 = vld [vmem:[%s1 + $0xc] sm:$0xff]
      %v195 = vld [vmem:[%s1 + $0x14] sm:$0xf]
      %v196 = vld [vmem:[%s1 + $0x18] sm:$0xff]
      %v197 = vld [vmem:[%s1 + $0x20] sm:$0xf]
      %v198 = vld [vmem:[%s1 + $0x24] sm:$0xff]
      %v199 = vld [vmem:[%s1 + $0x2c] sm:$0xf]
      %v200 = vld [vmem:[%s1 + $0x30] sm:$0xff]
      %v201 = vld [vmem:[%s1 + $0x38] sm:$0xf]
      %v202 = vld [vmem:[%s1 + $0x3c] sm:$0xff]
      %v203 = vld [vmem:[%s1 + $0x44] sm:$0xf]
      %v204 = vld [vmem:[%s1 + $0x48] sm:$0xff]
      %v205 = vld [vmem:[%s1 + $0x50] sm:$0xf]
      %v206 = vld [vmem:[%s1 + $0x54] sm:$0xff]
      %v207 = vld [vmem:[%s1 + $0x5c] sm:$0xf]
      %v208 = vld [vmem:[%s1 + $0x60] sm:$0xff]
      %v209 = vld [vmem:[%s1 + $0x68] sm:$0xf]
      %v210 = vld [vmem:[%s1 + $0x6c] sm:$0xff]
      %v211 = vld [vmem:[%s1 + $0x74] sm:$0xf]
      %v212 = vld [vmem:[%s1 + $0x78] sm:$0xff]
      %v213 = vld [vmem:[%s1 + $0x80] sm:$0xf]
      %v214 = vld [vmem:[%s1 + $0x84] sm:$0xff]
      %v215 = vld [vmem:[%s1 + $0x8c] sm:$0xf]
      %v216 = vld [vmem:[%s1 + $0x90] sm:$0xff]
      %v217 = vld [vmem:[%s1 + $0x98] sm:$0xf]
      %v218 = vld [vmem:[%s1 + $0x9c] sm:$0xff]
      %v219 = vld [vmem:[%s1 + $0xa4] sm:$0xf]
      %v220 = vld [vmem:[%s1 + $0xa8] sm:$0xff]
      %v221 = vld [vmem:[%s1 + $0xb0] sm:$0xf]
      %v222 = vld [vmem:[%s1 + $0xb4] sm:$0xff]
      %v223 = vld [vmem:[%s1 + $0xbc] sm:$0xf]
      %v224 = vld [vmem:[%s2] sm:$0x7]
      %v226 = vperm.slane %v224, 0
      %v227 = vperm.slane %v224, 1
      %v228 = vperm.slane %v224, 2
      %v248 = vunpack.c.l.b16 %v176
      %v249 = vunpack.c.l.b16 %v177
      %v250 = vunpack.c.l.b16 %v178
      %v251 = vunpack.c.l.b16 %v179
      %v252 = vunpack.c.l.b16 %v180
      %v253 = vunpack.c.l.b16 %v181
      %v254 = vunpack.c.l.b16 %v182
      %v255 = vunpack.c.l.b16 %v183
      %v256 = vunpack.c.l.b16 %v184
      %v257 = vunpack.c.l.b16 %v185
      %v258 = vunpack.c.l.b16 %v186
      %v259 = vunpack.c.l.b16 %v187
      %v260 = vunpack.c.l.b16 %v188
      %v261 = vunpack.c.l.b16 %v189
      %v262 = vunpack.c.l.b16 %v190
      %v263 = vunpack.c.l.b16 %v191
      %v264 = vpack.c.b16 %v249, %v248
      %v265 = vpack.c.b16 %v251, %v250
      %v266 = vpack.c.b16 %v253, %v252
      %v267 = vpack.c.b16 %v255, %v254
      %v268 = vpack.c.b16 %v257, %v256
      %v269 = vpack.c.b16 %v259, %v258
      %v270 = vpack.c.b16 %v261, %v260
      %v271 = vpack.c.b16 %v263, %v262
      %v312 = vunpack.c.l.b16 %v192
      %v313 = vunpack.c.h.b16 %v192
      %v314 = vunpack.c.l.b16 %v193
      %v315 = vunpack.c.l.b16 %v194
      %v316 = vunpack.c.h.b16 %v194
      %v317 = vunpack.c.l.b16 %v195
      %v318 = vunpack.c.l.b16 %v196
      %v319 = vunpack.c.h.b16 %v196
      %v320 = vunpack.c.l.b16 %v197
      %v321 = vunpack.c.l.b16 %v198
      %v322 = vunpack.c.h.b16 %v198
      %v323 = vunpack.c.l.b16 %v199
      %v324 = vunpack.c.l.b16 %v200
      %v325 = vunpack.c.h.b16 %v200
      %v326 = vunpack.c.l.b16 %v201
      %v327 = vunpack.c.l.b16 %v202
      %v328 = vunpack.c.h.b16 %v202
      %v329 = vunpack.c.l.b16 %v203
      %v330 = vunpack.c.l.b16 %v204
      %v331 = vunpack.c.h.b16 %v204
      %v332 = vunpack.c.l.b16 %v205
      %v333 = vunpack.c.l.b16 %v206
      %v334 = vunpack.c.h.b16 %v206
      %v335 = vunpack.c.l.b16 %v207
      %v336 = vunpack.c.l.b16 %v208
      %v337 = vunpack.c.h.b16 %v208
      %v338 = vunpack.c.l.b16 %v209
      %v339 = vunpack.c.l.b16 %v210
      %v340 = vunpack.c.h.b16 %v210
      %v341 = vunpack.c.l.b16 %v211
      %v342 = vunpack.c.l.b16 %v212
      %v343 = vunpack.c.h.b16 %v212
      %v344 = vunpack.c.l.b16 %v213
      %v345 = vunpack.c.l.b16 %v214
      %v346 = vunpack.c.h.b16 %v214
      %v347 = vunpack.c.l.b16 %v215
      %v348 = vunpack.c.l.b16 %v216
      %v349 = vunpack.c.h.b16 %v216
      %v350 = vunpack.c.l.b16 %v217
      %v351 = vunpack.c.l.b16 %v218
      %v352 = vunpack.c.h.b16 %v218
      %v353 = vunpack.c.l.b16 %v219
      %v354 = vunpack.c.l.b16 %v220
      %v355 = vunpack.c.h.b16 %v220
      %v356 = vunpack.c.l.b16 %v221
      %v357 = vunpack.c.l.b16 %v222
      %v358 = vunpack.c.h.b16 %v222
      %v359 = vunpack.c.l.b16 %v223
      %v360 = vpack.c.b16 %v315, %v312
      %v361 = vpack.c.b16 %v316, %v313
      %v362 = vpack.c.b16 %v317, %v314
      %v363 = vpack.c.b16 %v321, %v318
      %v364 = vpack.c.b16 %v322, %v319
      %v365 = vpack.c.b16 %v323, %v320
      %v366 = vpack.c.b16 %v327, %v324
      %v367 = vpack.c.b16 %v328, %v325
      %v368 = vpack.c.b16 %v329, %v326
      %v369 = vpack.c.b16 %v333, %v330
      %v370 = vpack.c.b16 %v334, %v331
      %v371 = vpack.c.b16 %v335, %v332
      %v372 = vpack.c.b16 %v339, %v336
      %v373 = vpack.c.b16 %v340, %v337
      %v374 = vpack.c.b16 %v341, %v338
      %v375 = vpack.c.b16 %v345, %v342
      %v376 = vpack.c.b16 %v346, %v343
      %v377 = vpack.c.b16 %v347, %v344
      %v378 = vpack.c.b16 %v351, %v348
      %v379 = vpack.c.b16 %v352, %v349
      %v380 = vpack.c.b16 %v353, %v350
      %v381 = vpack.c.b16 %v357, %v354
      %v382 = vpack.c.b16 %v358, %v355
      %v383 = vpack.c.b16 %v359, %v356
      %408 = vmatpush.bf16.msra.mxu0 %v381
      %409 = vmatpush.bf16.msra.mxu0 %v378
      %410 = vmatpush.bf16.msra.mxu0 %v375
      %411 = vmatpush.bf16.msra.mxu0 %v372
      %412 = vmatpush.bf16.msra.mxu0 %v369
      %413 = vmatpush.bf16.msra.mxu0 %v366
      %414 = vmatpush.bf16.msra.mxu0 %v363
      %415 = vmatpush.bf16.msra.mxu0 %v360
      %416 = vmatmul.bf16.gmra.mxu0 %v264
      %v417 = vpop.f32.mrf.mxu0
      %v418 = vadd.f32 %v226, %v417
      %v419 = vpop.f32.mrf.mxu0
      %v420 = vadd.f32 %v226, %v419
      %421 = vmatmul.bf16.gmra.mxu0 %v265
      %v422 = vpop.f32.mrf.mxu0
      %v423 = vadd.f32 %v226, %v422
      %v424 = vpop.f32.mrf.mxu0
      %v425 = vadd.f32 %v226, %v424
      %426 = vmatmul.bf16.gmra.mxu0 %v266
      %v427 = vpop.f32.mrf.mxu0
      %v428 = vadd.f32 %v226, %v427
      %v429 = vpop.f32.mrf.mxu0
      %v430 = vadd.f32 %v226, %v429
      %431 = vmatmul.bf16.gmra.mxu0 %v267
      %v432 = vpop.f32.mrf.mxu0
      %v433 = vadd.f32 %v226, %v432
      %v434 = vpop.f32.mrf.mxu0
      %v435 = vadd.f32 %v226, %v434
      %436 = vmatmul.bf16.gmra.mxu0 %v268
      %v437 = vpop.f32.mrf.mxu0
      %v438 = vadd.f32 %v226, %v437
      %v439 = vpop.f32.mrf.mxu0
      %v440 = vadd.f32 %v226, %v439
      %441 = vmatmul.bf16.gmra.mxu0 %v269
      %v442 = vpop.f32.mrf.mxu0
      %v443 = vadd.f32 %v226, %v442
      %v444 = vpop.f32.mrf.mxu0
      %v445 = vadd.f32 %v226, %v444
      %446 = vmatmul.bf16.gmra.mxu0 %v270
      %v447 = vpop.f32.mrf.mxu0
      %v448 = vadd.f32 %v226, %v447
      %v449 = vpop.f32.mrf.mxu0
      %v450 = vadd.f32 %v226, %v449
      %451 = vmatmul.bf16.gmra.mxu0 %v271
      %v452 = vpop.f32.mrf.mxu0
      %v453 = vadd.f32 %v226, %v452
      %v454 = vpop.f32.mrf.mxu0
      %v455 = vadd.f32 %v226, %v454
      %456 = vdwg.mxu0
      %457 = vmatpush.bf16.msra.mxu0 %v382
      %458 = vmatpush.bf16.msra.mxu0 %v379
      %459 = vmatpush.bf16.msra.mxu0 %v376
      %460 = vmatpush.bf16.msra.mxu0 %v373
      %461 = vmatpush.bf16.msra.mxu0 %v370
      %462 = vmatpush.bf16.msra.mxu0 %v367
      %463 = vmatpush.bf16.msra.mxu0 %v364
      %464 = vmatpush.bf16.msra.mxu0 %v361
      %465 = vmatmul.bf16.gmra.mxu0 %v264
      %v466 = vpop.f32.mrf.mxu0
      %v467 = vadd.f32 %v227, %v466
      %v468 = vpop.f32.mrf.mxu0
      %v469 = vadd.f32 %v227, %v468
      %470 = vmatmul.bf16.gmra.mxu0 %v265
      %v471 = vpop.f32.mrf.mxu0
      %v472 = vadd.f32 %v227, %v471
      %v473 = vpop.f32.mrf.mxu0
      %v474 = vadd.f32 %v227, %v473
      %475 = vmatmul.bf16.gmra.mxu0 %v266
      %v476 = vpop.f32.mrf.mxu0
      %v477 = vadd.f32 %v227, %v476
      %v478 = vpop.f32.mrf.mxu0
      %v479 = vadd.f32 %v227, %v478
      %480 = vmatmul.bf16.gmra.mxu0 %v267
      %v481 = vpop.f32.mrf.mxu0
      %v482 = vadd.f32 %v227, %v481
      %v483 = vpop.f32.mrf.mxu0
      %v484 = vadd.f32 %v227, %v483
      %485 = vmatmul.bf16.gmra.mxu0 %v268
      %v486 = vpop.f32.mrf.mxu0
      %v487 = vadd.f32 %v227, %v486
      %v488 = vpop.f32.mrf.mxu0
      %v489 = vadd.f32 %v227, %v488
      %490 = vmatmul.bf16.gmra.mxu0 %v269
      %v491 = vpop.f32.mrf.mxu0
      %v492 = vadd.f32 %v227, %v491
      %v493 = vpop.f32.mrf.mxu0
      %v494 = vadd.f32 %v227, %v493
      %495 = vmatmul.bf16.gmra.mxu0 %v270
      %v496 = vpop.f32.mrf.mxu0
      %v497 = vadd.f32 %v227, %v496
      %v498 = vpop.f32.mrf.mxu0
      %v499 = vadd.f32 %v227, %v498
      %500 = vmatmul.bf16.gmra.mxu0 %v271
      %v501 = vpop.f32.mrf.mxu0
      %v502 = vadd.f32 %v227, %v501
      %v503 = vpop.f32.mrf.mxu0
      %v504 = vadd.f32 %v227, %v503
      %505 = vdwg.mxu0
      %506 = vmatpush.bf16.msra.mxu0 %v383
      %507 = vmatpush.bf16.msra.mxu0 %v380
      %508 = vmatpush.bf16.msra.mxu0 %v377
      %509 = vmatpush.bf16.msra.mxu0 %v374
      %510 = vmatpush.bf16.msra.mxu0 %v371
      %511 = vmatpush.bf16.msra.mxu0 %v368
      %512 = vmatpush.bf16.msra.mxu0 %v365
      %513 = vmatpush.bf16.msra.mxu0 %v362
      %514 = vmatmul.bf16.gmra.mxu0 %v264
      %v515 = vpop.f32.mrf.mxu0
      %v516 = vadd.f32 %v228, %v515
      %v517 = vpop.f32.mrf.mxu0
      %v518 = vadd.f32 %v228, %v517
      %519 = vmatmul.bf16.gmra.mxu0 %v265
      %v520 = vpop.f32.mrf.mxu0
      %v521 = vadd.f32 %v228, %v520
      %v522 = vpop.f32.mrf.mxu0
      %v523 = vadd.f32 %v228, %v522
      %524 = vmatmul.bf16.gmra.mxu0 %v266
      %v525 = vpop.f32.mrf.mxu0
      %v526 = vadd.f32 %v228, %v525
      %v527 = vpop.f32.mrf.mxu0
      %v528 = vadd.f32 %v228, %v527
      %529 = vmatmul.bf16.gmra.mxu0 %v267
      %v530 = vpop.f32.mrf.mxu0
      %v531 = vadd.f32 %v228, %v530
      %v532 = vpop.f32.mrf.mxu0
      %v533 = vadd.f32 %v228, %v532
      %534 = vmatmul.bf16.gmra.mxu0 %v268
      %v535 = vpop.f32.mrf.mxu0
      %v536 = vadd.f32 %v228, %v535
      %v537 = vpop.f32.mrf.mxu0
      %v538 = vadd.f32 %v228, %v537
      %539 = vmatmul.bf16.gmra.mxu0 %v269
      %v540 = vpop.f32.mrf.mxu0
      %v541 = vadd.f32 %v228, %v540
      %v542 = vpop.f32.mrf.mxu0
      %v543 = vadd.f32 %v228, %v542
      %544 = vmatmul.bf16.gmra.mxu0 %v270
      %v545 = vpop.f32.mrf.mxu0
      %v546 = vadd.f32 %v228, %v545
      %v547 = vpop.f32.mrf.mxu0
      %v548 = vadd.f32 %v228, %v547
      %549 = vmatmul.bf16.gmra.mxu0 %v271
      %v550 = vpop.f32.mrf.mxu0
      %v551 = vadd.f32 %v228, %v550
      %v552 = vpop.f32.mrf.mxu0
      %v553 = vadd.f32 %v228, %v552
      %554 = vdwg.mxu0
      %v555 = vpack.c.bf16 %v467, %v418
      %v556 = vpack.c.bf16 %v516, %v516
      %v557 = vpack.c.bf16 %v469, %v420
      %v558 = vpack.c.bf16 %v518, %v518
      %v559 = vpack.c.bf16 %v472, %v423
      %v560 = vpack.c.bf16 %v521, %v521
      %v561 = vpack.c.bf16 %v474, %v425
      %v562 = vpack.c.bf16 %v523, %v523
      %v563 = vpack.c.bf16 %v477, %v428
      %v564 = vpack.c.bf16 %v526, %v526
      %v565 = vpack.c.bf16 %v479, %v430
      %v566 = vpack.c.bf16 %v528, %v528
      %v567 = vpack.c.bf16 %v482, %v433
      %v568 = vpack.c.bf16 %v531, %v531
      %v569 = vpack.c.bf16 %v484, %v435
      %v570 = vpack.c.bf16 %v533, %v533
      %v571 = vpack.c.bf16 %v487, %v438
      %v572 = vpack.c.bf16 %v536, %v536
      %v573 = vpack.c.bf16 %v489, %v440
      %v574 = vpack.c.bf16 %v538, %v538
      %v575 = vpack.c.bf16 %v492, %v443
      %v576 = vpack.c.bf16 %v541, %v541
      %v577 = vpack.c.bf16 %v494, %v445
      %v578 = vpack.c.bf16 %v543, %v543
      %v579 = vpack.c.bf16 %v497, %v448
      %v580 = vpack.c.bf16 %v546, %v546
      %v581 = vpack.c.bf16 %v499, %v450
      %v582 = vpack.c.bf16 %v548, %v548
      %v583 = vpack.c.bf16 %v502, %v453
      %v584 = vpack.c.bf16 %v551, %v551
      %v585 = vpack.c.bf16 %v504, %v455
      %v586 = vpack.c.bf16 %v553, %v553
      %587 = vst [vmem:[%s174] sm:$0xff] %v555
      %588 = vst [vmem:[%s174 + $0x8] sm:$0xf] %v556
      %589 = vst [vmem:[%s174 + $0xc] sm:$0xff] %v557
      %590 = vst [vmem:[%s174 + $0x14] sm:$0xf] %v558
      %591 = vst [vmem:[%s174 + $0x18] sm:$0xff] %v559
      %592 = vst [vmem:[%s174 + $0x20] sm:$0xf] %v560
      %593 = vst [vmem:[%s174 + $0x24] sm:$0xff] %v561
      %594 = vst [vmem:[%s174 + $0x2c] sm:$0xf] %v562
      %595 = vst [vmem:[%s174 + $0x30] sm:$0xff] %v563
      %596 = vst [vmem:[%s174 + $0x38] sm:$0xf] %v564
      %597 = vst [vmem:[%s174 + $0x3c] sm:$0xff] %v565
      %598 = vst [vmem:[%s174 + $0x44] sm:$0xf] %v566
      %599 = vst [vmem:[%s174 + $0x48] sm:$0xff] %v567
      %600 = vst [vmem:[%s174 + $0x50] sm:$0xf] %v568
      %601 = vst [vmem:[%s174 + $0x54] sm:$0xff] %v569
      %602 = vst [vmem:[%s174 + $0x5c] sm:$0xf] %v570
      %603 = vst [vmem:[%s174 + $0x60] sm:$0xff] %v571
      %604 = vst [vmem:[%s174 + $0x68] sm:$0xf] %v572
      %605 = vst [vmem:[%s174 + $0x6c] sm:$0xff] %v573
      %606 = vst [vmem:[%s174 + $0x74] sm:$0xf] %v574
      %607 = vst [vmem:[%s174 + $0x78] sm:$0xff] %v575
      %608 = vst [vmem:[%s174 + $0x80] sm:$0xf] %v576
      %609 = vst [vmem:[%s174 + $0x84] sm:$0xff] %v577
      %610 = vst [vmem:[%s174 + $0x8c] sm:$0xf] %v578
      %611 = vst [vmem:[%s174 + $0x90] sm:$0xff] %v579
      %612 = vst [vmem:[%s174 + $0x98] sm:$0xf] %v580
      %613 = vst [vmem:[%s174 + $0x9c] sm:$0xff] %v581
      %614 = vst [vmem:[%s174 + $0xa4] sm:$0xf] %v582
      %615 = vst [vmem:[%s174 + $0xa8] sm:$0xff] %v583
      %616 = vst [vmem:[%s174 + $0xb0] sm:$0xf] %v584
      %617 = vst [vmem:[%s174 + $0xb4] sm:$0xff] %v585
      %618 = vst [vmem:[%s174 + $0xbc] sm:$0xf] %v586
      %s619 = smul.u32 16, %s14
      %p620 = scmp.lt.s32.totalorder %s619, 31
      %s621 = scalar_select %p620, %s619, 31
      %s622 = smul.addr %s621, 3
      %s623 = smul.addr %s622, 4
      %s624 = scalar_lea.vmem %s3, %s623
      // Predicated region
      $region33: #{attention_forward.3} parent=31 // pred_check
        %p625 = pneg %p100
      $region34: #{attention_forward.3} parent=31 // pred_check_branch
        %627 = sbr.rel (%p625) target = $region36
      $region35: #{attention_forward.3} parent=31 // pred_region
        %s628 = smul.u32 16, %s14
      $region36: #{attention_forward.3} parent=31 // pred_fallthru
        _
    $region32: #{attention_forward.3} parent=5 // pred_fallthru
      _
    %p629 = scmp.le.s32.totalorder 2, %s9
    // Predicated region
    $region37: #{attention_forward.3} parent=5 // pred_check
      %p630 = pneg %p629
    $region38: #{attention_forward.3} parent=5 // pred_check_branch
      %632 = sbr.rel (%p630) target = $region40
    $region39: #{attention_forward.3} parent=5 // pred_region
      %s633 = ssub.s32 %s9, 2
      // Predicated region
      $region41: #{attention_forward.3} parent=39 // pred_check
        %p634 = pneg %p106
      $region42: #{attention_forward.3} parent=39 // pred_check_branch
        %636 = sbr.rel (%p634) target = $region44
      $region43: #{attention_forward.3} parent=39 // pred_region
        %s637 = smul.u32 16, %s15
        %p638 = scmp.lt.s32.totalorder %s637, 31
        %s639 = scalar_select %p638, %s637, 31
        %s640 = smul.addr %s639, 3
        %s641 = smul.addr %s640, 4
        %s642 = scalar_lea.vmem %s3, %s641
      $region44: #{attention_forward.3} parent=39 // pred_fallthru
        _
    $region40: #{attention_forward.3} parent=5 // pred_fallthru
      _
  $region6: #{attention_forward.3} parent=0 // loop_footer
    %s13 = sadd.s32 1, %s9
  $region7: #{attention_forward.3} parent=0 // loop_footer_branch
    %8 = sbr.rel target = $region3
  $region8: #{attention_forward.3} parent=0 // loop_exit
    _

// kernel: attention_forward.5
$region0: #{attention_forward.5}
  #allocation0 [shape = 'u32[]', space=smem, size = 0x4, offset = 0x4, fixed_abs, tag = 'smem constant byte address 0x4 - core index']
  #allocation1 [shape = 'u32[72,128]{1,0:T(1,128)}', space=vmem, size = 0x9000, scoped, tag = 'internal scratch']
  %s0 = inlined_call_operand.vmem [shape: bf16[256,128], index: 0, kind: input, shape index: {}]
  %s1 = inlined_call_operand.vmem [shape: bf16[128,128], index: 1, kind: input, shape index: {}]
  %s2 = inlined_call_operand.vmem [shape: f32[1,128], index: 2, kind: input, shape index: {}]
  %s3 = inlined_call_operand.hbm [shape: f32[256,128], index: 3, kind: output, shape index: {}]
  %s4 = sld [smem:[#allocation0]]
  $region45: #{attention_forward.5} parent=0
    _
  %s6 = ssub.s32 1, %s4
  %s7 = scalar_select 0, %s6, %s4
  $region1: #{attention_forward.5} parent=0
    #allocation2 [shape = 'u8[131072]{0}', space=vmem, size = 0x20000, scoped, tag = 'output window, operand 0']
    #allocation3 [shape = 's32[2]{0}', space=sflag, size = 0x8, scoped, tag = 'scoped memory for attention_forward.5']
    %8 = vsyncpa [#allocation3], 0
    %s9 = scalar_lea.sflag [#allocation3], 1
    %10 = vsyncpa %s9, 0
    loop: start=0, step=1, limit=4
    $region2: #{attention_forward.5} parent=1 // loop_pre_header
      _
    $region3: #{attention_forward.5} parent=1 // loop_header
      %s12 = sphi 0, %s16
      %p13 = scmp.ge.s32.totalorder %s12, 4
      %s22 = sphi 0, %s24
      %s25 = sphi 0, %s22
      %s26 = sphi 0, %s25
      %s42 = sphi 0, %s26
      %s46 = sphi 0, %s46
      %s48 = sphi 0, %s46
      %s49 = sphi 0, %s48
      %s63 = sphi 0, %s49
      %s67 = sphi 0, %s67
      %s69 = sphi 0, %s67
      %s70 = sphi 0, %s69
      %s84 = sphi 0, %s70
      %s90 = sphi 0, %s92
      %s93 = sphi 0, %s90
      %s94 = sphi 0, %s93
      %s110 = sphi 0, %s94
    $region4: #{attention_forward.5} parent=1 // loop_header_branch
      %15 = sbr.rel (%p13) target = $region8
    $region5: #{attention_forward.5} parent=1 // loop_body
      %s17 = ssub.s32 %s12, 1
      %s18 = ssub.s32 %s12, 2
      %s19 = sadd.s32 %s12, 1
      %s20 = ssub.s32 %s12, %s19
      %p21 = scmp.eq.s32.totalorder %s20, 0
      %s23 = sadd.s32 %s22, 1
      %s24 = scalar_select %p21, %s22, %s23
      %p27 = pneg %p21
      %p28 = scmp.eq.s32.totalorder %s12, 1
      %p29 = por %p27, %p28
      %p30 = scmp.ne.s32.totalorder %s22, %s25
      %p31 = scmp.eq.s32.totalorder %s12, 0
      %p32 = por %p30, %p31
      %p33 = scmp.ne.s32.totalorder %s22, %s25
      %p34 = scmp.eq.s32.totalorder %s17, 1
      %p35 = por %p33, %p34
      %p36 = scmp.ne.s32.totalorder %s25, %s26
      %p37 = scmp.eq.s32.totalorder %s17, 0
      %p38 = por %p36, %p37
      %p39 = scmp.ne.s32.totalorder %s25, %s26
      %p40 = scmp.eq.s32.totalorder %s18, 1
      %p41 = por %p39, %p40
      %p43 = scmp.ne.s32.totalorder %s26, %s42
      %p44 = scmp.eq.s32.totalorder %s18, 0
      %p45 = por %p43, %p44
      %s47 = sadd.s32 %s46, 1
      %p50 = scmp.eq.s32.totalorder %s12, 1
      %p51 = scmp.ne.s32.totalorder %s46, %s48
      %p52 = scmp.eq.s32.totalorder %s12, 0
      %p53 = por %p51, %p52
      %p54 = scmp.ne.s32.totalorder %s46, %s48
      %p55 = scmp.eq.s32.totalorder %s17, 1
      %p56 = por %p54, %p55
      %p57 = scmp.ne.s32.totalorder %s48, %s49
      %p58 = scmp.eq.s32.totalorder %s17, 0
      %p59 = por %p57, %p58
      %p60 = scmp.ne.s32.totalorder %s48, %s49
      %p61 = scmp.eq.s32.totalorder %s18, 1
      %p62 = por %p60, %p61
      %p64 = scmp.ne.s32.totalorder %s49, %s63
      %p65 = scmp.eq.s32.totalorder %s18, 0
      %p66 = por %p64, %p65
      %s68 = sadd.s32 %s67, 1
      %p71 = scmp.eq.s32.totalorder %s12, 1
      %p72 = scmp.ne.s32.totalorder %s67, %s69
      %p73 = scmp.eq.s32.totalorder %s12, 0
      %p74 = por %p72, %p73
      %p75 = scmp.ne.s32.totalorder %s67, %s69
      %p76 = scmp.eq.s32.totalorder %s17, 1
      %p77 = por %p75, %p76
      %p78 = scmp.ne.s32.totalorder %s69, %s70
      %p79 = scmp.eq.s32.totalorder %s17, 0
      %p80 = por %p78, %p79
      %p81 = scmp.ne.s32.totalorder %s69, %s70
      %p82 = scmp.eq.s32.totalorder %s18, 1
      %p83 = por %p81, %p82
      %p85 = scmp.ne.s32.totalorder %s70, %s84
      %p86 = scmp.eq.s32.totalorder %s18, 0
      %p87 = por %p85, %p86
      %s88 = ssub.s32 %s12, %s19
      %p89 = scmp.eq.s32.totalorder %s88, 0
      %s91 = sadd.s32 %s90, 1
      %s92 = scalar_select %p89, %s90, %s91
      %p95 = pneg %p89
      %p96 = scmp.eq.s32.totalorder %s12, 1
      %p97 = por %p95, %p96
      %p98 = scmp.ne.s32.totalorder %s90, %s93
      %p99 = scmp.eq.s32.totalorder %s12, 0
      %p100 = por %p98, %p99
      %p101 = scmp.ne.s32.totalorder %s90, %s93
      %p102 = scmp.eq.s32.totalorder %s17, 1
      %p103 = por %p101, %p102
      %p104 = scmp.ne.s32.totalorder %s93, %s94
      %p105 = scmp.eq.s32.totalorder %s17, 0
      %p106 = por %p104, %p105
      %p107 = scmp.ne.s32.totalorder %s93, %s94
      %p108 = scmp.eq.s32.totalorder %s18, 1
      %p109 = por %p107, %p108
      %p111 = scmp.ne.s32.totalorder %s94, %s110
      %p112 = scmp.eq.s32.totalorder %s18, 0
      %p113 = por %p111, %p112
      %p114 = scmp.le.s32.totalorder 1, %s12
      %p115 = scmp.lt.s32.totalorder %s12, 3
      %p116 = pnand %p114, %p115
      %p117 = pneg %p116
      // Predicated region
      $region9: #{attention_forward.5} parent=5 // pred_check
        _
      $region10: #{attention_forward.5} parent=5 // pred_check_branch
        %119 = sbr.rel (%p116) target = $region12
      $region11: #{attention_forward.5} parent=5 // pred_region
        %s120 = ssub.s32 %s12, 1
        // Predicated region
        $region13: #{attention_forward.5} parent=11 // pred_check
          %p121 = pneg %p59
        $region14: #{attention_forward.5} parent=11 // pred_check_branch
          %123 = sbr.rel (%p121) target = $region16
        $region15: #{attention_forward.5} parent=11 // pred_region
          _
        $region16: #{attention_forward.5} parent=11 // pred_fallthru
          _
        // Predicated region
        $region17: #{attention_forward.5} parent=11 // pred_check
          %p124 = pneg %p80
        $region18: #{attention_forward.5} parent=11 // pred_check_branch
          %126 = sbr.rel (%p124) target = $region20
        $region19: #{attention_forward.5} parent=11 // pred_region
          _
        $region20: #{attention_forward.5} parent=11 // pred_fallthru
          _
      $region12: #{attention_forward.5} parent=5 // pred_fallthru
        _
      %p127 = scmp.lt.s32.totalorder %s12, 2
      // Predicated region
      $region21: #{attention_forward.5} parent=5 // pred_check
        %p128 = pneg %p127
      $region22: #{attention_forward.5} parent=5 // pred_check_branch
        %130 = sbr.rel (%p128) target = $region24
      $region23: #{attention_forward.5} parent=5 // pred_region
        // Predicated region
        $region25: #{attention_forward.5} parent=23 // pred_check
          %p131 = pneg %p32
        $region26: #{attention_forward.5} parent=23 // pred_check_branch
          %133 = sbr.rel (%p131) target = $region28
        $region27: #{attention_forward.5} parent=23 // pred_region
          %s134 = smul.u32 16, %s12
          %p135 = scmp.lt.s32.totalorder %s134, 31
          %s136 = scalar_select %p135, %s134, 31
          %s137 = smul.addr %s136, 4
          %s138 = scalar_lea.vmem %s0, %s137
          %s139 = smul.u32 16, %s12
        $region28: #{attention_forward.5} parent=23 // pred_fallthru
          _
      $region24: #{attention_forward.5} parent=5 // pred_fallthru
        _
      %p140 = scmp.le.s32.totalorder 1, %s12
      %p141 = scmp.lt.s32.totalorder %s12, 3
      %p142 = pnand %p140, %p141
      %p143 = pneg %p142
      // Predicated region
      $region29: #{attention_forward.5} parent=5 // pred_check
        _
      $region30: #{attention_forward.5} parent=5 // pred_check_branch
        %145 = sbr.rel (%p142) target = $region32
      $region31: #{attention_forward.5} parent=5 // pred_region
        %s146 = ssub.s32 %s12, 1
        %s147 = smul.u32 16, %s17
        %p148 = scmp.lt.s32.totalorder %s147, 31
        %s149 = scalar_select %p148, %s147, 31
        %s150 = smul.addr %s149, 4
        %s151 = scalar_lea.vmem %s0, %s150
        %p152 = pneg %p38
        %p153 = pneg %p35
        %p154 = pneg %p59
        %p155 = pneg %p56
        %p156 = pneg %p80
        %p157 = pneg %p77
        %p158 = pneg %p106
        %p159 = pneg %p103
        %s160 = sand.u32 %s93, 1
        %s161 = scalar_lea.sflag [#allocation3], %s160
        %s162 = sand.u32 %s93, 1
        %s163 = smul.addr %s162, 128
        %s164 = scalar_lea.vmem [#allocation2], %s163
        %s165 = smul.u32 16, %s17
        %p166 = scmp.lt.s32.totalorder %s165, 31
        %s167 = scalar_select %p166, %s165, 31
        %s168 = smul.addr %s167, 4
        %s169 = scalar_lea.vmem %s0, %s168
        %s170 = smul.u32 16, %s17
        %s171 = smul.u32 16, %s17
        %v172 = vld [vmem:[%s169] sm:$0xf]
        %v173 = vld [vmem:[%s169 + $0x4] sm:$0xf]
        %v174 = vld [vmem:[%s169 + $0x8] sm:$0xf]
        %v175 = vld [vmem:[%s169 + $0xc] sm:$0xf]
        %v176 = vld [vmem:[%s169 + $0x10] sm:$0xf]
        %v177 = vld [vmem:[%s169 + $0x14] sm:$0xf]
        %v178 = vld [vmem:[%s169 + $0x18] sm:$0xf]
        %v179 = vld [vmem:[%s169 + $0x1c] sm:$0xf]
        %v180 = vld [vmem:[%s169 + $0x20] sm:$0xf]
        %v181 = vld [vmem:[%s169 + $0x24] sm:$0xf]
        %v182 = vld [vmem:[%s169 + $0x28] sm:$0xf]
        %v183 = vld [vmem:[%s169 + $0x2c] sm:$0xf]
        %v184 = vld [vmem:[%s169 + $0x30] sm:$0xf]
        %v185 = vld [vmem:[%s169 + $0x34] sm:$0xf]
        %v186 = vld [vmem:[%s169 + $0x38] sm:$0xf]
        %v187 = vld [vmem:[%s169 + $0x3c] sm:$0xf]
        %v188 = vld [vmem:[%s1] sm:$0xf]
        %v189 = vld [vmem:[%s1 + $0x4] sm:$0xf]
        %v190 = vld [vmem:[%s1 + $0x8] sm:$0xf]
        %v191 = vld [vmem:[%s1 + $0xc] sm:$0xf]
        %v192 = vld [vmem:[%s1 + $0x10] sm:$0xf]
        %v193 = vld [vmem:[%s1 + $0x14] sm:$0xf]
        %v194 = vld [vmem:[%s1 + $0x18] sm:$0xf]
        %v195 = vld [vmem:[%s1 + $0x1c] sm:$0xf]
        %v196 = vld [vmem:[%s1 + $0x20] sm:$0xf]
        %v197 = vld [vmem:[%s1 + $0x24] sm:$0xf]
        %v198 = vld [vmem:[%s1 + $0x28] sm:$0xf]
        %v199 = vld [vmem:[%s1 + $0x2c] sm:$0xf]
        %v200 = vld [vmem:[%s1 + $0x30] sm:$0xf]
        %v201 = vld [vmem:[%s1 + $0x34] sm:$0xf]
        %v202 = vld [vmem:[%s1 + $0x38] sm:$0xf]
        %v203 = vld [vmem:[%s1 + $0x3c] sm:$0xf]
        %v204 = vld [vmem:[%s2] sm:$0x1]
        %v206 = vperm.slane %v204, 0
        %v224 = vunpack.c.l.b16 %v172
        %v225 = vunpack.c.l.b16 %v173
        %v226 = vunpack.c.l.b16 %v174
        %v227 = vunpack.c.l.b16 %v175
        %v228 = vunpack.c.l.b16 %v176
        %v229 = vunpack.c.l.b16 %v177
        %v230 = vunpack.c.l.b16 %v178
        %v231 = vunpack.c.l.b16 %v179
        %v232 = vunpack.c.l.b16 %v180
        %v233 = vunpack.c.l.b16 %v181
        %v234 = vunpack.c.l.b16 %v182
        %v235 = vunpack.c.l.b16 %v183
        %v236 = vunpack.c.l.b16 %v184
        %v237 = vunpack.c.l.b16 %v185
        %v238 = vunpack.c.l.b16 %v186
        %v239 = vunpack.c.l.b16 %v187
        %v240 = vpack.c.b16 %v225, %v224
        %v241 = vpack.c.b16 %v227, %v226
        %v242 = vpack.c.b16 %v229, %v228
        %v243 = vpack.c.b16 %v231, %v230
        %v244 = vpack.c.b16 %v233, %v232
        %v245 = vpack.c.b16 %v235, %v234
        %v246 = vpack.c.b16 %v237, %v236
        %v247 = vpack.c.b16 %v239, %v238
        %v272 = vunpack.c.l.b16 %v188
        %v273 = vunpack.c.l.b16 %v189
        %v274 = vunpack.c.l.b16 %v190
        %v275 = vunpack.c.l.b16 %v191
        %v276 = vunpack.c.l.b16 %v192
        %v277 = vunpack.c.l.b16 %v193
        %v278 = vunpack.c.l.b16 %v194
        %v279 = vunpack.c.l.b16 %v195
        %v280 = vunpack.c.l.b16 %v196
        %v281 = vunpack.c.l.b16 %v197
        %v282 = vunpack.c.l.b16 %v198
        %v283 = vunpack.c.l.b16 %v199
        %v284 = vunpack.c.l.b16 %v200
        %v285 = vunpack.c.l.b16 %v201
        %v286 = vunpack.c.l.b16 %v202
        %v287 = vunpack.c.l.b16 %v203
        %v288 = vpack.c.b16 %v273, %v272
        %v289 = vpack.c.b16 %v275, %v274
        %v290 = vpack.c.b16 %v277, %v276
        %v291 = vpack.c.b16 %v279, %v278
        %v292 = vpack.c.b16 %v281, %v280
        %v293 = vpack.c.b16 %v283, %v282
        %v294 = vpack.c.b16 %v285, %v284
        %v295 = vpack.c.b16 %v287, %v286
        %304 = vmatpush.bf16.msra.mxu0 %v295
        %305 = vmatpush.bf16.msra.mxu0 %v294
        %306 = vmatpush.bf16.msra.mxu0 %v293
        %307 = vmatpush.bf16.msra.mxu0 %v292
        %308 = vmatpush.bf16.msra.mxu0 %v291
        %309 = vmatpush.bf16.msra.mxu0 %v290
        %310 = vmatpush.bf16.msra.mxu0 %v289
        %311 = vmatpush.bf16.msra.mxu0 %v288
        %312 = vmatmul.bf16.gmra.mxu0 %v240
        %v313 = vpop.f32.mrf.mxu0
        %v314 = vadd.f32 %v206, %v313
        %v315 = vpop.f32.mrf.mxu0
        %v316 = vadd.f32 %v206, %v315
        %317 = vmatmul.bf16.gmra.mxu0 %v241
        %v318 = vpop.f32.mrf.mxu0
        %v319 = vadd.f32 %v206, %v318
        %v320 = vpop.f32.mrf.mxu0
        %v321 = vadd.f32 %v206, %v320
        %322 = vmatmul.bf16.gmra.mxu0 %v242
        %v323 = vpop.f32.mrf.mxu0
        %v324 = vadd.f32 %v206, %v323
        %v325 = vpop.f32.mrf.mxu0
        %v326 = vadd.f32 %v206, %v325
        %327 = vmatmul.bf16.gmra.mxu0 %v243
        %v328 = vpop.f32.mrf.mxu0
        %v329 = vadd.f32 %v206, %v328
        %v330 = vpop.f32.mrf.mxu0
        %v331 = vadd.f32 %v206, %v330
        %332 = vmatmul.bf16.gmra.mxu0 %v244
        %v333 = vpop.f32.mrf.mxu0
        %v334 = vadd.f32 %v206, %v333
        %v335 = vpop.f32.mrf.mxu0
        %v336 = vadd.f32 %v206, %v335
        %337 = vmatmul.bf16.gmra.mxu0 %v245
        %v338 = vpop.f32.mrf.mxu0
        %v339 = vadd.f32 %v206, %v338
        %v340 = vpop.f32.mrf.mxu0
        %v341 = vadd.f32 %v206, %v340
        %342 = vmatmul.bf16.gmra.mxu0 %v246
        %v343 = vpop.f32.mrf.mxu0
        %v344 = vadd.f32 %v206, %v343
        %v345 = vpop.f32.mrf.mxu0
        %v346 = vadd.f32 %v206, %v345
        %347 = vmatmul.bf16.gmra.mxu0 %v247
        %v348 = vpop.f32.mrf.mxu0
        %v349 = vadd.f32 %v206, %v348
        %v350 = vpop.f32.mrf.mxu0
        %v351 = vadd.f32 %v206, %v350
        %352 = vdwg.mxu0
        %353 = vst [vmem:[%s164] sm:$0xff] %v314
        %354 = vst [vmem:[%s164 + $0x8] sm:$0xff] %v316
        %355 = vst [vmem:[%s164 + $0x10] sm:$0xff] %v319
        %356 = vst [vmem:[%s164 + $0x18] sm:$0xff] %v321
        %357 = vst [vmem:[%s164 + $0x20] sm:$0xff] %v324
        %358 = vst [vmem:[%s164 + $0x28] sm:$0xff] %v326
        %359 = vst [vmem:[%s164 + $0x30] sm:$0xff] %v329
        %360 = vst [vmem:[%s164 + $0x38] sm:$0xff] %v331
        %361 = vst [vmem:[%s164 + $0x40] sm:$0xff] %v334
        %362 = vst [vmem:[%s164 + $0x48] sm:$0xff] %v336
        %363 = vst [vmem:[%s164 + $0x50] sm:$0xff] %v339
        %364 = vst [vmem:[%s164 + $0x58] sm:$0xff] %v341
        %365 = vst [vmem:[%s164 + $0x60] sm:$0xff] %v344
        %366 = vst [vmem:[%s164 + $0x68] sm:$0xff] %v346
        %367 = vst [vmem:[%s164 + $0x70] sm:$0xff] %v349
        %368 = vst [vmem:[%s164 + $0x78] sm:$0xff] %v351
        %s369 = sand.u32 %s93, 1
        %s370 = scalar_lea.sflag [#allocation3], %s369
        %s371 = sand.u32 %s93, 1
        %s372 = smul.addr %s371, 128
        %s373 = scalar_lea.vmem [#allocation2], %s372
        // Predicated region
        $region33: #{attention_forward.5} parent=31 // pred_check
          %p374 = pneg %p103
        $region34: #{attention_forward.5} parent=31 // pred_check_branch
          %376 = sbr.rel (%p374) target = $region36
        $region35: #{attention_forward.5} parent=31 // pred_region
          %s377 = smul.u32 16, %s17
          %379 = vsyncadd %s370, 0
          %s380 = smul.addr %s377, 8
          %s381 = scalar_lea.hbm %s3, %s380
          %s382 = sshll.u32 %s373, 4
          %s383 = int_to_ptr.vmem [resolvable:$true] %s382
          %s384 = sshll.u32 %s381, 4
          %s385 = int_to_ptr.hbm [resolvable:$true] %s384
          %390 = dma.vmem_to_hbm [thread:$0]  %s383, 2048, %s385, %s370, 128, 128, 8
        $region36: #{attention_forward.5} parent=31 // pred_fallthru
          _
      $region32: #{attention_forward.5} parent=5 // pred_fallthru
        _
      %p391 = scmp.le.s32.totalorder 2, %s12
      // Predicated region
      $region37: #{attention_forward.5} parent=5 // pred_check
        %p392 = pneg %p391
      $region38: #{attention_forward.5} parent=5 // pred_check_branch
        %394 = sbr.rel (%p392) target = $region40
      $region39: #{attention_forward.5} parent=5 // pred_region
        %s395 = ssub.s32 %s12, 2
        // Predicated region
        $region41: #{attention_forward.5} parent=39 // pred_check
          %p396 = pneg %p109
        $region42: #{attention_forward.5} parent=39 // pred_check_branch
          %398 = sbr.rel (%p396) target = $region44
        $region43: #{attention_forward.5} parent=39 // pred_region
          %s399 = sand.u32 %s94, 1
          %s400 = scalar_lea.sflag [#allocation3], %s399
          %s401 = sand.u32 %s94, 1
          %s402 = smul.addr %s401, 128
          %s403 = scalar_lea.vmem [#allocation2], %s402
          %405 = dma.done %s400, 2048
        $region44: #{attention_forward.5} parent=39 // pred_fallthru
          _
      $region40: #{attention_forward.5} parent=5 // pred_fallthru
        _
    $region6: #{attention_forward.5} parent=1 // loop_footer
      %s16 = sadd.s32 1, %s12
    $region7: #{attention_forward.5} parent=1 // loop_footer_branch
      %11 = sbr.rel target = $region3
    $region8: #{attention_forward.5} parent=1 // loop_exit
      _
    %406 = vsyncpa [#allocation3], 1
    %s407 = scalar_lea.sflag [#allocation3], 1
    %408 = vsyncpa %s407, 1

// kernel: attention_forward.4
$region0: #{attention_forward.4}
  #allocation0 [shape = 'u32[]', space=smem, size = 0x4, offset = 0x4, fixed_abs, tag = 'smem constant byte address 0x4 - core index']
  #allocation1 [shape = 'u32[72,128]{1,0:T(1,128)}', space=vmem, size = 0x9000, scoped, tag = 'internal scratch']
  %s0 = inlined_call_operand.vmem [shape: bf16[2,128,128], index: 0, kind: input, shape index: {}]
  %s1 = inlined_call_operand.vmem [shape: bf16[2,128,128], index: 1, kind: input, shape index: {}]
  %s2 = inlined_call_operand.vmem [shape: bf16[2,128,128], index: 2, kind: input, shape index: {}]
  %s3 = inlined_call_operand.vmem [shape: bf16[2,128,128], index: 3, kind: output, shape index: {}]
  %s4 = sld [smem:[#allocation0]]
  $region45: #{attention_forward.4} parent=0
    _
  %s6 = ssub.s32 1, %s4
  %s7 = scalar_select 0, %s6, %s4
  loop: start=0, step=1, limit=4
  $region2: #{attention_forward.4} parent=0 // loop_pre_header
    _
  $region3: #{attention_forward.4} parent=0 // loop_header
    %s9 = sphi 0, %s13
    %p10 = scmp.ge.s32.totalorder %s9, 4
    %s16 = sphi 0, %s28
    %s17 = sphi 0, %s24
    %s18 = sphi 0, %s16
    %s19 = sphi 0, %s17
    %s20 = sphi 0, %s18
    %s21 = sphi 0, %s19
    %s33 = sphi 0, %s35
    %s36 = sphi 0, %s33
    %s37 = sphi 0, %s36
    %s53 = sphi 0, %s37
    %s59 = sphi 0, %s61
    %s62 = sphi 0, %s59
    %s63 = sphi 0, %s62
    %s79 = sphi 0, %s63
    %s85 = sphi 0, %s87
    %s88 = sphi 0, %s85
    %s89 = sphi 0, %s88
    %s105 = sphi 0, %s89
    %s113 = sphi 0, %s115
    %s116 = sphi 0, %s113
    %s117 = sphi 0, %s116
    %s133 = sphi 0, %s117
  $region4: #{attention_forward.4} parent=0 // loop_header_branch
    %12 = sbr.rel (%p10) target = $region8
  $region5: #{attention_forward.4} parent=0 // loop_body
    %s14 = ssub.s32 %s9, 1
    %s15 = ssub.s32 %s9, 2
    %s22 = sadd.s32 1, %s17
    %p23 = scmp.ge.s32.totalorder %s22, 1
    %s24 = scalar_select %p23, 0, %s22
    %s25 = sadd.s32 1, %s16
    %s26 = scalar_select %p23, %s25, %s16
    %p27 = scmp.ge.s32.totalorder %s26, 2
    %s28 = scalar_select %p27, 0, %s26
    %s29 = ssub.s32 %s16, %s28
    %s30 = ssub.s32 %s17, %s24
    %s31 = sor.u32 %s29, %s30
    %p32 = scmp.eq.s32.totalorder %s31, 0
    %s34 = sadd.s32 %s33, 1
    %s35 = scalar_select %p32, %s33, %s34
    %p38 = pneg %p32
    %p39 = scmp.eq.s32.totalorder %s9, 1
    %p40 = por %p38, %p39
    %p41 = scmp.ne.s32.totalorder %s33, %s36
    %p42 = scmp.eq.s32.totalorder %s9, 0
    %p43 = por %p41, %p42
    %p44 = scmp.ne.s32.totalorder %s33, %s36
    %p45 = scmp.eq.s32.totalorder %s14, 1
    %p46 = por %p44, %p45
    %p47 = scmp.ne.s32.totalorder %s36, %s37
    %p48 = scmp.eq.s32.totalorder %s14, 0
    %p49 = por %p47, %p48
    %p50 = scmp.ne.s32.totalorder %s36, %s37
    %p51 = scmp.eq.s32.totalorder %s15, 1
    %p52 = por %p50, %p51
    %p54 = scmp.ne.s32.totalorder %s37, %s53
    %p55 = scmp.eq.s32.totalorder %s15, 0
    %p56 = por %p54, %p55
    %s57 = ssub.s32 %s16, %s28
    %p58 = scmp.eq.s32.totalorder %s57, 0
    %s60 = sadd.s32 %s59, 1
    %s61 = scalar_select %p58, %s59, %s60
    %p64 = pneg %p58
    %p65 = scmp.eq.s32.totalorder %s9, 1
    %p66 = por %p64, %p65
    %p67 = scmp.ne.s32.totalorder %s59, %s62
    %p68 = scmp.eq.s32.totalorder %s9, 0
    %p69 = por %p67, %p68
    %p70 = scmp.ne.s32.totalorder %s59, %s62
    %p71 = scmp.eq.s32.totalorder %s14, 1
    %p72 = por %p70, %p71
    %p73 = scmp.ne.s32.totalorder %s62, %s63
    %p74 = scmp.eq.s32.totalorder %s14, 0
    %p75 = por %p73, %p74
    %p76 = scmp.ne.s32.totalorder %s62, %s63
    %p77 = scmp.eq.s32.totalorder %s15, 1
    %p78 = por %p76, %p77
    %p80 = scmp.ne.s32.totalorder %s63, %s79
    %p81 = scmp.eq.s32.totalorder %s15, 0
    %p82 = por %p80, %p81
    %s83 = ssub.s32 %s16, %s28
    %p84 = scmp.eq.s32.totalorder %s83, 0
    %s86 = sadd.s32 %s85, 1
    %s87 = scalar_select %p84, %s85, %s86
    %p90 = pneg %p84
    %p91 = scmp.eq.s32.totalorder %s9, 1
    %p92 = por %p90, %p91
    %p93 = scmp.ne.s32.totalorder %s85, %s88
    %p94 = scmp.eq.s32.totalorder %s9, 0
    %p95 = por %p93, %p94
    %p96 = scmp.ne.s32.totalorder %s85, %s88
    %p97 = scmp.eq.s32.totalorder %s14, 1
    %p98 = por %p96, %p97
    %p99 = scmp.ne.s32.totalorder %s88, %s89
    %p100 = scmp.eq.s32.totalorder %s14, 0
    %p101 = por %p99, %p100
    %p102 = scmp.ne.s32.totalorder %s88, %s89
    %p103 = scmp.eq.s32.totalorder %s15, 1
    %p104 = por %p102, %p103
    %p106 = scmp.ne.s32.totalorder %s89, %s105
    %p107 = scmp.eq.s32.totalorder %s15, 0
    %p108 = por %p106, %p107
    %s109 = ssub.s32 %s16, %s28
    %s110 = ssub.s32 %s17, %s24
    %s111 = sor.u32 %s109, %s110
    %p112 = scmp.eq.s32.totalorder %s111, 0
    %s114 = sadd.s32 %s113, 1
    %s115 = scalar_select %p112, %s113, %s114
    %p118 = pneg %p112
    %p119 = scmp.eq.s32.totalorder %s9, 1
    %p120 = por %p118, %p119
    %p121 = scmp.ne.s32.totalorder %s113, %s116
    %p122 = scmp.eq.s32.totalorder %s9, 0
    %p123 = por %p121, %p122
    %p124 = scmp.ne.s32.totalorder %s113, %s116
    %p125 = scmp.eq.s32.totalorder %s14, 1
    %p126 = por %p124, %p125
    %p127 = scmp.ne.s32.totalorder %s116, %s117
    %p128 = scmp.eq.s32.totalorder %s14, 0
    %p129 = por %p127, %p128
    %p130 = scmp.ne.s32.totalorder %s116, %s117
    %p131 = scmp.eq.s32.totalorder %s15, 1
    %p132 = por %p130, %p131
    %p134 = scmp.ne.s32.totalorder %s117, %s133
    %p135 = scmp.eq.s32.totalorder %s15, 0
    %p136 = por %p134, %p135
    %p137 = scmp.le.s32.totalorder 1, %s9
    %p138 = scmp.lt.s32.totalorder %s9, 3
    %p139 = pnand %p137, %p138
    %p140 = pneg %p139
    // Predicated region
    $region9: #{attention_forward.4} parent=5 // pred_check
      _
    $region10: #{attention_forward.4} parent=5 // pred_check_branch
      %142 = sbr.rel (%p139) target = $region12
    $region11: #{attention_forward.4} parent=5 // pred_region
      %s143 = ssub.s32 %s9, 1
    $region12: #{attention_forward.4} parent=5 // pred_fallthru
      _
    %p144 = scmp.lt.s32.totalorder %s9, 2
    // Predicated region
    $region13: #{attention_forward.4} parent=5 // pred_check
      %p145 = pneg %p144
    $region14: #{attention_forward.4} parent=5 // pred_check_branch
      %147 = sbr.rel (%p145) target = $region16
    $region15: #{attention_forward.4} parent=5 // pred_region
      // Predicated region
      $region17: #{attention_forward.4} parent=15 // pred_check
        %p148 = pneg %p43
      $region18: #{attention_forward.4} parent=15 // pred_check_branch
        %150 = sbr.rel (%p148) target = $region20
      $region19: #{attention_forward.4} parent=15 // pred_region
        %s151 = smul.u32 16, %s17
        %p152 = scmp.lt.s32.totalorder %s16, 1
        %s153 = scalar_select %p152, %s16, 1
        %p154 = scmp.lt.s32.totalorder %s151, 15
        %s155 = scalar_select %p154, %s151, 15
        %s156 = smul.addr %s153, 16
        %s157 = sadd.s32 %s155, %s156
        %s158 = smul.addr %s157, 4
        %s159 = scalar_lea.vmem %s0, %s158
        %s160 = smul.u32 16, %s17
      $region20: #{attention_forward.4} parent=15 // pred_fallthru
        _
      // Predicated region
      $region21: #{attention_forward.4} parent=15 // pred_check
        %p161 = pneg %p69
      $region22: #{attention_forward.4} parent=15 // pred_check_branch
        %163 = sbr.rel (%p161) target = $region24
      $region23: #{attention_forward.4} parent=15 // pred_region
        %p164 = scmp.lt.s32.totalorder %s16, 1
        %s165 = scalar_select %p164, %s16, 1
        %s166 = smul.addr %s165, 16
        %s167 = smul.addr %s166, 4
        %s168 = scalar_lea.vmem %s1, %s167
      $region24: #{attention_forward.4} parent=15 // pred_fallthru
        _
      // Predicated region
      $region25: #{attention_forward.4} parent=15 // pred_check
        %p169 = pneg %p95
      $region26: #{attention_forward.4} parent=15 // pred_check_branch
        %171 = sbr.rel (%p169) target = $region28
      $region27: #{attention_forward.4} parent=15 // pred_region
        %p172 = scmp.lt.s32.totalorder %s16, 1
        %s173 = scalar_select %p172, %s16, 1
        %s174 = smul.addr %s173, 16
        %s175 = smul.addr %s174, 4
        %s176 = scalar_lea.vmem %s2, %s175
      $region28: #{attention_forward.4} parent=15 // pred_fallthru
        _
    $region16: #{attention_forward.4} parent=5 // pred_fallthru
      _
    %p177 = scmp.le.s32.totalorder 1, %s9
    %p178 = scmp.lt.s32.totalorder %s9, 3
    %p179 = pnand %p177, %p178
    %p180 = pneg %p179
    // Predicated region
    $region29: #{attention_forward.4} parent=5 // pred_check
      _
    $region30: #{attention_forward.4} parent=5 // pred_check_branch
      %182 = sbr.rel (%p179) target = $region32
    $region31: #{attention_forward.4} parent=5 // pred_region
      %s183 = ssub.s32 %s9, 1
      %s184 = smul.u32 16, %s19
      %p185 = scmp.lt.s32.totalorder %s18, 1
      %s186 = scalar_select %p185, %s18, 1
      %p187 = scmp.lt.s32.totalorder %s184, 15
      %s188 = scalar_select %p187, %s184, 15
      %s189 = smul.addr %s186, 16
      %s190 = sadd.s32 %s188, %s189
      %s191 = smul.addr %s190, 4
      %s192 = scalar_lea.vmem %s0, %s191
      %p193 = pneg %p49
      %p194 = pneg %p46
      %p195 = scmp.lt.s32.totalorder %s18, 1
      %s196 = scalar_select %p195, %s18, 1
      %s197 = smul.addr %s196, 16
      %s198 = smul.addr %s197, 4
      %s199 = scalar_lea.vmem %s1, %s198
      %p200 = pneg %p75
      %p201 = pneg %p72
      %p202 = scmp.lt.s32.totalorder %s18, 1
      %s203 = scalar_select %p202, %s18, 1
      %s204 = smul.addr %s203, 16
      %s205 = smul.addr %s204, 4
      %s206 = scalar_lea.vmem %s2, %s205
      %p207 = pneg %p101
      %p208 = pneg %p98
      %p209 = pneg %p129
      %p210 = pneg %p126
      %s211 = smul.u32 16, %s19
      %p212 = scmp.lt.s32.totalorder %s18, 1
      %s213 = scalar_select %p212, %s18, 1
      %p214 = scmp.lt.s32.totalorder %s211, 15
      %s215 = scalar_select %p214, %s211, 15
      %s216 = smul.addr %s213, 16
      %s217 = sadd.s32 %s215, %s216
      %s218 = smul.addr %s217, 4
      %s219 = scalar_lea.vmem %s3, %s218
      %s220 = smul.u32 16, %s19
      %p221 = scmp.lt.s32.totalorder %s18, 1
      %s222 = scalar_select %p221, %s18, 1
      %p223 = scmp.lt.s32.totalorder %s220, 15
      %s224 = scalar_select %p223, %s220, 15
      %s225 = smul.addr %s222, 16
      %s226 = sadd.s32 %s224, %s225
      %s227 = smul.addr %s226, 4
      %s228 = scalar_lea.vmem %s0, %s227
      %s229 = smul.u32 16, %s19
      %p230 = scmp.lt.s32.totalorder %s18, 1
      %s231 = scalar_select %p230, %s18, 1
      %s232 = smul.addr %s231, 16
      %s233 = smul.addr %s232, 4
      %s234 = scalar_lea.vmem %s1, %s233
      %p235 = scmp.lt.s32.totalorder %s18, 1
      %s236 = scalar_select %p235, %s18, 1
      %s237 = smul.addr %s236, 16
      %s238 = smul.addr %s237, 4
      %s239 = scalar_lea.vmem %s2, %s238
      %s240 = smul.u32 16, %s19
      %p241 = scmp.lt.s32.totalorder %s18, 1
      %s242 = scalar_select %p241, %s18, 1
      %p243 = scmp.lt.s32.totalorder %s240, 15
      %s244 = scalar_select %p243, %s240, 15
      %s245 = smul.addr %s242, 16
      %s246 = sadd.s32 %s244, %s245
      %s247 = smul.addr %s246, 4
      %s248 = scalar_lea.vmem %s3, %s247
      %s249 = smul.u32 16, %s19
      %v250 = vld [vmem:[%s228] sm:$0xf]
      %v251 = vld [vmem:[%s228 + $0x4] sm:$0xf]
      %v252 = vld [vmem:[%s228 + $0x8] sm:$0xf]
      %v253 = vld [vmem:[%s228 + $0xc] sm:$0xf]
      %v254 = vld [vmem:[%s228 + $0x10] sm:$0xf]
      %v255 = vld [vmem:[%s228 + $0x14] sm:$0xf]
      %v256 = vld [vmem:[%s228 + $0x18] sm:$0xf]
      %v257 = vld [vmem:[%s228 + $0x1c] sm:$0xf]
      %v258 = vld [vmem:[%s228 + $0x20] sm:$0xf]
      %v259 = vld [vmem:[%s228 + $0x24] sm:$0xf]
      %v260 = vld [vmem:[%s228 + $0x28] sm:$0xf]
      %v261 = vld [vmem:[%s228 + $0x2c] sm:$0xf]
      %v262 = vld [vmem:[%s228 + $0x30] sm:$0xf]
      %v263 = vld [vmem:[%s228 + $0x34] sm:$0xf]
      %v264 = vld [vmem:[%s228 + $0x38] sm:$0xf]
      %v265 = vld [vmem:[%s228 + $0x3c] sm:$0xf]
      %v266 = vld [vmem:[%s234] sm:$0xf]
      %v267 = vld [vmem:[%s234 + $0x4] sm:$0xf]
      %v268 = vld [vmem:[%s234 + $0x8] sm:$0xf]
      %v269 = vld [vmem:[%s234 + $0xc] sm:$0xf]
      %v270 = vld [vmem:[%s234 + $0x10] sm:$0xf]
      %v271 = vld [vmem:[%s234 + $0x14] sm:$0xf]
      %v272 = vld [vmem:[%s234 + $0x18] sm:$0xf]
      %v273 = vld [vmem:[%s234 + $0x1c] sm:$0xf]
      %v274 = vld [vmem:[%s234 + $0x20] sm:$0xf]
      %v275 = vld [vmem:[%s234 + $0x24] sm:$0xf]
      %v276 = vld [vmem:[%s234 + $0x28] sm:$0xf]
      %v277 = vld [vmem:[%s234 + $0x2c] sm:$0xf]
      %v278 = vld [vmem:[%s234 + $0x30] sm:$0xf]
      %v279 = vld [vmem:[%s234 + $0x34] sm:$0xf]
      %v280 = vld [vmem:[%s234 + $0x38] sm:$0xf]
      %v281 = vld [vmem:[%s234 + $0x3c] sm:$0xf]
      %v282 = vld [vmem:[%s239] sm:$0xf]
      %v283 = vld [vmem:[%s239 + $0x4] sm:$0xf]
      %v284 = vld [vmem:[%s239 + $0x8] sm:$0xf]
      %v285 = vld [vmem:[%s239 + $0xc] sm:$0xf]
      %v286 = vld [vmem:[%s239 + $0x10] sm:$0xf]
      %v287 = vld [vmem:[%s239 + $0x14] sm:$0xf]
      %v288 = vld [vmem:[%s239 + $0x18] sm:$0xf]
      %v289 = vld [vmem:[%s239 + $0x1c] sm:$0xf]
      %v290 = vld [vmem:[%s239 + $0x20] sm:$0xf]
      %v291 = vld [vmem:[%s239 + $0x24] sm:$0xf]
      %v292 = vld [vmem:[%s239 + $0x28] sm:$0xf]
      %v293 = vld [vmem:[%s239 + $0x2c] sm:$0xf]
      %v294 = vld [vmem:[%s239 + $0x30] sm:$0xf]
      %v295 = vld [vmem:[%s239 + $0x34] sm:$0xf]
      %v296 = vld [vmem:[%s239 + $0x38] sm:$0xf]
      %v297 = vld [vmem:[%s239 + $0x3c] sm:$0xf]
      %v314 = vunpack.c.l.b16 %v250
      %v315 = vunpack.c.l.b16 %v251
      %v316 = vunpack.c.l.b16 %v252
      %v317 = vunpack.c.l.b16 %v253
      %v318 = vunpack.c.l.b16 %v254
      %v319 = vunpack.c.l.b16 %v255
      %v320 = vunpack.c.l.b16 %v256
      %v321 = vunpack.c.l.b16 %v257
      %v322 = vunpack.c.l.b16 %v258
      %v323 = vunpack.c.l.b16 %v259
      %v324 = vunpack.c.l.b16 %v260
      %v325 = vunpack.c.l.b16 %v261
      %v326 = vunpack.c.l.b16 %v262
      %v327 = vunpack.c.l.b16 %v263
      %v328 = vunpack.c.l.b16 %v264
      %v329 = vunpack.c.l.b16 %v265
      %v330 = vpack.c.b16 %v315, %v314
      %v331 = vpack.c.b16 %v317, %v316
      %v332 = vpack.c.b16 %v319, %v318
      %v333 = vpack.c.b16 %v321, %v320
      %v334 = vpack.c.b16 %v323, %v322
      %v335 = vpack.c.b16 %v325, %v324
      %v336 = vpack.c.b16 %v327, %v326
      %v337 = vpack.c.b16 %v329, %v328
      %v354 = vunpack.c.l.b16 %v266
      %v355 = vunpack.c.l.b16 %v267
      %v356 = vunpack.c.l.b16 %v268
      %v357 = vunpack.c.l.b16 %v269
      %v358 = vunpack.c.l.b16 %v270
      %v359 = vunpack.c.l.b16 %v271
      %v360 = vunpack.c.l.b16 %v272
      %v361 = vunpack.c.l.b16 %v273
      %v362 = vunpack.c.l.b16 %v274
      %v363 = vunpack.c.l.b16 %v275
      %v364 = vunpack.c.l.b16 %v276
      %v365 = vunpack.c.l.b16 %v277
      %v366 = vunpack.c.l.b16 %v278
      %v367 = vunpack.c.l.b16 %v279
      %v368 = vunpack.c.l.b16 %v280
      %v369 = vunpack.c.l.b16 %v281
      %v370 = vpack.c.b16 %v355, %v354
      %v371 = vpack.c.b16 %v357, %v356
      %v372 = vpack.c.b16 %v359, %v358
      %v373 = vpack.c.b16 %v361, %v360
      %v374 = vpack.c.b16 %v363, %v362
      %v375 = vpack.c.b16 %v365, %v364
      %v376 = vpack.c.b16 %v367, %v366
      %v377 = vpack.c.b16 %v369, %v368
      %vm378 = vcmask 130048
      %v380 = vsel %vm378, %v330, 0
      %v383 = vsel %vm378, %v331, 0
      %v386 = vsel %vm378, %v332, 0
      %v389 = vsel %vm378, %v333, 0
      %v392 = vsel %vm378, %v334, 0
      %v395 = vsel %vm378, %v335, 0
      %v398 = vsel %vm378, %v336, 0
      %v401 = vsel %vm378, %v337, 0
      %v404 = vsel %vm378, %v370, 0
      %v407 = vsel %vm378, %v371, 0
      %v410 = vsel %vm378, %v372, 0
      %v413 = vsel %vm378, %v373, 0
      %v416 = vsel %vm378, %v374, 0
      %v419 = vsel %vm378, %v375, 0
      %v422 = vsel %vm378, %v376, 0
      %v425 = vsel %vm378, %v377, 0
      %427 = vmatpush.bf16.xpose.msra.mxu0 %v425
      %428 = vmatpush.bf16.xpose.msra.mxu0 %v422
      %429 = vmatpush.bf16.xpose.msra.mxu0 %v419
      %430 = vmatpush.bf16.xpose.msra.mxu0 %v416
      %431 = vmatpush.bf16.xpose.msra.mxu0 %v413
      %432 = vmatpush.bf16.xpose.msra.mxu0 %v410
      %433 = vmatpush.bf16.xpose.msra.mxu0 %v407
      %434 = vmatpush.bf16.xpose.msra.mxu0 %v404
      %435 = vmatmul.bf16.gmra.mxu0 %v380
      %v436 = vpop.f32.mrf.mxu0
      %v437 = vadd.f32 0.0, %v436
      %v438 = vpop.f32.mrf.mxu0
      %v439 = vadd.f32 0.0, %v438
      %440 = vmatmul.bf16.gmra.mxu0 %v383
      %v441 = vpop.f32.mrf.mxu0
      %v442 = vadd.f32 0.0, %v441
      %v443 = vpop.f32.mrf.mxu0
      %v444 = vadd.f32 0.0, %v443
      %445 = vmatmul.bf16.gmra.mxu0 %v386
      %v446 = vpop.f32.mrf.mxu0
      %v447 = vadd.f32 0.0, %v446
      %v448 = vpop.f32.mrf.mxu0
      %v449 = vadd.f32 0.0, %v448
      %450 = vmatmul.bf16.gmra.mxu0 %v389
      %v451 = vpop.f32.mrf.mxu0
      %v452 = vadd.f32 0.0, %v451
      %v453 = vpop.f32.mrf.mxu0
      %v454 = vadd.f32 0.0, %v453
      %455 = vmatmul.bf16.gmra.mxu0 %v392
      %v456 = vpop.f32.mrf.mxu0
      %v457 = vadd.f32 0.0, %v456
      %v458 = vpop.f32.mrf.mxu0
      %v459 = vadd.f32 0.0, %v458
      %460 = vmatmul.bf16.gmra.mxu0 %v395
      %v461 = vpop.f32.mrf.mxu0
      %v462 = vadd.f32 0.0, %v461
      %v463 = vpop.f32.mrf.mxu0
      %v464 = vadd.f32 0.0, %v463
      %465 = vmatmul.bf16.gmra.mxu0 %v398
      %v466 = vpop.f32.mrf.mxu0
      %v467 = vadd.f32 0.0, %v466
      %v468 = vpop.f32.mrf.mxu0
      %v469 = vadd.f32 0.0, %v468
      %470 = vmatmul.bf16.gmra.mxu0 %v401
      %v471 = vpop.f32.mrf.mxu0
      %v472 = vadd.f32 0.0, %v471
      %v473 = vpop.f32.mrf.mxu0
      %v474 = vadd.f32 0.0, %v473
      %475 = vdwg.mxu0
      %v476 = vmul.f32 %v437, 0.25
      %v477 = vmul.f32 %v439, 0.25
      %v478 = vmul.f32 %v442, 0.25
      %v479 = vmul.f32 %v444, 0.25
      %v480 = vmul.f32 %v447, 0.25
      %v481 = vmul.f32 %v449, 0.25
      %v482 = vmul.f32 %v452, 0.25
      %v483 = vmul.f32 %v454, 0.25
      %v484 = vmul.f32 %v457, 0.25
      %v485 = vmul.f32 %v459, 0.25
      %v486 = vmul.f32 %v462, 0.25
      %v487 = vmul.f32 %v464, 0.25
      %v488 = vmul.f32 %v467, 0.25
      %v489 = vmul.f32 %v469, 0.25
      %v490 = vmul.f32 %v472, 0.25
      %v491 = vmul.f32 %v474, 0.25
      %492 = vmax.xlane.f32.xlu0 %v476
      %v493 = vpop.xlane.xlu0 %492
      %494 = vmax.xlane.f32.xlu0 %v477
      %v495 = vpop.xlane.xlu0 %494
      %496 = vmax.xlane.f32.xlu0 %v478
      %v497 = vpop.xlane.xlu0 %496
      %498 = vmax.xlane.f32.xlu0 %v479
      %v499 = vpop.xlane.xlu0 %498
      %500 = vmax.xlane.f32.xlu0 %v480
      %v501 = vpop.xlane.xlu0 %500
      %502 = vmax.xlane.f32.xlu0 %v481
      %v503 = vpop.xlane.xlu0 %502
      %504 = vmax.xlane.f32.xlu0 %v482
      %v505 = vpop.xlane.xlu0 %504
      %506 = vmax.xlane.f32.xlu0 %v483
      %v507 = vpop.xlane.xlu0 %506
      %508 = vmax.xlane.f32.xlu0 %v484
      %v509 = vpop.xlane.xlu0 %508
      %510 = vmax.xlane.f32.xlu0 %v485
      %v511 = vpop.xlane.xlu0 %510
      %512 = vmax.xlane.f32.xlu0 %v486
      %v513 = vpop.xlane.xlu0 %512
      %514 = vmax.xlane.f32.xlu0 %v487
      %v515 = vpop.xlane.xlu0 %514
      %516 = vmax.xlane.f32.xlu0 %v488
      %v517 = vpop.xlane.xlu0 %516
      %518 = vmax.xlane.f32.xlu0 %v489
      %v519 = vpop.xlane.xlu0 %518
      %520 = vmax.xlane.f32.xlu0 %v490
      %v521 = vpop.xlane.xlu0 %520
      %522 = vmax.xlane.f32.xlu0 %v491
      %v523 = vpop.xlane.xlu0 %522
      %v524 = vsub.f32 %v476, %v493
      %v525 = vsub.f32 %v477, %v495
      %v526 = vsub.f32 %v478, %v497
      %v527 = vsub.f32 %v479, %v499
      %v528 = vsub.f32 %v480, %v501
      %v529 = vsub.f32 %v481, %v503
      %v530 = vsub.f32 %v482, %v505
      %v531 = vsub.f32 %v483, %v507
      %v532 = vsub.f32 %v484, %v509
      %v533 = vsub.f32 %v485, %v511
      %v534 = vsub.f32 %v486, %v513
      %v535 = vsub.f32 %v487, %v515
      %v536 = vsub.f32 %v488, %v517
      %v537 = vsub.f32 %v489, %v519
      %v538 = vsub.f32 %v490, %v521
      %v539 = vsub.f32 %v491, %v523
      %v540 = vmul.f32 %v524, 1.442695
      %v541 = vpow.pop %v540
      %v542 = vmul.f32 %v525, 1.442695
      %v543 = vpow.pop %v542
      %v544 = vmul.f32 %v526, 1.442695
      %v545 = vpow.pop %v544
      %v546 = vmul.f32 %v527, 1.442695
      %v547 = vpow.pop %v546
      %v548 = vmul.f32 %v528, 1.442695
      %v549 = vpow.pop %v548
      %v550 = vmul.f32 %v529, 1.442695
      %v551 = vpow.pop %v550
      %v552 = vmul.f32 %v530, 1.442695
      %v553 = vpow.pop %v552
      %v554 = vmul.f32 %v531, 1.442695
      %v555 = vpow.pop %v554
      %v556 = vmul.f32 %v532, 1.442695
      %v557 = vpow.pop %v556
      %v558 = vmul.f32 %v533, 1.442695
      %v559 = vpow.pop %v558
      %v560 = vmul.f32 %v534, 1.442695
      %v561 = vpow.pop %v560
      %v562 = vmul.f32 %v535, 1.442695
      %v563 = vpow.pop %v562
      %v564 = vmul.f32 %v536, 1.442695
      %v565 = vpow.pop %v564
      %v566 = vmul.f32 %v537, 1.442695
      %v567 = vpow.pop %v566
      %v568 = vmul.f32 %v538, 1.442695
      %v569 = vpow.pop %v568
      %v570 = vmul.f32 %v539, 1.442695
      %v571 = vpow.pop %v570
      %572 = vadd.xlane.f32.xlu0 %v541
      %v573 = vpop.xlane.xlu0 %572
      %574 = vadd.xlane.f32.xlu0 %v543
      %v575 = vpop.xlane.xlu0 %574
      %576 = vadd.xlane.f32.xlu0 %v545
      %v577 = vpop.xlane.xlu0 %576
      %578 = vadd.xlane.f32.xlu0 %v547
      %v579 = vpop.xlane.xlu0 %578
      %580 = vadd.xlane.f32.xlu0 %v549
      %v581 = vpop.xlane.xlu0 %580
      %582 = vadd.xlane.f32.xlu0 %v551
      %v583 = vpop.xlane.xlu0 %582
      %584 = vadd.xlane.f32.xlu0 %v553
      %v585 = vpop.xlane.xlu0 %584
      %586 = vadd.xlane.f32.xlu0 %v555
      %v587 = vpop.xlane.xlu0 %586
      %588 = vadd.xlane.f32.xlu0 %v557
      %v589 = vpop.xlane.xlu0 %588
      %590 = vadd.xlane.f32.xlu0 %v559
      %v591 = vpop.xlane.xlu0 %590
      %592 = vadd.xlane.f32.xlu0 %v561
      %v593 = vpop.xlane.xlu0 %592
      %594 = vadd.xlane.f32.xlu0 %v563
      %v595 = vpop.xlane.xlu0 %594
      %596 = vadd.xlane.f32.xlu0 %v565
      %v597 = vpop.xlane.xlu0 %596
      %598 = vadd.xlane.f32.xlu0 %v567
      %v599 = vpop.xlane.xlu0 %598
      %600 = vadd.xlane.f32.xlu0 %v569
      %v601 = vpop.xlane.xlu0 %600
      %602 = vadd.xlane.f32.xlu0 %v571
      %v603 = vpop.xlane.xlu0 %602
      %v604 = vpack.c.bf16 %v543, %v541
      %v605 = vpack.c.bf16 %v547, %v545
      %v606 = vpack.c.bf16 %v551, %v549
      %v607 = vpack.c.bf16 %v555, %v553
      %v608 = vpack.c.bf16 %v559, %v557
      %v609 = vpack.c.bf16 %v563, %v561
      %v610 = vpack.c.bf16 %v567, %v565
      %v611 = vpack.c.bf16 %v571, %v569
      %v628 = vunpack.c.l.b16 %v282
      %v629 = vunpack.c.l.b16 %v283
      %v630 = vunpack.c.l.b16 %v284
      %v631 = vunpack.c.l.b16 %v285
      %v632 = vunpack.c.l.b16 %v286
      %v633 = vunpack.c.l.b16 %v287
      %v634 = vunpack.c.l.b16 %v288
      %v635 = vunpack.c.l.b16 %v289
      %v636 = vunpack.c.l.b16 %v290
      %v637 = vunpack.c.l.b16 %v291
      %v638 = vunpack.c.l.b16 %v292
      %v639 = vunpack.c.l.b16 %v293
      %v640 = vunpack.c.l.b16 %v294
      %v641 = vunpack.c.l.b16 %v295
      %v642 = vunpack.c.l.b16 %v296
      %v643 = vunpack.c.l.b16 %v297
      %v644 = vpack.c.b16 %v629, %v628
      %v645 = vpack.c.b16 %v631, %v630
      %v646 = vpack.c.b16 %v633, %v632
      %v647 = vpack.c.b16 %v635, %v634
      %v648 = vpack.c.b16 %v637, %v636
      %v649 = vpack.c.b16 %v639, %v638
      %v650 = vpack.c.b16 %v641, %v640
      %v651 = vpack.c.b16 %v643, %v642
      %660 = vmatpush.bf16.msra.mxu0 %v651
      %661 = vmatpush.bf16.msra.mxu0 %v650
      %662 = vmatpush.bf16.msra.mxu0 %v649
      %663 = vmatpush.bf16.msra.mxu0 %v648
      %664 = vmatpush.bf16.msra.mxu0 %v647
      %665 = vmatpush.bf16.msra.mxu0 %v646
      %666 = vmatpush.bf16.msra.mxu0 %v645
      %667 = vmatpush.bf16.msra.mxu0 %v644
      %668 = vmatmul.bf16.gmra.mxu0 %v604
      %v669 = vpop.f32.mrf.mxu0
      %v670 = vadd.f32 0.0, %v669
      %v671 = vpop.f32.mrf.mxu0
      %v672 = vadd.f32 0.0, %v671
      %673 = vmatmul.bf16.gmra.mxu0 %v605
      %v674 = vpop.f32.mrf.mxu0
      %v675 = vadd.f32 0.0, %v674
      %v676 = vpop.f32.mrf.mxu0
      %v677 = vadd.f32 0.0, %v676
      %678 = vmatmul.bf16.gmra.mxu0 %v606
      %v679 = vpop.f32.mrf.mxu0
      %v680 = vadd.f32 0.0, %v679
      %v681 = vpop.f32.mrf.mxu0
      %v682 = vadd.f32 0.0, %v681
      %683 = vmatmul.bf16.gmra.mxu0 %v607
      %v684 = vpop.f32.mrf.mxu0
      %v685 = vadd.f32 0.0, %v684
      %v686 = vpop.f32.mrf.mxu0
      %v687 = vadd.f32 0.0, %v686
      %688 = vmatmul.bf16.gmra.mxu0 %v608
      %v689 = vpop.f32.mrf.mxu0
      %v690 = vadd.f32 0.0, %v689
      %v691 = vpop.f32.mrf.mxu0
      %v692 = vadd.f32 0.0, %v691
      %693 = vmatmul.bf16.gmra.mxu0 %v609
      %v694 = vpop.f32.mrf.mxu0
      %v695 = vadd.f32 0.0, %v694
      %v696 = vpop.f32.mrf.mxu0
      %v697 = vadd.f32 0.0, %v696
      %698 = vmatmul.bf16.gmra.mxu0 %v610
      %v699 = vpop.f32.mrf.mxu0
      %v700 = vadd.f32 0.0, %v699
      %v701 = vpop.f32.mrf.mxu0
      %v702 = vadd.f32 0.0, %v701
      %703 = vmatmul.bf16.gmra.mxu0 %v611
      %v704 = vpop.f32.mrf.mxu0
      %v705 = vadd.f32 0.0, %v704
      %v706 = vpop.f32.mrf.mxu0
      %v707 = vadd.f32 0.0, %v706
      %708 = vdwg.mxu0
      %v709 = vrcp.pop %v573
      %v710 = vmul.f32 %v573, %v709
      %v711 = vsub.f32 1.0, %v710
      %v712 = vmul.f32 %v709, %v711
      %v713 = vadd.f32 %v709, %v712
      %vm714 = vweird.f32 %v573
      %vm715 = vweird.f32 %v709
      %vm716 = vmor %vm714, %vm715
      %v717 = vsel %vm716, %v709, %v713
      %v718 = vand.u32 2147483647, %v573
      %vm719 = vcmp.eq.f32.partialorder %v718, 8.507059e+37
      %v720 = vand.u32 %v573, 2147483648
      %v721 = vor.u32 1.1754944e-38, %v720
      %v722 = vsel %vm719, %v721, %v717
      %v723 = vmul.f32 %v670, %v722
      %v724 = vrcp.pop %v575
      %v725 = vmul.f32 %v575, %v724
      %v726 = vsub.f32 1.0, %v725
      %v727 = vmul.f32 %v724, %v726
      %v728 = vadd.f32 %v724, %v727
      %vm729 = vweird.f32 %v575
      %vm730 = vweird.f32 %v724
      %vm731 = vmor %vm729, %vm730
      %v732 = vsel %vm731, %v724, %v728
      %v733 = vand.u32 2147483647, %v575
      %vm734 = vcmp.eq.f32.partialorder %v733, 8.507059e+37
      %v735 = vand.u32 %v575, 2147483648
      %v736 = vor.u32 1.1754944e-38, %v735
      %v737 = vsel %vm734, %v736, %v732
      %v738 = vmul.f32 %v672, %v737
      %v739 = vrcp.pop %v577
      %v740 = vmul.f32 %v577, %v739
      %v741 = vsub.f32 1.0, %v740
      %v742 = vmul.f32 %v739, %v741
      %v743 = vadd.f32 %v739, %v742
      %vm744 = vweird.f32 %v577
      %vm745 = vweird.f32 %v739
      %vm746 = vmor %vm744, %vm745
      %v747 = vsel %vm746, %v739, %v743
      %v748 = vand.u32 2147483647, %v577
      %vm749 = vcmp.eq.f32.partialorder %v748, 8.507059e+37
      %v750 = vand.u32 %v577, 2147483648
      %v751 = vor.u32 1.1754944e-38, %v750
      %v752 = vsel %vm749, %v751, %v747
      %v753 = vmul.f32 %v675, %v752
      %v754 = vrcp.pop %v579
      %v755 = vmul.f32 %v579, %v754
      %v756 = vsub.f32 1.0, %v755
      %v757 = vmul.f32 %v754, %v756
      %v758 = vadd.f32 %v754, %v757
      %vm759 = vweird.f32 %v579
      %vm760 = vweird.f32 %v754
      %vm761 = vmor %vm759, %vm760
      %v762 = vsel %vm761, %v754, %v758
      %v763 = vand.u32 2147483647, %v579
      %vm764 = vcmp.eq.f32.partialorder %v763, 8.507059e+37
      %v765 = vand.u32 %v579, 2147483648
      %v766 = vor.u32 1.1754944e-38, %v765
      %v767 = vsel %vm764, %v766, %v762
      %v768 = vmul.f32 %v677, %v767
      %v769 = vrcp.pop %v581
      %v770 = vmul.f32 %v581, %v769
      %v771 = vsub.f32 1.0, %v770
      %v772 = vmul.f32 %v769, %v771
      %v773 = vadd.f32 %v769, %v772
      %vm774 = vweird.f32 %v581
      %vm775 = vweird.f32 %v769
      %vm776 = vmor %vm774, %vm775
      %v777 = vsel %vm776, %v769, %v773
      %v778 = vand.u32 2147483647, %v581
      %vm779 = vcmp.eq.f32.partialorder %v778, 8.507059e+37
      %v780 = vand.u32 %v581, 2147483648
      %v781 = vor.u32 1.1754944e-38, %v780
      %v782 = vsel %vm779, %v781, %v777
      %v783 = vmul.f32 %v680, %v782
      %v784 = vrcp.pop %v583
      %v785 = vmul.f32 %v583, %v784
      %v786 = vsub.f32 1.0, %v785
      %v787 = vmul.f32 %v784, %v786
      %v788 = vadd.f32 %v784, %v787
      %vm789 = vweird.f32 %v583
      %vm790 = vweird.f32 %v784
      %vm791 = vmor %vm789, %vm790
      %v792 = vsel %vm791, %v784, %v788
      %v793 = vand.u32 2147483647, %v583
      %vm794 = vcmp.eq.f32.partialorder %v793, 8.507059e+37
      %v795 = vand.u32 %v583, 2147483648
      %v796 = vor.u32 1.1754944e-38, %v795
      %v797 = vsel %vm794, %v796, %v792
      %v798 = vmul.f32 %v682, %v797
      %v799 = vrcp.pop %v585
      %v800 = vmul.f32 %v585, %v799
      %v801 = vsub.f32 1.0, %v800
      %v802 = vmul.f32 %v799, %v801
      %v803 = vadd.f32 %v799, %v802
      %vm804 = vweird.f32 %v585
      %vm805 = vweird.f32 %v799
      %vm806 = vmor %vm804, %vm805
      %v807 = vsel %vm806, %v799, %v803
      %v808 = vand.u32 2147483647, %v585
      %vm809 = vcmp.eq.f32.partialorder %v808, 8.507059e+37
      %v810 = vand.u32 %v585, 2147483648
      %v811 = vor.u32 1.1754944e-38, %v810
      %v812 = vsel %vm809, %v811, %v807
      %v813 = vmul.f32 %v685, %v812
      %v814 = vrcp.pop %v587
      %v815 = vmul.f32 %v587, %v814
      %v816 = vsub.f32 1.0, %v815
      %v817 = vmul.f32 %v814, %v816
      %v818 = vadd.f32 %v814, %v817
      %vm819 = vweird.f32 %v587
      %vm820 = vweird.f32 %v814
      %vm821 = vmor %vm819, %vm820
      %v822 = vsel %vm821, %v814, %v818
      %v823 = vand.u32 2147483647, %v587
      %vm824 = vcmp.eq.f32.partialorder %v823, 8.507059e+37
      %v825 = vand.u32 %v587, 2147483648
      %v826 = vor.u32 1.1754944e-38, %v825
      %v827 = vsel %vm824, %v826, %v822
      %v828 = vmul.f32 %v687, %v827
      %v829 = vrcp.pop %v589
      %v830 = vmul.f32 %v589, %v829
      %v831 = vsub.f32 1.0, %v830
      %v832 = vmul.f32 %v829, %v831
      %v833 = vadd.f32 %v829, %v832
      %vm834 = vweird.f32 %v589
      %vm835 = vweird.f32 %v829
      %vm836 = vmor %vm834, %vm835
      %v837 = vsel %vm836, %v829, %v833
      %v838 = vand.u32 2147483647, %v589
      %vm839 = vcmp.eq.f32.partialorder %v838, 8.507059e+37
      %v840 = vand.u32 %v589, 2147483648
      %v841 = vor.u32 1.1754944e-38, %v840
      %v842 = vsel %vm839, %v841, %v837
      %v843 = vmul.f32 %v690, %v842
      %v844 = vrcp.pop %v591
      %v845 = vmul.f32 %v591, %v844
      %v846 = vsub.f32 1.0, %v845
      %v847 = vmul.f32 %v844, %v846
      %v848 = vadd.f32 %v844, %v847
      %vm849 = vweird.f32 %v591
      %vm850 = vweird.f32 %v844
      %vm851 = vmor %vm849, %vm850
      %v852 = vsel %vm851, %v844, %v848
      %v853 = vand.u32 2147483647, %v591
      %vm854 = vcmp.eq.f32.partialorder %v853, 8.507059e+37
      %v855 = vand.u32 %v591, 2147483648
      %v856 = vor.u32 1.1754944e-38, %v855
      %v857 = vsel %vm854, %v856, %v852
      %v858 = vmul.f32 %v692, %v857
      %v859 = vrcp.pop %v593
      %v860 = vmul.f32 %v593, %v859
      %v861 = vsub.f32 1.0, %v860
      %v862 = vmul.f32 %v859, %v861
      %v863 = vadd.f32 %v859, %v862
      %vm864 = vweird.f32 %v593
      %vm865 = vweird.f32 %v859
      %vm866 = vmor %vm864, %vm865
      %v867 = vsel %vm866, %v859, %v863
      %v868 = vand.u32 2147483647, %v593
      %vm869 = vcmp.eq.f32.partialorder %v868, 8.507059e+37
      %v870 = vand.u32 %v593, 2147483648
      %v871 = vor.u32 1.1754944e-38, %v870
      %v872 = vsel %vm869, %v871, %v867
      %v873 = vmul.f32 %v695, %v872
      %v874 = vrcp.pop %v595
      %v875 = vmul.f32 %v595, %v874
      %v876 = vsub.f32 1.0, %v875
      %v877 = vmul.f32 %v874, %v876
      %v878 = vadd.f32 %v874, %v877
      %vm879 = vweird.f32 %v595
      %vm880 = vweird.f32 %v874
      %vm881 = vmor %vm879, %vm880
      %v882 = vsel %vm881, %v874, %v878
      %v883 = vand.u32 2147483647, %v595
      %vm884 = vcmp.eq.f32.partialorder %v883, 8.507059e+37
      %v885 = vand.u32 %v595, 2147483648
      %v886 = vor.u32 1.1754944e-38, %v885
      %v887 = vsel %vm884, %v886, %v882
      %v888 = vmul.f32 %v697, %v887
      %v889 = vrcp.pop %v597
      %v890 = vmul.f32 %v597, %v889
      %v891 = vsub.f32 1.0, %v890
      %v892 = vmul.f32 %v889, %v891
      %v893 = vadd.f32 %v889, %v892
      %vm894 = vweird.f32 %v597
      %vm895 = vweird.f32 %v889
      %vm896 = vmor %vm894, %vm895
      %v897 = vsel %vm896, %v889, %v893
      %v898 = vand.u32 2147483647, %v597
      %vm899 = vcmp.eq.f32.partialorder %v898, 8.507059e+37
      %v900 = vand.u32 %v597, 2147483648
      %v901 = vor.u32 1.1754944e-38, %v900
      %v902 = vsel %vm899, %v901, %v897
      %v903 = vmul.f32 %v700, %v902
      %v904 = vrcp.pop %v599
      %v905 = vmul.f32 %v599, %v904
      %v906 = vsub.f32 1.0, %v905
      %v907 = vmul.f32 %v904, %v906
      %v908 = vadd.f32 %v904, %v907
      %vm909 = vweird.f32 %v599
      %vm910 = vweird.f32 %v904
      %vm911 = vmor %vm909, %vm910
      %v912 = vsel %vm911, %v904, %v908
      %v913 = vand.u32 2147483647, %v599
      %vm914 = vcmp.eq.f32.partialorder %v913, 8.507059e+37
      %v915 = vand.u32 %v599, 2147483648
      %v916 = vor.u32 1.1754944e-38, %v915
      %v917 = vsel %vm914, %v916, %v912
      %v918 = vmul.f32 %v702, %v917
      %v919 = vrcp.pop %v601
      %v920 = vmul.f32 %v601, %v919
      %v921 = vsub.f32 1.0, %v920
      %v922 = vmul.f32 %v919, %v921
      %v923 = vadd.f32 %v919, %v922
      %vm924 = vweird.f32 %v601
      %vm925 = vweird.f32 %v919
      %vm926 = vmor %vm924, %vm925
      %v927 = vsel %vm926, %v919, %v923
      %v928 = vand.u32 2147483647, %v601
      %vm929 = vcmp.eq.f32.partialorder %v928, 8.507059e+37
      %v930 = vand.u32 %v601, 2147483648
      %v931 = vor.u32 1.1754944e-38, %v930
      %v932 = vsel %vm929, %v931, %v927
      %v933 = vmul.f32 %v705, %v932
      %v934 = vrcp.pop %v603
      %v935 = vmul.f32 %v603, %v934
      %v936 = vsub.f32 1.0, %v935
      %v937 = vmul.f32 %v934, %v936
      %v938 = vadd.f32 %v934, %v937
      %vm939 = vweird.f32 %v603
      %vm940 = vweird.f32 %v934
      %vm941 = vmor %vm939, %vm940
      %v942 = vsel %vm941, %v934, %v938
      %v943 = vand.u32 2147483647, %v603
      %vm944 = vcmp.eq.f32.partialorder %v943, 8.507059e+37
      %v945 = vand.u32 %v603, 2147483648
      %v946 = vor.u32 1.1754944e-38, %v945
      %v947 = vsel %vm944, %v946, %v942
      %v948 = vmul.f32 %v707, %v947
      %949 = vrot.lane.b32.xlu0 %v330, 112
      %v950 = vpop.permute.xlu0 %949
      %951 = vrot.lane.b32.xlu0 %v331, 112
      %v952 = vpop.permute.xlu0 %951
      %953 = vrot.lane.b32.xlu0 %v332, 112
      %v954 = vpop.permute.xlu0 %953
      %955 = vrot.lane.b32.xlu0 %v333, 112
      %v956 = vpop.permute.xlu0 %955
      %957 = vrot.lane.b32.xlu0 %v334, 112
      %v958 = vpop.permute.xlu0 %957
      %959 = vrot.lane.b32.xlu0 %v335, 112
      %v960 = vpop.permute.xlu0 %959
      %961 = vrot.lane.b32.xlu0 %v336, 112
      %v962 = vpop.permute.xlu0 %961
      %963 = vrot.lane.b32.xlu0 %v337, 112
      %v964 = vpop.permute.xlu0 %963
      %965 = vrot.lane.b32.xlu0 %v370, 112
      %v966 = vpop.permute.xlu0 %965
      %967 = vrot.lane.b32.xlu0 %v371, 112
      %v968 = vpop.permute.xlu0 %967
      %969 = vrot.lane.b32.xlu0 %v372, 112
      %v970 = vpop.permute.xlu0 %969
      %971 = vrot.lane.b32.xlu0 %v373, 112
      %v972 = vpop.permute.xlu0 %971
      %973 = vrot.lane.b32.xlu0 %v374, 112
      %v974 = vpop.permute.xlu0 %973
      %975 = vrot.lane.b32.xlu0 %v375, 112
      %v976 = vpop.permute.xlu0 %975
      %977 = vrot.lane.b32.xlu0 %v376, 112
      %v978 = vpop.permute.xlu0 %977
      %979 = vrot.lane.b32.xlu0 %v377, 112
      %v980 = vpop.permute.xlu0 %979
      %v982 = vsel %vm378, %v950, 0
      %v985 = vsel %vm378, %v952, 0
      %v988 = vsel %vm378, %v954, 0
      %v991 = vsel %vm378, %v956, 0
      %v994 = vsel %vm378, %v958, 0
      %v997 = vsel %vm378, %v960, 0
      %v1000 = vsel %vm378, %v962, 0
      %v1003 = vsel %vm378, %v964, 0
      %v1006 = vsel %vm378, %v966, 0
      %v1009 = vsel %vm378, %v968, 0
      %v1012 = vsel %vm378, %v970, 0
      %v1015 = vsel %vm378, %v972, 0
      %v1018 = vsel %vm378, %v974, 0
      %v1021 = vsel %vm378, %v976, 0
      %v1024 = vsel %vm378, %v978, 0
      %v1027 = vsel %vm378, %v980, 0
      %1029 = vmatpush.bf16.xpose.msra.mxu0 %v1027
      %1030 = vmatpush.bf16.xpose.msra.mxu0 %v1024
      %1031 = vmatpush.bf16.xpose.msra.mxu0 %v1021
      %1032 = vmatpush.bf16.xpose.msra.mxu0 %v1018
      %1033 = vmatpush.bf16.xpose.msra.mxu0 %v1015
      %1034 = vmatpush.bf16.xpose.msra.mxu0 %v1012
      %1035 = vmatpush.bf16.xpose.msra.mxu0 %v1009
      %1036 = vmatpush.bf16.xpose.msra.mxu0 %v1006
      %1037 = vmatmul.bf16.gmra.mxu0 %v982
      %v1038 = vpop.f32.mrf.mxu0
      %v1039 = vadd.f32 0.0, %v1038
      %v1040 = vpop.f32.mrf.mxu0
      %v1041 = vadd.f32 0.0, %v1040
      %1042 = vmatmul.bf16.gmra.mxu0 %v985
      %v1043 = vpop.f32.mrf.mxu0
      %v1044 = vadd.f32 0.0, %v1043
      %v1045 = vpop.f32.mrf.mxu0
      %v1046 = vadd.f32 0.0, %v1045
      %1047 = vmatmul.bf16.gmra.mxu0 %v988
      %v1048 = vpop.f32.mrf.mxu0
      %v1049 = vadd.f32 0.0, %v1048
      %v1050 = vpop.f32.mrf.mxu0
      %v1051 = vadd.f32 0.0, %v1050
      %1052 = vmatmul.bf16.gmra.mxu0 %v991
      %v1053 = vpop.f32.mrf.mxu0
      %v1054 = vadd.f32 0.0, %v1053
      %v1055 = vpop.f32.mrf.mxu0
      %v1056 = vadd.f32 0.0, %v1055
      %1057 = vmatmul.bf16.gmra.mxu0 %v994
      %v1058 = vpop.f32.mrf.mxu0
      %v1059 = vadd.f32 0.0, %v1058
      %v1060 = vpop.f32.mrf.mxu0
      %v1061 = vadd.f32 0.0, %v1060
      %1062 = vmatmul.bf16.gmra.mxu0 %v997
      %v1063 = vpop.f32.mrf.mxu0
      %v1064 = vadd.f32 0.0, %v1063
      %v1065 = vpop.f32.mrf.mxu0
      %v1066 = vadd.f32 0.0, %v1065
      %1067 = vmatmul.bf16.gmra.mxu0 %v1000
      %v1068 = vpop.f32.mrf.mxu0
      %v1069 = vadd.f32 0.0, %v1068
      %v1070 = vpop.f32.mrf.mxu0
      %v1071 = vadd.f32 0.0, %v1070
      %1072 = vmatmul.bf16.gmra.mxu0 %v1003
      %v1073 = vpop.f32.mrf.mxu0
      %v1074 = vadd.f32 0.0, %v1073
      %v1075 = vpop.f32.mrf.mxu0
      %v1076 = vadd.f32 0.0, %v1075
      %1077 = vdwg.mxu0
      %v1078 = vmul.f32 %v1039, 0.25
      %v1079 = vmul.f32 %v1041, 0.25
      %v1080 = vmul.f32 %v1044, 0.25
      %v1081 = vmul.f32 %v1046, 0.25
      %v1082 = vmul.f32 %v1049, 0.25
      %v1083 = vmul.f32 %v1051, 0.25
      %v1084 = vmul.f32 %v1054, 0.25
      %v1085 = vmul.f32 %v1056, 0.25
      %v1086 = vmul.f32 %v1059, 0.25
      %v1087 = vmul.f32 %v1061, 0.25
      %v1088 = vmul.f32 %v1064, 0.25
      %v1089 = vmul.f32 %v1066, 0.25
      %v1090 = vmul.f32 %v1069, 0.25
      %v1091 = vmul.f32 %v1071, 0.25
      %v1092 = vmul.f32 %v1074, 0.25
      %v1093 = vmul.f32 %v1076, 0.25
      %1094 = vmax.xlane.f32.xlu0 %v1078
      %v1095 = vpop.xlane.xlu0 %1094
      %1096 = vmax.xlane.f32.xlu0 %v1079
      %v1097 = vpop.xlane.xlu0 %1096
      %1098 = vmax.xlane.f32.xlu0 %v1080
      %v1099 = vpop.xlane.xlu0 %1098
      %1100 = vmax.xlane.f32.xlu0 %v1081
      %v1101 = vpop.xlane.xlu0 %1100
      %1102 = vmax.xlane.f32.xlu0 %v1082
      %v1103 = vpop.xlane.xlu0 %1102
      %1104 = vmax.xlane.f32.xlu0 %v1083
      %v1105 = vpop.xlane.xlu0 %1104
      %1106 = vmax.xlane.f32.xlu0 %v1084
      %v1107 = vpop.xlane.xlu0 %1106
      %1108 = vmax.xlane.f32.xlu0 %v1085
      %v1109 = vpop.xlane.xlu0 %1108
      %1110 = vmax.xlane.f32.xlu0 %v1086
      %v1111 = vpop.xlane.xlu0 %1110
      %1112 = vmax.xlane.f32.xlu0 %v1087
      %v1113 = vpop.xlane.xlu0 %1112
      %1114 = vmax.xlane.f32.xlu0 %v1088
      %v1115 = vpop.xlane.xlu0 %1114
      %1116 = vmax.xlane.f32.xlu0 %v1089
      %v1117 = vpop.xlane.xlu0 %1116
      %1118 = vmax.xlane.f32.xlu0 %v1090
      %v1119 = vpop.xlane.xlu0 %1118
      %1120 = vmax.xlane.f32.xlu0 %v1091
      %v1121 = vpop.xlane.xlu0 %1120
      %1122 = vmax.xlane.f32.xlu0 %v1092
      %v1123 = vpop.xlane.xlu0 %1122
      %1124 = vmax.xlane.f32.xlu0 %v1093
      %v1125 = vpop.xlane.xlu0 %1124
      %v1126 = vsub.f32 %v1078, %v1095
      %v1127 = vsub.f32 %v1079, %v1097
      %v1128 = vsub.f32 %v1080, %v1099
      %v1129 = vsub.f32 %v1081, %v1101
      %v1130 = vsub.f32 %v1082, %v1103
      %v1131 = vsub.f32 %v1083, %v1105
      %v1132 = vsub.f32 %v1084, %v1107
      %v1133 = vsub.f32 %v1085, %v1109
      %v1134 = vsub.f32 %v1086, %v1111
      %v1135 = vsub.f32 %v1087, %v1113
      %v1136 = vsub.f32 %v1088, %v1115
      %v1137 = vsub.f32 %v1089, %v1117
      %v1138 = vsub.f32 %v1090, %v1119
      %v1139 = vsub.f32 %v1091, %v1121
      %v1140 = vsub.f32 %v1092, %v1123
      %v1141 = vsub.f32 %v1093, %v1125
      %v1142 = vmul.f32 %v1126, 1.442695
      %v1143 = vpow.pop %v1142
      %v1144 = vmul.f32 %v1127, 1.442695
      %v1145 = vpow.pop %v1144
      %v1146 = vmul.f32 %v1128, 1.442695
      %v1147 = vpow.pop %v1146
      %v1148 = vmul.f32 %v1129, 1.442695
      %v1149 = vpow.pop %v1148
      %v1150 = vmul.f32 %v1130, 1.442695
      %v1151 = vpow.pop %v1150
      %v1152 = vmul.f32 %v1131, 1.442695
      %v1153 = vpow.pop %v1152
      %v1154 = vmul.f32 %v1132, 1.442695
      %v1155 = vpow.pop %v1154
      %v1156 = vmul.f32 %v1133, 1.442695
      %v1157 = vpow.pop %v1156
      %v1158 = vmul.f32 %v1134, 1.442695
      %v1159 = vpow.pop %v1158
      %v1160 = vmul.f32 %v1135, 1.442695
      %v1161 = vpow.pop %v1160
      %v1162 = vmul.f32 %v1136, 1.442695
      %v1163 = vpow.pop %v1162
      %v1164 = vmul.f32 %v1137, 1.442695
      %v1165 = vpow.pop %v1164
      %v1166 = vmul.f32 %v1138, 1.442695
      %v1167 = vpow.pop %v1166
      %v1168 = vmul.f32 %v1139, 1.442695
      %v1169 = vpow.pop %v1168
      %v1170 = vmul.f32 %v1140, 1.442695
      %v1171 = vpow.pop %v1170
      %v1172 = vmul.f32 %v1141, 1.442695
      %v1173 = vpow.pop %v1172
      %1174 = vadd.xlane.f32.xlu0 %v1143
      %v1175 = vpop.xlane.xlu0 %1174
      %1176 = vadd.xlane.f32.xlu0 %v1145
      %v1177 = vpop.xlane.xlu0 %1176
      %1178 = vadd.xlane.f32.xlu0 %v1147
      %v1179 = vpop.xlane.xlu0 %1178
      %1180 = vadd.xlane.f32.xlu0 %v1149
      %v1181 = vpop.xlane.xlu0 %1180
      %1182 = vadd.xlane.f32.xlu0 %v1151
      %v1183 = vpop.xlane.xlu0 %1182
      %1184 = vadd.xlane.f32.xlu0 %v1153
      %v1185 = vpop.xlane.xlu0 %1184
      %1186 = vadd.xlane.f32.xlu0 %v1155
      %v1187 = vpop.xlane.xlu0 %1186
      %1188 = vadd.xlane.f32.xlu0 %v1157
      %v1189 = vpop.xlane.xlu0 %1188
      %1190 = vadd.xlane.f32.xlu0 %v1159
      %v1191 = vpop.xlane.xlu0 %1190
      %1192 = vadd.xlane.f32.xlu0 %v1161
      %v1193 = vpop.xlane.xlu0 %1192
      %1194 = vadd.xlane.f32.xlu0 %v1163
      %v1195 = vpop.xlane.xlu0 %1194
      %1196 = vadd.xlane.f32.xlu0 %v1165
      %v1197 = vpop.xlane.xlu0 %1196
      %1198 = vadd.xlane.f32.xlu0 %v1167
      %v1199 = vpop.xlane.xlu0 %1198
      %1200 = vadd.xlane.f32.xlu0 %v1169
      %v1201 = vpop.xlane.xlu0 %1200
      %1202 = vadd.xlane.f32.xlu0 %v1171
      %v1203 = vpop.xlane.xlu0 %1202
      %1204 = vadd.xlane.f32.xlu0 %v1173
      %v1205 = vpop.xlane.xlu0 %1204
      %v1206 = vpack.c.bf16 %v1145, %v1143
      %v1207 = vpack.c.bf16 %v1149, %v1147
      %v1208 = vpack.c.bf16 %v1153, %v1151
      %v1209 = vpack.c.bf16 %v1157, %v1155
      %v1210 = vpack.c.bf16 %v1161, %v1159
      %v1211 = vpack.c.bf16 %v1165, %v1163
      %v1212 = vpack.c.bf16 %v1169, %v1167
      %v1213 = vpack.c.bf16 %v1173, %v1171
      %1214 = vrot.lane.b32.xlu0 %v644, 112
      %v1215 = vpop.permute.xlu0 %1214
      %1216 = vrot.lane.b32.xlu0 %v645, 112
      %v1217 = vpop.permute.xlu0 %1216
      %1218 = vrot.lane.b32.xlu0 %v646, 112
      %v1219 = vpop.permute.xlu0 %1218
      %1220 = vrot.lane.b32.xlu0 %v647, 112
      %v1221 = vpop.permute.xlu0 %1220
      %1222 = vrot.lane.b32.xlu0 %v648, 112
      %v1223 = vpop.permute.xlu0 %1222
      %1224 = vrot.lane.b32.xlu0 %v649, 112
      %v1225 = vpop.permute.xlu0 %1224
      %1226 = vrot.lane.b32.xlu0 %v650, 112
      %v1227 = vpop.permute.xlu0 %1226
      %1228 = vrot.lane.b32.xlu0 %v651, 112
      %v1229 = vpop.permute.xlu0 %1228
      %1238 = vmatpush.bf16.msra.mxu0 %v1229
      %1239 = vmatpush.bf16.msra.mxu0 %v1227
      %1240 = vmatpush.bf16.msra.mxu0 %v1225
      %1241 = vmatpush.bf16.msra.mxu0 %v1223
      %1242 = vmatpush.bf16.msra.mxu0 %v1221
      %1243 = vmatpush.bf16.msra.mxu0 %v1219
      %1244 = vmatpush.bf16.msra.mxu0 %v1217
      %1245 = vmatpush.bf16.msra.mxu0 %v1215
      %1246 = vmatmul.bf16.gmra.mxu0 %v1206
      %v1247 = vpop.f32.mrf.mxu0
      %v1248 = vadd.f32 0.0, %v1247
      %v1249 = vpop.f32.mrf.mxu0
      %v1250 = vadd.f32 0.0, %v1249
      %1251 = vmatmul.bf16.gmra.mxu0 %v1207
      %v1252 = vpop.f32.mrf.mxu0
      %v1253 = vadd.f32 0.0, %v1252
      %v1254 = vpop.f32.mrf.mxu0
      %v1255 = vadd.f32 0.0, %v1254
      %1256 = vmatmul.bf16.gmra.mxu0 %v1208
      %v1257 = vpop.f32.mrf.mxu0
      %v1258 = vadd.f32 0.0, %v1257
      %v1259 = vpop.f32.mrf.mxu0
      %v1260 = vadd.f32 0.0, %v1259
      %1261 = vmatmul.bf16.gmra.mxu0 %v1209
      %v1262 = vpop.f32.mrf.mxu0
      %v1263 = vadd.f32 0.0, %v1262
      %v1264 = vpop.f32.mrf.mxu0
      %v1265 = vadd.f32 0.0, %v1264
      %1266 = vmatmul.bf16.gmra.mxu0 %v1210
      %v1267 = vpop.f32.mrf.mxu0
      %v1268 = vadd.f32 0.0, %v1267
      %v1269 = vpop.f32.mrf.mxu0
      %v1270 = vadd.f32 0.0, %v1269
      %1271 = vmatmul.bf16.gmra.mxu0 %v1211
      %v1272 = vpop.f32.mrf.mxu0
      %v1273 = vadd.f32 0.0, %v1272
      %v1274 = vpop.f32.mrf.mxu0
      %v1275 = vadd.f32 0.0, %v1274
      %1276 = vmatmul.bf16.gmra.mxu0 %v1212
      %v1277 = vpop.f32.mrf.mxu0
      %v1278 = vadd.f32 0.0, %v1277
      %v1279 = vpop.f32.mrf.mxu0
      %v1280 = vadd.f32 0.0, %v1279
      %1281 = vmatmul.bf16.gmra.mxu0 %v1213
      %v1282 = vpop.f32.mrf.mxu0
      %v1283 = vadd.f32 0.0, %v1282
      %v1284 = vpop.f32.mrf.mxu0
      %v1285 = vadd.f32 0.0, %v1284
      %1286 = vdwg.mxu0
      %v1287 = vrcp.pop %v1175
      %v1288 = vmul.f32 %v1175, %v1287
      %v1289 = vsub.f32 1.0, %v1288
      %v1290 = vmul.f32 %v1287, %v1289
      %v1291 = vadd.f32 %v1287, %v1290
      %vm1292 = vweird.f32 %v1175
      %vm1293 = vweird.f32 %v1287
      %vm1294 = vmor %vm1292, %vm1293
      %v1295 = vsel %vm1294, %v1287, %v1291
      %v1296 = vand.u32 2147483647, %v1175
      %vm1297 = vcmp.eq.f32.partialorder %v1296, 8.507059e+37
      %v1298 = vand.u32 %v1175, 2147483648
      %v1299 = vor.u32 1.1754944e-38, %v1298
      %v1300 = vsel %vm1297, %v1299, %v1295
      %v1301 = vmul.f32 %v1248, %v1300
      %v1302 = vrcp.pop %v1177
      %v1303 = vmul.f32 %v1177, %v1302
      %v1304 = vsub.f32 1.0, %v1303
      %v1305 = vmul.f32 %v1302, %v1304
      %v1306 = vadd.f32 %v1302, %v1305
      %vm1307 = vweird.f32 %v1177
      %vm1308 = vweird.f32 %v1302
      %vm1309 = vmor %vm1307, %vm1308
      %v1310 = vsel %vm1309, %v1302, %v1306
      %v1311 = vand.u32 2147483647, %v1177
      %vm1312 = vcmp.eq.f32.partialorder %v1311, 8.507059e+37
      %v1313 = vand.u32 %v1177, 2147483648
      %v1314 = vor.u32 1.1754944e-38, %v1313
      %v1315 = vsel %vm1312, %v1314, %v1310
      %v1316 = vmul.f32 %v1250, %v1315
      %v1317 = vrcp.pop %v1179
      %v1318 = vmul.f32 %v1179, %v1317
      %v1319 = vsub.f32 1.0, %v1318
      %v1320 = vmul.f32 %v1317, %v1319
      %v1321 = vadd.f32 %v1317, %v1320
      %vm1322 = vweird.f32 %v1179
      %vm1323 = vweird.f32 %v1317
      %vm1324 = vmor %vm1322, %vm1323
      %v1325 = vsel %vm1324, %v1317, %v1321
      %v1326 = vand.u32 2147483647, %v1179
      %vm1327 = vcmp.eq.f32.partialorder %v1326, 8.507059e+37
      %v1328 = vand.u32 %v1179, 2147483648
      %v1329 = vor.u32 1.1754944e-38, %v1328
      %v1330 = vsel %vm1327, %v1329, %v1325
      %v1331 = vmul.f32 %v1253, %v1330
      %v1332 = vrcp.pop %v1181
      %v1333 = vmul.f32 %v1181, %v1332
      %v1334 = vsub.f32 1.0, %v1333
      %v1335 = vmul.f32 %v1332, %v1334
      %v1336 = vadd.f32 %v1332, %v1335
      %vm1337 = vweird.f32 %v1181
      %vm1338 = vweird.f32 %v1332
      %vm1339 = vmor %vm1337, %vm1338
      %v1340 = vsel %vm1339, %v1332, %v1336
      %v1341 = vand.u32 2147483647, %v1181
      %vm1342 = vcmp.eq.f32.partialorder %v1341, 8.507059e+37
      %v1343 = vand.u32 %v1181, 2147483648
      %v1344 = vor.u32 1.1754944e-38, %v1343
      %v1345 = vsel %vm1342, %v1344, %v1340
      %v1346 = vmul.f32 %v1255, %v1345
      %v1347 = vrcp.pop %v1183
      %v1348 = vmul.f32 %v1183, %v1347
      %v1349 = vsub.f32 1.0, %v1348
      %v1350 = vmul.f32 %v1347, %v1349
      %v1351 = vadd.f32 %v1347, %v1350
      %vm1352 = vweird.f32 %v1183
      %vm1353 = vweird.f32 %v1347
      %vm1354 = vmor %vm1352, %vm1353
      %v1355 = vsel %vm1354, %v1347, %v1351
      %v1356 = vand.u32 2147483647, %v1183
      %vm1357 = vcmp.eq.f32.partialorder %v1356, 8.507059e+37
      %v1358 = vand.u32 %v1183, 2147483648
      %v1359 = vor.u32 1.1754944e-38, %v1358
      %v1360 = vsel %vm1357, %v1359, %v1355
      %v1361 = vmul.f32 %v1258, %v1360
      %v1362 = vrcp.pop %v1185
      %v1363 = vmul.f32 %v1185, %v1362
      %v1364 = vsub.f32 1.0, %v1363
      %v1365 = vmul.f32 %v1362, %v1364
      %v1366 = vadd.f32 %v1362, %v1365
      %vm1367 = vweird.f32 %v1185
      %vm1368 = vweird.f32 %v1362
      %vm1369 = vmor %vm1367, %vm1368
      %v1370 = vsel %vm1369, %v1362, %v1366
      %v1371 = vand.u32 2147483647, %v1185
      %vm1372 = vcmp.eq.f32.partialorder %v1371, 8.507059e+37
      %v1373 = vand.u32 %v1185, 2147483648
      %v1374 = vor.u32 1.1754944e-38, %v1373
      %v1375 = vsel %vm1372, %v1374, %v1370
      %v1376 = vmul.f32 %v1260, %v1375
      %v1377 = vrcp.pop %v1187
      %v1378 = vmul.f32 %v1187, %v1377
      %v1379 = vsub.f32 1.0, %v1378
      %v1380 = vmul.f32 %v1377, %v1379
      %v1381 = vadd.f32 %v1377, %v1380
      %vm1382 = vweird.f32 %v1187
      %vm1383 = vweird.f32 %v1377
      %vm1384 = vmor %vm1382, %vm1383
      %v1385 = vsel %vm1384, %v1377, %v1381
      %v1386 = vand.u32 2147483647, %v1187
      %vm1387 = vcmp.eq.f32.partialorder %v1386, 8.507059e+37
      %v1388 = vand.u32 %v1187, 2147483648
      %v1389 = vor.u32 1.1754944e-38, %v1388
      %v1390 = vsel %vm1387, %v1389, %v1385
      %v1391 = vmul.f32 %v1263, %v1390
      %v1392 = vrcp.pop %v1189
      %v1393 = vmul.f32 %v1189, %v1392
      %v1394 = vsub.f32 1.0, %v1393
      %v1395 = vmul.f32 %v1392, %v1394
      %v1396 = vadd.f32 %v1392, %v1395
      %vm1397 = vweird.f32 %v1189
      %vm1398 = vweird.f32 %v1392
      %vm1399 = vmor %vm1397, %vm1398
      %v1400 = vsel %vm1399, %v1392, %v1396
      %v1401 = vand.u32 2147483647, %v1189
      %vm1402 = vcmp.eq.f32.partialorder %v1401, 8.507059e+37
      %v1403 = vand.u32 %v1189, 2147483648
      %v1404 = vor.u32 1.1754944e-38, %v1403
      %v1405 = vsel %vm1402, %v1404, %v1400
      %v1406 = vmul.f32 %v1265, %v1405
      %v1407 = vrcp.pop %v1191
      %v1408 = vmul.f32 %v1191, %v1407
      %v1409 = vsub.f32 1.0, %v1408
      %v1410 = vmul.f32 %v1407, %v1409
      %v1411 = vadd.f32 %v1407, %v1410
      %vm1412 = vweird.f32 %v1191
      %vm1413 = vweird.f32 %v1407
      %vm1414 = vmor %vm1412, %vm1413
      %v1415 = vsel %vm1414, %v1407, %v1411
      %v1416 = vand.u32 2147483647, %v1191
      %vm1417 = vcmp.eq.f32.partialorder %v1416, 8.507059e+37
      %v1418 = vand.u32 %v1191, 2147483648
      %v1419 = vor.u32 1.1754944e-38, %v1418
      %v1420 = vsel %vm1417, %v1419, %v1415
      %v1421 = vmul.f32 %v1268, %v1420
      %v1422 = vrcp.pop %v1193
      %v1423 = vmul.f32 %v1193, %v1422
      %v1424 = vsub.f32 1.0, %v1423
      %v1425 = vmul.f32 %v1422, %v1424
      %v1426 = vadd.f32 %v1422, %v1425
      %vm1427 = vweird.f32 %v1193
      %vm1428 = vweird.f32 %v1422
      %vm1429 = vmor %vm1427, %vm1428
      %v1430 = vsel %vm1429, %v1422, %v1426
      %v1431 = vand.u32 2147483647, %v1193
      %vm1432 = vcmp.eq.f32.partialorder %v1431, 8.507059e+37
      %v1433 = vand.u32 %v1193, 2147483648
      %v1434 = vor.u32 1.1754944e-38, %v1433
      %v1435 = vsel %vm1432, %v1434, %v1430
      %v1436 = vmul.f32 %v1270, %v1435
      %v1437 = vrcp.pop %v1195
      %v1438 = vmul.f32 %v1195, %v1437
      %v1439 = vsub.f32 1.0, %v1438
      %v1440 = vmul.f32 %v1437, %v1439
      %v1441 = vadd.f32 %v1437, %v1440
      %vm1442 = vweird.f32 %v1195
      %vm1443 = vweird.f32 %v1437
      %vm1444 = vmor %vm1442, %vm1443
      %v1445 = vsel %vm1444, %v1437, %v1441
      %v1446 = vand.u32 2147483647, %v1195
      %vm1447 = vcmp.eq.f32.partialorder %v1446, 8.507059e+37
      %v1448 = vand.u32 %v1195, 2147483648
      %v1449 = vor.u32 1.1754944e-38, %v1448
      %v1450 = vsel %vm1447, %v1449, %v1445
      %v1451 = vmul.f32 %v1273, %v1450
      %v1452 = vrcp.pop %v1197
      %v1453 = vmul.f32 %v1197, %v1452
      %v1454 = vsub.f32 1.0, %v1453
      %v1455 = vmul.f32 %v1452, %v1454
      %v1456 = vadd.f32 %v1452, %v1455
      %vm1457 = vweird.f32 %v1197
      %vm1458 = vweird.f32 %v1452
      %vm1459 = vmor %vm1457, %vm1458
      %v1460 = vsel %vm1459, %v1452, %v1456
      %v1461 = vand.u32 2147483647, %v1197
      %vm1462 = vcmp.eq.f32.partialorder %v1461, 8.507059e+37
      %v1463 = vand.u32 %v1197, 2147483648
      %v1464 = vor.u32 1.1754944e-38, %v1463
      %v1465 = vsel %vm1462, %v1464, %v1460
      %v1466 = vmul.f32 %v1275, %v1465
      %v1467 = vrcp.pop %v1199
      %v1468 = vmul.f32 %v1199, %v1467
      %v1469 = vsub.f32 1.0, %v1468
      %v1470 = vmul.f32 %v1467, %v1469
      %v1471 = vadd.f32 %v1467, %v1470
      %vm1472 = vweird.f32 %v1199
      %vm1473 = vweird.f32 %v1467
      %vm1474 = vmor %vm1472, %vm1473
      %v1475 = vsel %vm1474, %v1467, %v1471
      %v1476 = vand.u32 2147483647, %v1199
      %vm1477 = vcmp.eq.f32.partialorder %v1476, 8.507059e+37
      %v1478 = vand.u32 %v1199, 2147483648
      %v1479 = vor.u32 1.1754944e-38, %v1478
      %v1480 = vsel %vm1477, %v1479, %v1475
      %v1481 = vmul.f32 %v1278, %v1480
      %v1482 = vrcp.pop %v1201
      %v1483 = vmul.f32 %v1201, %v1482
      %v1484 = vsub.f32 1.0, %v1483
      %v1485 = vmul.f32 %v1482, %v1484
      %v1486 = vadd.f32 %v1482, %v1485
      %vm1487 = vweird.f32 %v1201
      %vm1488 = vweird.f32 %v1482
      %vm1489 = vmor %vm1487, %vm1488
      %v1490 = vsel %vm1489, %v1482, %v1486
      %v1491 = vand.u32 2147483647, %v1201
      %vm1492 = vcmp.eq.f32.partialorder %v1491, 8.507059e+37
      %v1493 = vand.u32 %v1201, 2147483648
      %v1494 = vor.u32 1.1754944e-38, %v1493
      %v1495 = vsel %vm1492, %v1494, %v1490
      %v1496 = vmul.f32 %v1280, %v1495
      %v1497 = vrcp.pop %v1203
      %v1498 = vmul.f32 %v1203, %v1497
      %v1499 = vsub.f32 1.0, %v1498
      %v1500 = vmul.f32 %v1497, %v1499
      %v1501 = vadd.f32 %v1497, %v1500
      %vm1502 = vweird.f32 %v1203
      %vm1503 = vweird.f32 %v1497
      %vm1504 = vmor %vm1502, %vm1503
      %v1505 = vsel %vm1504, %v1497, %v1501
      %v1506 = vand.u32 2147483647, %v1203
      %vm1507 = vcmp.eq.f32.partialorder %v1506, 8.507059e+37
      %v1508 = vand.u32 %v1203, 2147483648
      %v1509 = vor.u32 1.1754944e-38, %v1508
      %v1510 = vsel %vm1507, %v1509, %v1505
      %v1511 = vmul.f32 %v1283, %v1510
      %v1512 = vrcp.pop %v1205
      %v1513 = vmul.f32 %v1205, %v1512
      %v1514 = vsub.f32 1.0, %v1513
      %v1515 = vmul.f32 %v1512, %v1514
      %v1516 = vadd.f32 %v1512, %v1515
      %vm1517 = vweird.f32 %v1205
      %vm1518 = vweird.f32 %v1512
      %vm1519 = vmor %vm1517, %vm1518
      %v1520 = vsel %vm1519, %v1512, %v1516
      %v1521 = vand.u32 2147483647, %v1205
      %vm1522 = vcmp.eq.f32.partialorder %v1521, 8.507059e+37
      %v1523 = vand.u32 %v1205, 2147483648
      %v1524 = vor.u32 1.1754944e-38, %v1523
      %v1525 = vsel %vm1522, %v1524, %v1520
      %v1526 = vmul.f32 %v1285, %v1525
      %1527 = vrot.lane.b32.xlu0 %v330, 96
      %v1528 = vpop.permute.xlu0 %1527
      %1529 = vrot.lane.b32.xlu0 %v331, 96
      %v1530 = vpop.permute.xlu0 %1529
      %1531 = vrot.lane.b32.xlu0 %v332, 96
      %v1532 = vpop.permute.xlu0 %1531
      %1533 = vrot.lane.b32.xlu0 %v333, 96
      %v1534 = vpop.permute.xlu0 %1533
      %1535 = vrot.lane.b32.xlu0 %v334, 96
      %v1536 = vpop.permute.xlu0 %1535
      %1537 = vrot.lane.b32.xlu0 %v335, 96
      %v1538 = vpop.permute.xlu0 %1537
      %1539 = vrot.lane.b32.xlu0 %v336, 96
      %v1540 = vpop.permute.xlu0 %1539
      %1541 = vrot.lane.b32.xlu0 %v337, 96
      %v1542 = vpop.permute.xlu0 %1541
      %1543 = vrot.lane.b32.xlu0 %v370, 96
      %v1544 = vpop.permute.xlu0 %1543
      %1545 = vrot.lane.b32.xlu0 %v371, 96
      %v1546 = vpop.permute.xlu0 %1545
      %1547 = vrot.lane.b32.xlu0 %v372, 96
      %v1548 = vpop.permute.xlu0 %1547
      %1549 = vrot.lane.b32.xlu0 %v373, 96
      %v1550 = vpop.permute.xlu0 %1549
      %1551 = vrot.lane.b32.xlu0 %v374, 96
      %v1552 = vpop.permute.xlu0 %1551
      %1553 = vrot.lane.b32.xlu0 %v375, 96
      %v1554 = vpop.permute.xlu0 %1553
      %1555 = vrot.lane.b32.xlu0 %v376, 96
      %v1556 = vpop.permute.xlu0 %1555
      %1557 = vrot.lane.b32.xlu0 %v377, 96
      %v1558 = vpop.permute.xlu0 %1557
      %v1560 = vsel %vm378, %v1528, 0
      %v1563 = vsel %vm378, %v1530, 0
      %v1566 = vsel %vm378, %v1532, 0
      %v1569 = vsel %vm378, %v1534, 0
      %v1572 = vsel %vm378, %v1536, 0
      %v1575 = vsel %vm378, %v1538, 0
      %v1578 = vsel %vm378, %v1540, 0
      %v1581 = vsel %vm378, %v1542, 0
      %v1584 = vsel %vm378, %v1544, 0
      %v1587 = vsel %vm378, %v1546, 0
      %v1590 = vsel %vm378, %v1548, 0
      %v1593 = vsel %vm378, %v1550, 0
      %v1596 = vsel %vm378, %v1552, 0
      %v1599 = vsel %vm378, %v1554, 0
      %v1602 = vsel %vm378, %v1556, 0
      %v1605 = vsel %vm378, %v1558, 0
      %1607 = vmatpush.bf16.xpose.msra.mxu0 %v1605
      %1608 = vmatpush.bf16.xpose.msra.mxu0 %v1602
      %1609 = vmatpush.bf16.xpose.msra.mxu0 %v1599
      %1610 = vmatpush.bf16.xpose.msra.mxu0 %v1596
      %1611 = vmatpush.bf16.xpose.msra.mxu0 %v1593
      %1612 = vmatpush.bf16.xpose.msra.mxu0 %v1590
      %1613 = vmatpush.bf16.xpose.msra.mxu0 %v1587
      %1614 = vmatpush.bf16.xpose.msra.mxu0 %v1584
      %1615 = vmatmul.bf16.gmra.mxu0 %v1560
      %v1616 = vpop.f32.mrf.mxu0
      %v1617 = vadd.f32 0.0, %v1616
      %v1618 = vpop.f32.mrf.mxu0
      %v1619 = vadd.f32 0.0, %v1618
      %1620 = vmatmul.bf16.gmra.mxu0 %v1563
      %v1621 = vpop.f32.mrf.mxu0
      %v1622 = vadd.f32 0.0, %v1621
      %v1623 = vpop.f32.mrf.mxu0
      %v1624 = vadd.f32 0.0, %v1623
      %1625 = vmatmul.bf16.gmra.mxu0 %v1566
      %v1626 = vpop.f32.mrf.mxu0
      %v1627 = vadd.f32 0.0, %v1626
      %v1628 = vpop.f32.mrf.mxu0
      %v1629 = vadd.f32 0.0, %v1628
      %1630 = vmatmul.bf16.gmra.mxu0 %v1569
      %v1631 = vpop.f32.mrf.mxu0
      %v1632 = vadd.f32 0.0, %v1631
      %v1633 = vpop.f32.mrf.mxu0
      %v1634 = vadd.f32 0.0, %v1633
      %1635 = vmatmul.bf16.gmra.mxu0 %v1572
      %v1636 = vpop.f32.mrf.mxu0
      %v1637 = vadd.f32 0.0, %v1636
      %v1638 = vpop.f32.mrf.mxu0
      %v1639 = vadd.f32 0.0, %v1638
      %1640 = vmatmul.bf16.gmra.mxu0 %v1575
      %v1641 = vpop.f32.mrf.mxu0
      %v1642 = vadd.f32 0.0, %v1641
      %v1643 = vpop.f32.mrf.mxu0
      %v1644 = vadd.f32 0.0, %v1643
      %1645 = vmatmul.bf16.gmra.mxu0 %v1578
      %v1646 = vpop.f32.mrf.mxu0
      %v1647 = vadd.f32 0.0, %v1646
      %v1648 = vpop.f32.mrf.mxu0
      %v1649 = vadd.f32 0.0, %v1648
      %1650 = vmatmul.bf16.gmra.mxu0 %v1581
      %v1651 = vpop.f32.mrf.mxu0
      %v1652 = vadd.f32 0.0, %v1651
      %v1653 = vpop.f32.mrf.mxu0
      %v1654 = vadd.f32 0.0, %v1653
      %1655 = vdwg.mxu0
      %v1656 = vmul.f32 %v1617, 0.25
      %v1657 = vmul.f32 %v1619, 0.25
      %v1658 = vmul.f32 %v1622, 0.25
      %v1659 = vmul.f32 %v1624, 0.25
      %v1660 = vmul.f32 %v1627, 0.25
      %v1661 = vmul.f32 %v1629, 0.25
      %v1662 = vmul.f32 %v1632, 0.25
      %v1663 = vmul.f32 %v1634, 0.25
      %v1664 = vmul.f32 %v1637, 0.25
      %v1665 = vmul.f32 %v1639, 0.25
      %v1666 = vmul.f32 %v1642, 0.25
      %v1667 = vmul.f32 %v1644, 0.25
      %v1668 = vmul.f32 %v1647, 0.25
      %v1669 = vmul.f32 %v1649, 0.25
      %v1670 = vmul.f32 %v1652, 0.25
      %v1671 = vmul.f32 %v1654, 0.25
      %1672 = vmax.xlane.f32.xlu0 %v1656
      %v1673 = vpop.xlane.xlu0 %1672
      %1674 = vmax.xlane.f32.xlu0 %v1657
      %v1675 = vpop.xlane.xlu0 %1674
      %1676 = vmax.xlane.f32.xlu0 %v1658
      %v1677 = vpop.xlane.xlu0 %1676
      %1678 = vmax.xlane.f32.xlu0 %v1659
      %v1679 = vpop.xlane.xlu0 %1678
      %1680 = vmax.xlane.f32.xlu0 %v1660
      %v1681 = vpop.xlane.xlu0 %1680
      %1682 = vmax.xlane.f32.xlu0 %v1661
      %v1683 = vpop.xlane.xlu0 %1682
      %1684 = vmax.xlane.f32.xlu0 %v1662
      %v1685 = vpop.xlane.xlu0 %1684
      %1686 = vmax.xlane.f32.xlu0 %v1663
      %v1687 = vpop.xlane.xlu0 %1686
      %1688 = vmax.xlane.f32.xlu0 %v1664
      %v1689 = vpop.xlane.xlu0 %1688
      %1690 = vmax.xlane.f32.xlu0 %v1665
      %v1691 = vpop.xlane.xlu0 %1690
      %1692 = vmax.xlane.f32.xlu0 %v1666
      %v1693 = vpop.xlane.xlu0 %1692
      %1694 = vmax.xlane.f32.xlu0 %v1667
      %v1695 = vpop.xlane.xlu0 %1694
      %1696 = vmax.xlane.f32.xlu0 %v1668
      %v1697 = vpop.xlane.xlu0 %1696
      %1698 = vmax.xlane.f32.xlu0 %v1669
      %v1699 = vpop.xlane.xlu0 %1698
      %1700 = vmax.xlane.f32.xlu0 %v1670
      %v1701 = vpop.xlane.xlu0 %1700
      %1702 = vmax.xlane.f32.xlu0 %v1671
      %v1703 = vpop.xlane.xlu0 %1702
      %v1704 = vsub.f32 %v1656, %v1673
      %v1705 = vsub.f32 %v1657, %v1675
      %v1706 = vsub.f32 %v1658, %v1677
      %v1707 = vsub.f32 %v1659, %v1679
      %v1708 = vsub.f32 %v1660, %v1681
      %v1709 = vsub.f32 %v1661, %v1683
      %v1710 = vsub.f32 %v1662, %v1685
      %v1711 = vsub.f32 %v1663, %v1687
      %v1712 = vsub.f32 %v1664, %v1689
      %v1713 = vsub.f32 %v1665, %v1691
      %v1714 = vsub.f32 %v1666, %v1693
      %v1715 = vsub.f32 %v1667, %v1695
      %v1716 = vsub.f32 %v1668, %v1697
      %v1717 = vsub.f32 %v1669, %v1699
      %v1718 = vsub.f32 %v1670, %v1701
      %v1719 = vsub.f32 %v1671, %v1703
      %v1720 = vmul.f32 %v1704, 1.442695
      %v1721 = vpow.pop %v1720
      %v1722 = vmul.f32 %v1705, 1.442695
      %v1723 = vpow.pop %v1722
      %v1724 = vmul.f32 %v1706, 1.442695
      %v1725 = vpow.pop %v1724
      %v1726 = vmul.f32 %v1707, 1.442695
      %v1727 = vpow.pop %v1726
      %v1728 = vmul.f32 %v1708, 1.442695
      %v1729 = vpow.pop %v1728
      %v1730 = vmul.f32 %v1709, 1.442695
      %v1731 = vpow.pop %v1730
      %v1732 = vmul.f32 %v1710, 1.442695
      %v1733 = vpow.pop %v1732
      %v1734 = vmul.f32 %v1711, 1.442695
      %v1735 = vpow.pop %v1734
      %v1736 = vmul.f32 %v1712, 1.442695
      %v1737 = vpow.pop %v1736
      %v1738 = vmul.f32 %v1713, 1.442695
      %v1739 = vpow.pop %v1738
      %v1740 = vmul.f32 %v1714, 1.442695
      %v1741 = vpow.pop %v1740
      %v1742 = vmul.f32 %v1715, 1.442695
      %v1743 = vpow.pop %v1742
      %v1744 = vmul.f32 %v1716, 1.442695
      %v1745 = vpow.pop %v1744
      %v1746 = vmul.f32 %v1717, 1.442695
      %v1747 = vpow.pop %v1746
      %v1748 = vmul.f32 %v1718, 1.442695
      %v1749 = vpow.pop %v1748
      %v1750 = vmul.f32 %v1719, 1.442695
      %v1751 = vpow.pop %v1750
      %1752 = vadd.xlane.f32.xlu0 %v1721
      %v1753 = vpop.xlane.xlu0 %1752
      %1754 = vadd.xlane.f32.xlu0 %v1723
      %v1755 = vpop.xlane.xlu0 %1754
      %1756 = vadd.xlane.f32.xlu0 %v1725
      %v1757 = vpop.xlane.xlu0 %1756
      %1758 = vadd.xlane.f32.xlu0 %v1727
      %v1759 = vpop.xlane.xlu0 %1758
      %1760 = vadd.xlane.f32.xlu0 %v1729
      %v1761 = vpop.xlane.xlu0 %1760
      %1762 = vadd.xlane.f32.xlu0 %v1731
      %v1763 = vpop.xlane.xlu0 %1762
      %1764 = vadd.xlane.f32.xlu0 %v1733
      %v1765 = vpop.xlane.xlu0 %1764
      %1766 = vadd.xlane.f32.xlu0 %v1735
      %v1767 = vpop.xlane.xlu0 %1766
      %1768 = vadd.xlane.f32.xlu0 %v1737
      %v1769 = vpop.xlane.xlu0 %1768
      %1770 = vadd.xlane.f32.xlu0 %v1739
      %v1771 = vpop.xlane.xlu0 %1770
      %1772 = vadd.xlane.f32.xlu0 %v1741
      %v1773 = vpop.xlane.xlu0 %1772
      %1774 = vadd.xlane.f32.xlu0 %v1743
      %v1775 = vpop.xlane.xlu0 %1774
      %1776 = vadd.xlane.f32.xlu0 %v1745
      %v1777 = vpop.xlane.xlu0 %1776
      %1778 = vadd.xlane.f32.xlu0 %v1747
      %v1779 = vpop.xlane.xlu0 %1778
      %1780 = vadd.xlane.f32.xlu0 %v1749
      %v1781 = vpop.xlane.xlu0 %1780
      %1782 = vadd.xlane.f32.xlu0 %v1751
      %v1783 = vpop.xlane.xlu0 %1782
      %v1784 = vpack.c.bf16 %v1723, %v1721
      %v1785 = vpack.c.bf16 %v1727, %v1725
      %v1786 = vpack.c.bf16 %v1731, %v1729
      %v1787 = vpack.c.bf16 %v1735, %v1733
      %v1788 = vpack.c.bf16 %v1739, %v1737
      %v1789 = vpack.c.bf16 %v1743, %v1741
      %v1790 = vpack.c.bf16 %v1747, %v1745
      %v1791 = vpack.c.bf16 %v1751, %v1749
      %1792 = vrot.lane.b32.xlu0 %v644, 96
      %v1793 = vpop.permute.xlu0 %1792
      %1794 = vrot.lane.b32.xlu0 %v645, 96
      %v1795 = vpop.permute.xlu0 %1794
      %1796 = vrot.lane.b32.xlu0 %v646, 96
      %v1797 = vpop.permute.xlu0 %1796
      %1798 = vrot.lane.b32.xlu0 %v647, 96
      %v1799 = vpop.permute.xlu0 %1798
      %1800 = vrot.lane.b32.xlu0 %v648, 96
      %v1801 = vpop.permute.xlu0 %1800
      %1802 = vrot.lane.b32.xlu0 %v649, 96
      %v1803 = vpop.permute.xlu0 %1802
      %1804 = vrot.lane.b32.xlu0 %v650, 96
      %v1805 = vpop.permute.xlu0 %1804
      %1806 = vrot.lane.b32.xlu0 %v651, 96
      %v1807 = vpop.permute.xlu0 %1806
      %1816 = vmatpush.bf16.msra.mxu0 %v1807
      %1817 = vmatpush.bf16.msra.mxu0 %v1805
      %1818 = vmatpush.bf16.msra.mxu0 %v1803
      %1819 = vmatpush.bf16.msra.mxu0 %v1801
      %1820 = vmatpush.bf16.msra.mxu0 %v1799
      %1821 = vmatpush.bf16.msra.mxu0 %v1797
      %1822 = vmatpush.bf16.msra.mxu0 %v1795
      %1823 = vmatpush.bf16.msra.mxu0 %v1793
      %1824 = vmatmul.bf16.gmra.mxu0 %v1784
      %v1825 = vpop.f32.mrf.mxu0
      %v1826 = vadd.f32 0.0, %v1825
      %v1827 = vpop.f32.mrf.mxu0
      %v1828 = vadd.f32 0.0, %v1827
      %1829 = vmatmul.bf16.gmra.mxu0 %v1785
      %v1830 = vpop.f32.mrf.mxu0
      %v1831 = vadd.f32 0.0, %v1830
      %v1832 = vpop.f32.mrf.mxu0
      %v1833 = vadd.f32 0.0, %v1832
      %1834 = vmatmul.bf16.gmra.mxu0 %v1786
      %v1835 = vpop.f32.mrf.mxu0
      %v1836 = vadd.f32 0.0, %v1835
      %v1837 = vpop.f32.mrf.mxu0
      %v1838 = vadd.f32 0.0, %v1837
      %1839 = vmatmul.bf16.gmra.mxu0 %v1787
      %v1840 = vpop.f32.mrf.mxu0
      %v1841 = vadd.f32 0.0, %v1840
      %v1842 = vpop.f32.mrf.mxu0
      %v1843 = vadd.f32 0.0, %v1842
      %1844 = vmatmul.bf16.gmra.mxu0 %v1788
      %v1845 = vpop.f32.mrf.mxu0
      %v1846 = vadd.f32 0.0, %v1845
      %v1847 = vpop.f32.mrf.mxu0
      %v1848 = vadd.f32 0.0, %v1847
      %1849 = vmatmul.bf16.gmra.mxu0 %v1789
      %v1850 = vpop.f32.mrf.mxu0
      %v1851 = vadd.f32 0.0, %v1850
      %v1852 = vpop.f32.mrf.mxu0
      %v1853 = vadd.f32 0.0, %v1852
      %1854 = vmatmul.bf16.gmra.mxu0 %v1790
      %v1855 = vpop.f32.mrf.mxu0
      %v1856 = vadd.f32 0.0, %v1855
      %v1857 = vpop.f32.mrf.mxu0
      %v1858 = vadd.f32 0.0, %v1857
      %1859 = vmatmul.bf16.gmra.mxu0 %v1791
      %v1860 = vpop.f32.mrf.mxu0
      %v1861 = vadd.f32 0.0, %v1860
      %v1862 = vpop.f32.mrf.mxu0
      %v1863 = vadd.f32 0.0, %v1862
      %1864 = vdwg.mxu0
      %v1865 = vrcp.pop %v1753
      %v1866 = vmul.f32 %v1753, %v1865
      %v1867 = vsub.f32 1.0, %v1866
      %v1868 = vmul.f32 %v1865, %v1867
      %v1869 = vadd.f32 %v1865, %v1868
      %vm1870 = vweird.f32 %v1753
      %vm1871 = vweird.f32 %v1865
      %vm1872 = vmor %vm1870, %vm1871
      %v1873 = vsel %vm1872, %v1865, %v1869
      %v1874 = vand.u32 2147483647, %v1753
      %vm1875 = vcmp.eq.f32.partialorder %v1874, 8.507059e+37
      %v1876 = vand.u32 %v1753, 2147483648
      %v1877 = vor.u32 1.1754944e-38, %v1876
      %v1878 = vsel %vm1875, %v1877, %v1873
      %v1879 = vmul.f32 %v1826, %v1878
      %v1880 = vrcp.pop %v1755
      %v1881 = vmul.f32 %v1755, %v1880
      %v1882 = vsub.f32 1.0, %v1881
      %v1883 = vmul.f32 %v1880, %v1882
      %v1884 = vadd.f32 %v1880, %v1883
      %vm1885 = vweird.f32 %v1755
      %vm1886 = vweird.f32 %v1880
      %vm1887 = vmor %vm1885, %vm1886
      %v1888 = vsel %vm1887, %v1880, %v1884
      %v1889 = vand.u32 2147483647, %v1755
      %vm1890 = vcmp.eq.f32.partialorder %v1889, 8.507059e+37
      %v1891 = vand.u32 %v1755, 2147483648
      %v1892 = vor.u32 1.1754944e-38, %v1891
      %v1893 = vsel %vm1890, %v1892, %v1888
      %v1894 = vmul.f32 %v1828, %v1893
      %v1895 = vrcp.pop %v1757
      %v1896 = vmul.f32 %v1757, %v1895
      %v1897 = vsub.f32 1.0, %v1896
      %v1898 = vmul.f32 %v1895, %v1897
      %v1899 = vadd.f32 %v1895, %v1898
      %vm1900 = vweird.f32 %v1757
      %vm1901 = vweird.f32 %v1895
      %vm1902 = vmor %vm1900, %vm1901
      %v1903 = vsel %vm1902, %v1895, %v1899
      %v1904 = vand.u32 2147483647, %v1757
      %vm1905 = vcmp.eq.f32.partialorder %v1904, 8.507059e+37
      %v1906 = vand.u32 %v1757, 2147483648
      %v1907 = vor.u32 1.1754944e-38, %v1906
      %v1908 = vsel %vm1905, %v1907, %v1903
      %v1909 = vmul.f32 %v1831, %v1908
      %v1910 = vrcp.pop %v1759
      %v1911 = vmul.f32 %v1759, %v1910
      %v1912 = vsub.f32 1.0, %v1911
      %v1913 = vmul.f32 %v1910, %v1912
      %v1914 = vadd.f32 %v1910, %v1913
      %vm1915 = vweird.f32 %v1759
      %vm1916 = vweird.f32 %v1910
      %vm1917 = vmor %vm1915, %vm1916
      %v1918 = vsel %vm1917, %v1910, %v1914
      %v1919 = vand.u32 2147483647, %v1759
      %vm1920 = vcmp.eq.f32.partialorder %v1919, 8.507059e+37
      %v1921 = vand.u32 %v1759, 2147483648
      %v1922 = vor.u32 1.1754944e-38, %v1921
      %v1923 = vsel %vm1920, %v1922, %v1918
      %v1924 = vmul.f32 %v1833, %v1923
      %v1925 = vrcp.pop %v1761
      %v1926 = vmul.f32 %v1761, %v1925
      %v1927 = vsub.f32 1.0, %v1926
      %v1928 = vmul.f32 %v1925, %v1927
      %v1929 = vadd.f32 %v1925, %v1928
      %vm1930 = vweird.f32 %v1761
      %vm1931 = vweird.f32 %v1925
      %vm1932 = vmor %vm1930, %vm1931
      %v1933 = vsel %vm1932, %v1925, %v1929
      %v1934 = vand.u32 2147483647, %v1761
      %vm1935 = vcmp.eq.f32.partialorder %v1934, 8.507059e+37
      %v1936 = vand.u32 %v1761, 2147483648
      %v1937 = vor.u32 1.1754944e-38, %v1936
      %v1938 = vsel %vm1935, %v1937, %v1933
      %v1939 = vmul.f32 %v1836, %v1938
      %v1940 = vrcp.pop %v1763
      %v1941 = vmul.f32 %v1763, %v1940
      %v1942 = vsub.f32 1.0, %v1941
      %v1943 = vmul.f32 %v1940, %v1942
      %v1944 = vadd.f32 %v1940, %v1943
      %vm1945 = vweird.f32 %v1763
      %vm1946 = vweird.f32 %v1940
      %vm1947 = vmor %vm1945, %vm1946
      %v1948 = vsel %vm1947, %v1940, %v1944
      %v1949 = vand.u32 2147483647, %v1763
      %vm1950 = vcmp.eq.f32.partialorder %v1949, 8.507059e+37
      %v1951 = vand.u32 %v1763, 2147483648
      %v1952 = vor.u32 1.1754944e-38, %v1951
      %v1953 = vsel %vm1950, %v1952, %v1948
      %v1954 = vmul.f32 %v1838, %v1953
      %v1955 = vrcp.pop %v1765
      %v1956 = vmul.f32 %v1765, %v1955
      %v1957 = vsub.f32 1.0, %v1956
      %v1958 = vmul.f32 %v1955, %v1957
      %v1959 = vadd.f32 %v1955, %v1958
      %vm1960 = vweird.f32 %v1765
      %vm1961 = vweird.f32 %v1955
      %vm1962 = vmor %vm1960, %vm1961
      %v1963 = vsel %vm1962, %v1955, %v1959
      %v1964 = vand.u32 2147483647, %v1765
      %vm1965 = vcmp.eq.f32.partialorder %v1964, 8.507059e+37
      %v1966 = vand.u32 %v1765, 2147483648
      %v1967 = vor.u32 1.1754944e-38, %v1966
      %v1968 = vsel %vm1965, %v1967, %v1963
      %v1969 = vmul.f32 %v1841, %v1968
      %v1970 = vrcp.pop %v1767
      %v1971 = vmul.f32 %v1767, %v1970
      %v1972 = vsub.f32 1.0, %v1971
      %v1973 = vmul.f32 %v1970, %v1972
      %v1974 = vadd.f32 %v1970, %v1973
      %vm1975 = vweird.f32 %v1767
      %vm1976 = vweird.f32 %v1970
      %vm1977 = vmor %vm1975, %vm1976
      %v1978 = vsel %vm1977, %v1970, %v1974
      %v1979 = vand.u32 2147483647, %v1767
      %vm1980 = vcmp.eq.f32.partialorder %v1979, 8.507059e+37
      %v1981 = vand.u32 %v1767, 2147483648
      %v1982 = vor.u32 1.1754944e-38, %v1981
      %v1983 = vsel %vm1980, %v1982, %v1978
      %v1984 = vmul.f32 %v1843, %v1983
      %v1985 = vrcp.pop %v1769
      %v1986 = vmul.f32 %v1769, %v1985
      %v1987 = vsub.f32 1.0, %v1986
      %v1988 = vmul.f32 %v1985, %v1987
      %v1989 = vadd.f32 %v1985, %v1988
      %vm1990 = vweird.f32 %v1769
      %vm1991 = vweird.f32 %v1985
      %vm1992 = vmor %vm1990, %vm1991
      %v1993 = vsel %vm1992, %v1985, %v1989
      %v1994 = vand.u32 2147483647, %v1769
      %vm1995 = vcmp.eq.f32.partialorder %v1994, 8.507059e+37
      %v1996 = vand.u32 %v1769, 2147483648
      %v1997 = vor.u32 1.1754944e-38, %v1996
      %v1998 = vsel %vm1995, %v1997, %v1993
      %v1999 = vmul.f32 %v1846, %v1998
      %v2000 = vrcp.pop %v1771
      %v2001 = vmul.f32 %v1771, %v2000
      %v2002 = vsub.f32 1.0, %v2001
      %v2003 = vmul.f32 %v2000, %v2002
      %v2004 = vadd.f32 %v2000, %v2003
      %vm2005 = vweird.f32 %v1771
      %vm2006 = vweird.f32 %v2000
      %vm2007 = vmor %vm2005, %vm2006
      %v2008 = vsel %vm2007, %v2000, %v2004
      %v2009 = vand.u32 2147483647, %v1771
      %vm2010 = vcmp.eq.f32.partialorder %v2009, 8.507059e+37
      %v2011 = vand.u32 %v1771, 2147483648
      %v2012 = vor.u32 1.1754944e-38, %v2011
      %v2013 = vsel %vm2010, %v2012, %v2008
      %v2014 = vmul.f32 %v1848, %v2013
      %v2015 = vrcp.pop %v1773
      %v2016 = vmul.f32 %v1773, %v2015
      %v2017 = vsub.f32 1.0, %v2016
      %v2018 = vmul.f32 %v2015, %v2017
      %v2019 = vadd.f32 %v2015, %v2018
      %vm2020 = vweird.f32 %v1773
      %vm2021 = vweird.f32 %v2015
      %vm2022 = vmor %vm2020, %vm2021
      %v2023 = vsel %vm2022, %v2015, %v2019
      %v2024 = vand.u32 2147483647, %v1773
      %vm2025 = vcmp.eq.f32.partialorder %v2024, 8.507059e+37
      %v2026 = vand.u32 %v1773, 2147483648
      %v2027 = vor.u32 1.1754944e-38, %v2026
      %v2028 = vsel %vm2025, %v2027, %v2023
      %v2029 = vmul.f32 %v1851, %v2028
      %v2030 = vrcp.pop %v1775
      %v2031 = vmul.f32 %v1775, %v2030
      %v2032 = vsub.f32 1.0, %v2031
      %v2033 = vmul.f32 %v2030, %v2032
      %v2034 = vadd.f32 %v2030, %v2033
      %vm2035 = vweird.f32 %v1775
      %vm2036 = vweird.f32 %v2030
      %vm2037 = vmor %vm2035, %vm2036
      %v2038 = vsel %vm2037, %v2030, %v2034
      %v2039 = vand.u32 2147483647, %v1775
      %vm2040 = vcmp.eq.f32.partialorder %v2039, 8.507059e+37
      %v2041 = vand.u32 %v1775, 2147483648
      %v2042 = vor.u32 1.1754944e-38, %v2041
      %v2043 = vsel %vm2040, %v2042, %v2038
      %v2044 = vmul.f32 %v1853, %v2043
      %v2045 = vrcp.pop %v1777
      %v2046 = vmul.f32 %v1777, %v2045
      %v2047 = vsub.f32 1.0, %v2046
      %v2048 = vmul.f32 %v2045, %v2047
      %v2049 = vadd.f32 %v2045, %v2048
      %vm2050 = vweird.f32 %v1777
      %vm2051 = vweird.f32 %v2045
      %vm2052 = vmor %vm2050, %vm2051
      %v2053 = vsel %vm2052, %v2045, %v2049
      %v2054 = vand.u32 2147483647, %v1777
      %vm2055 = vcmp.eq.f32.partialorder %v2054, 8.507059e+37
      %v2056 = vand.u32 %v1777, 2147483648
      %v2057 = vor.u32 1.1754944e-38, %v2056
      %v2058 = vsel %vm2055, %v2057, %v2053
      %v2059 = vmul.f32 %v1856, %v2058
      %v2060 = vrcp.pop %v1779
      %v2061 = vmul.f32 %v1779, %v2060
      %v2062 = vsub.f32 1.0, %v2061
      %v2063 = vmul.f32 %v2060, %v2062
      %v2064 = vadd.f32 %v2060, %v2063
      %vm2065 = vweird.f32 %v1779
      %vm2066 = vweird.f32 %v2060
      %vm2067 = vmor %vm2065, %vm2066
      %v2068 = vsel %vm2067, %v2060, %v2064
      %v2069 = vand.u32 2147483647, %v1779
      %vm2070 = vcmp.eq.f32.partialorder %v2069, 8.507059e+37
      %v2071 = vand.u32 %v1779, 2147483648
      %v2072 = vor.u32 1.1754944e-38, %v2071
      %v2073 = vsel %vm2070, %v2072, %v2068
      %v2074 = vmul.f32 %v1858, %v2073
      %v2075 = vrcp.pop %v1781
      %v2076 = vmul.f32 %v1781, %v2075
      %v2077 = vsub.f32 1.0, %v2076
      %v2078 = vmul.f32 %v2075, %v2077
      %v2079 = vadd.f32 %v2075, %v2078
      %vm2080 = vweird.f32 %v1781
      %vm2081 = vweird.f32 %v2075
      %vm2082 = vmor %vm2080, %vm2081
      %v2083 = vsel %vm2082, %v2075, %v2079
      %v2084 = vand.u32 2147483647, %v1781
      %vm2085 = vcmp.eq.f32.partialorder %v2084, 8.507059e+37
      %v2086 = vand.u32 %v1781, 2147483648
      %v2087 = vor.u32 1.1754944e-38, %v2086
      %v2088 = vsel %vm2085, %v2087, %v2083
      %v2089 = vmul.f32 %v1861, %v2088
      %v2090 = vrcp.pop %v1783
      %v2091 = vmul.f32 %v1783, %v2090
      %v2092 = vsub.f32 1.0, %v2091
      %v2093 = vmul.f32 %v2090, %v2092
      %v2094 = vadd.f32 %v2090, %v2093
      %vm2095 = vweird.f32 %v1783
      %vm2096 = vweird.f32 %v2090
      %vm2097 = vmor %vm2095, %vm2096
      %v2098 = vsel %vm2097, %v2090, %v2094
      %v2099 = vand.u32 2147483647, %v1783
      %vm2100 = vcmp.eq.f32.partialorder %v2099, 8.507059e+37
      %v2101 = vand.u32 %v1783, 2147483648
      %v2102 = vor.u32 1.1754944e-38, %v2101
      %v2103 = vsel %vm2100, %v2102, %v2098
      %v2104 = vmul.f32 %v1863, %v2103
      %2105 = vrot.lane.b32.xlu0 %v330, 80
      %v2106 = vpop.permute.xlu0 %2105
      %2107 = vrot.lane.b32.xlu0 %v331, 80
      %v2108 = vpop.permute.xlu0 %2107
      %2109 = vrot.lane.b32.xlu0 %v332, 80
      %v2110 = vpop.permute.xlu0 %2109
      %2111 = vrot.lane.b32.xlu0 %v333, 80
      %v2112 = vpop.permute.xlu0 %2111
      %2113 = vrot.lane.b32.xlu0 %v334, 80
      %v2114 = vpop.permute.xlu0 %2113
      %2115 = vrot.lane.b32.xlu0 %v335, 80
      %v2116 = vpop.permute.xlu0 %2115
      %2117 = vrot.lane.b32.xlu0 %v336, 80
      %v2118 = vpop.permute.xlu0 %2117
      %2119 = vrot.lane.b32.xlu0 %v337, 80
      %v2120 = vpop.permute.xlu0 %2119
      %2121 = vrot.lane.b32.xlu0 %v370, 80
      %v2122 = vpop.permute.xlu0 %2121
      %2123 = vrot.lane.b32.xlu0 %v371, 80
      %v2124 = vpop.permute.xlu0 %2123
      %2125 = vrot.lane.b32.xlu0 %v372, 80
      %v2126 = vpop.permute.xlu0 %2125
      %2127 = vrot.lane.b32.xlu0 %v373, 80
      %v2128 = vpop.permute.xlu0 %2127
      %2129 = vrot.lane.b32.xlu0 %v374, 80
      %v2130 = vpop.permute.xlu0 %2129
      %2131 = vrot.lane.b32.xlu0 %v375, 80
      %v2132 = vpop.permute.xlu0 %2131
      %2133 = vrot.lane.b32.xlu0 %v376, 80
      %v2134 = vpop.permute.xlu0 %2133
      %2135 = vrot.lane.b32.xlu0 %v377, 80
      %v2136 = vpop.permute.xlu0 %2135
      %v2138 = vsel %vm378, %v2106, 0
      %v2141 = vsel %vm378, %v2108, 0
      %v2144 = vsel %vm378, %v2110, 0
      %v2147 = vsel %vm378, %v2112, 0
      %v2150 = vsel %vm378, %v2114, 0
      %v2153 = vsel %vm378, %v2116, 0
      %v2156 = vsel %vm378, %v2118, 0
      %v2159 = vsel %vm378, %v2120, 0
      %v2162 = vsel %vm378, %v2122, 0
      %v2165 = vsel %vm378, %v2124, 0
      %v2168 = vsel %vm378, %v2126, 0
      %v2171 = vsel %vm378, %v2128, 0
      %v2174 = vsel %vm378, %v2130, 0
      %v2177 = vsel %vm378, %v2132, 0
      %v2180 = vsel %vm378, %v2134, 0
      %v2183 = vsel %vm378, %v2136, 0
      %2185 = vmatpush.bf16.xpose.msra.mxu0 %v2183
      %2186 = vmatpush.bf16.xpose.msra.mxu0 %v2180
      %2187 = vmatpush.bf16.xpose.msra.mxu0 %v2177
      %2188 = vmatpush.bf16.xpose.msra.mxu0 %v2174
      %2189 = vmatpush.bf16.xpose.msra.mxu0 %v2171
      %2190 = vmatpush.bf16.xpose.msra.mxu0 %v2168
      %2191 = vmatpush.bf16.xpose.msra.mxu0 %v2165
      %2192 = vmatpush.bf16.xpose.msra.mxu0 %v2162
      %2193 = vmatmul.bf16.gmra.mxu0 %v2138
      %v2194 = vpop.f32.mrf.mxu0
      %v2195 = vadd.f32 0.0, %v2194
      %v2196 = vpop.f32.mrf.mxu0
      %v2197 = vadd.f32 0.0, %v2196
      %2198 = vmatmul.bf16.gmra.mxu0 %v2141
      %v2199 = vpop.f32.mrf.mxu0
      %v2200 = vadd.f32 0.0, %v2199
      %v2201 = vpop.f32.mrf.mxu0
      %v2202 = vadd.f32 0.0, %v2201
      %2203 = vmatmul.bf16.gmra.mxu0 %v2144
      %v2204 = vpop.f32.mrf.mxu0
      %v2205 = vadd.f32 0.0, %v2204
      %v2206 = vpop.f32.mrf.mxu0
      %v2207 = vadd.f32 0.0, %v2206
      %2208 = vmatmul.bf16.gmra.mxu0 %v2147
      %v2209 = vpop.f32.mrf.mxu0
      %v2210 = vadd.f32 0.0, %v2209
      %v2211 = vpop.f32.mrf.mxu0
      %v2212 = vadd.f32 0.0, %v2211
      %2213 = vmatmul.bf16.gmra.mxu0 %v2150
      %v2214 = vpop.f32.mrf.mxu0
      %v2215 = vadd.f32 0.0, %v2214
      %v2216 = vpop.f32.mrf.mxu0
      %v2217 = vadd.f32 0.0, %v2216
      %2218 = vmatmul.bf16.gmra.mxu0 %v2153
      %v2219 = vpop.f32.mrf.mxu0
      %v2220 = vadd.f32 0.0, %v2219
      %v2221 = vpop.f32.mrf.mxu0
      %v2222 = vadd.f32 0.0, %v2221
      %2223 = vmatmul.bf16.gmra.mxu0 %v2156
      %v2224 = vpop.f32.mrf.mxu0
      %v2225 = vadd.f32 0.0, %v2224
      %v2226 = vpop.f32.mrf.mxu0
      %v2227 = vadd.f32 0.0, %v2226
      %2228 = vmatmul.bf16.gmra.mxu0 %v2159
      %v2229 = vpop.f32.mrf.mxu0
      %v2230 = vadd.f32 0.0, %v2229
      %v2231 = vpop.f32.mrf.mxu0
      %v2232 = vadd.f32 0.0, %v2231
      %2233 = vdwg.mxu0
      %v2234 = vmul.f32 %v2195, 0.25
      %v2235 = vmul.f32 %v2197, 0.25
      %v2236 = vmul.f32 %v2200, 0.25
      %v2237 = vmul.f32 %v2202, 0.25
      %v2238 = vmul.f32 %v2205, 0.25
      %v2239 = vmul.f32 %v2207, 0.25
      %v2240 = vmul.f32 %v2210, 0.25
      %v2241 = vmul.f32 %v2212, 0.25
      %v2242 = vmul.f32 %v2215, 0.25
      %v2243 = vmul.f32 %v2217, 0.25
      %v2244 = vmul.f32 %v2220, 0.25
      %v2245 = vmul.f32 %v2222, 0.25
      %v2246 = vmul.f32 %v2225, 0.25
      %v2247 = vmul.f32 %v2227, 0.25
      %v2248 = vmul.f32 %v2230, 0.25
      %v2249 = vmul.f32 %v2232, 0.25
      %2250 = vmax.xlane.f32.xlu0 %v2234
      %v2251 = vpop.xlane.xlu0 %2250
      %2252 = vmax.xlane.f32.xlu0 %v2235
      %v2253 = vpop.xlane.xlu0 %2252
      %2254 = vmax.xlane.f32.xlu0 %v2236
      %v2255 = vpop.xlane.xlu0 %2254
      %2256 = vmax.xlane.f32.xlu0 %v2237
      %v2257 = vpop.xlane.xlu0 %2256
      %2258 = vmax.xlane.f32.xlu0 %v2238
      %v2259 = vpop.xlane.xlu0 %2258
      %2260 = vmax.xlane.f32.xlu0 %v2239
      %v2261 = vpop.xlane.xlu0 %2260
      %2262 = vmax.xlane.f32.xlu0 %v2240
      %v2263 = vpop.xlane.xlu0 %2262
      %2264 = vmax.xlane.f32.xlu0 %v2241
      %v2265 = vpop.xlane.xlu0 %2264
      %2266 = vmax.xlane.f32.xlu0 %v2242
      %v2267 = vpop.xlane.xlu0 %2266
      %2268 = vmax.xlane.f32.xlu0 %v2243
      %v2269 = vpop.xlane.xlu0 %2268
      %2270 = vmax.xlane.f32.xlu0 %v2244
      %v2271 = vpop.xlane.xlu0 %2270
      %2272 = vmax.xlane.f32.xlu0 %v2245
      %v2273 = vpop.xlane.xlu0 %2272
      %2274 = vmax.xlane.f32.xlu0 %v2246
      %v2275 = vpop.xlane.xlu0 %2274
      %2276 = vmax.xlane.f32.xlu0 %v2247
      %v2277 = vpop.xlane.xlu0 %2276
      %2278 = vmax.xlane.f32.xlu0 %v2248
      %v2279 = vpop.xlane.xlu0 %2278
      %2280 = vmax.xlane.f32.xlu0 %v2249
      %v2281 = vpop.xlane.xlu0 %2280
      %v2282 = vsub.f32 %v2234, %v2251
      %v2283 = vsub.f32 %v2235, %v2253
      %v2284 = vsub.f32 %v2236, %v2255
      %v2285 = vsub.f32 %v2237, %v2257
      %v2286 = vsub.f32 %v2238, %v2259
      %v2287 = vsub.f32 %v2239, %v2261
      %v2288 = vsub.f32 %v2240, %v2263
      %v2289 = vsub.f32 %v2241, %v2265
      %v2290 = vsub.f32 %v2242, %v2267
      %v2291 = vsub.f32 %v2243, %v2269
      %v2292 = vsub.f32 %v2244, %v2271
      %v2293 = vsub.f32 %v2245, %v2273
      %v2294 = vsub.f32 %v2246, %v2275
      %v2295 = vsub.f32 %v2247, %v2277
      %v2296 = vsub.f32 %v2248, %v2279
      %v2297 = vsub.f32 %v2249, %v2281
      %v2298 = vmul.f32 %v2282, 1.442695
      %v2299 = vpow.pop %v2298
      %v2300 = vmul.f32 %v2283, 1.442695
      %v2301 = vpow.pop %v2300
      %v2302 = vmul.f32 %v2284, 1.442695
      %v2303 = vpow.pop %v2302
      %v2304 = vmul.f32 %v2285, 1.442695
      %v2305 = vpow.pop %v2304
      %v2306 = vmul.f32 %v2286, 1.442695
      %v2307 = vpow.pop %v2306
      %v2308 = vmul.f32 %v2287, 1.442695
      %v2309 = vpow.pop %v2308
      %v2310 = vmul.f32 %v2288, 1.442695
      %v2311 = vpow.pop %v2310
      %v2312 = vmul.f32 %v2289, 1.442695
      %v2313 = vpow.pop %v2312
      %v2314 = vmul.f32 %v2290, 1.442695
      %v2315 = vpow.pop %v2314
      %v2316 = vmul.f32 %v2291, 1.442695
      %v2317 = vpow.pop %v2316
      %v2318 = vmul.f32 %v2292, 1.442695
      %v2319 = vpow.pop %v2318
      %v2320 = vmul.f32 %v2293, 1.442695
      %v2321 = vpow.pop %v2320
      %v2322 = vmul.f32 %v2294, 1.442695
      %v2323 = vpow.pop %v2322
      %v2324 = vmul.f32 %v2295, 1.442695
      %v2325 = vpow.pop %v2324
      %v2326 = vmul.f32 %v2296, 1.442695
      %v2327 = vpow.pop %v2326
      %v2328 = vmul.f32 %v2297, 1.442695
      %v2329 = vpow.pop %v2328
      %2330 = vadd.xlane.f32.xlu0 %v2299
      %v2331 = vpop.xlane.xlu0 %2330
      %2332 = vadd.xlane.f32.xlu0 %v2301
      %v2333 = vpop.xlane.xlu0 %2332
      %2334 = vadd.xlane.f32.xlu0 %v2303
      %v2335 = vpop.xlane.xlu0 %2334
      %2336 = vadd.xlane.f32.xlu0 %v2305
      %v2337 = vpop.xlane.xlu0 %2336
      %2338 = vadd.xlane.f32.xlu0 %v2307
      %v2339 = vpop.xlane.xlu0 %2338
      %2340 = vadd.xlane.f32.xlu0 %v2309
      %v2341 = vpop.xlane.xlu0 %2340
      %2342 = vadd.xlane.f32.xlu0 %v2311
      %v2343 = vpop.xlane.xlu0 %2342
      %2344 = vadd.xlane.f32.xlu0 %v2313
      %v2345 = vpop.xlane.xlu0 %2344
      %2346 = vadd.xlane.f32.xlu0 %v2315
      %v2347 = vpop.xlane.xlu0 %2346
      %2348 = vadd.xlane.f32.xlu0 %v2317
      %v2349 = vpop.xlane.xlu0 %2348
      %2350 = vadd.xlane.f32.xlu0 %v2319
      %v2351 = vpop.xlane.xlu0 %2350
      %2352 = vadd.xlane.f32.xlu0 %v2321
      %v2353 = vpop.xlane.xlu0 %2352
      %2354 = vadd.xlane.f32.xlu0 %v2323
      %v2355 = vpop.xlane.xlu0 %2354
      %2356 = vadd.xlane.f32.xlu0 %v2325
      %v2357 = vpop.xlane.xlu0 %2356
      %2358 = vadd.xlane.f32.xlu0 %v2327
      %v2359 = vpop.xlane.xlu0 %2358
      %2360 = vadd.xlane.f32.xlu0 %v2329
      %v2361 = vpop.xlane.xlu0 %2360
      %v2362 = vpack.c.bf16 %v2301, %v2299
      %v2363 = vpack.c.bf16 %v2305, %v2303
      %v2364 = vpack.c.bf16 %v2309, %v2307
      %v2365 = vpack.c.bf16 %v2313, %v2311
      %v2366 = vpack.c.bf16 %v2317, %v2315
      %v2367 = vpack.c.bf16 %v2321, %v2319
      %v2368 = vpack.c.bf16 %v2325, %v2323
      %v2369 = vpack.c.bf16 %v2329, %v2327
      %2370 = vrot.lane.b32.xlu0 %v644, 80
      %v2371 = vpop.permute.xlu0 %2370
      %2372 = vrot.lane.b32.xlu0 %v645, 80
      %v2373 = vpop.permute.xlu0 %2372
      %2374 = vrot.lane.b32.xlu0 %v646, 80
      %v2375 = vpop.permute.xlu0 %2374
      %2376 = vrot.lane.b32.xlu0 %v647, 80
      %v2377 = vpop.permute.xlu0 %2376
      %2378 = vrot.lane.b32.xlu0 %v648, 80
      %v2379 = vpop.permute.xlu0 %2378
      %2380 = vrot.lane.b32.xlu0 %v649, 80
      %v2381 = vpop.permute.xlu0 %2380
      %2382 = vrot.lane.b32.xlu0 %v650, 80
      %v2383 = vpop.permute.xlu0 %2382
      %2384 = vrot.lane.b32.xlu0 %v651, 80
      %v2385 = vpop.permute.xlu0 %2384
      %2394 = vmatpush.bf16.msra.mxu0 %v2385
      %2395 = vmatpush.bf16.msra.mxu0 %v2383
      %2396 = vmatpush.bf16.msra.mxu0 %v2381
      %2397 = vmatpush.bf16.msra.mxu0 %v2379
      %2398 = vmatpush.bf16.msra.mxu0 %v2377
      %2399 = vmatpush.bf16.msra.mxu0 %v2375
      %2400 = vmatpush.bf16.msra.mxu0 %v2373
      %2401 = vmatpush.bf16.msra.mxu0 %v2371
      %2402 = vmatmul.bf16.gmra.mxu0 %v2362
      %v2403 = vpop.f32.mrf.mxu0
      %v2404 = vadd.f32 0.0, %v2403
      %v2405 = vpop.f32.mrf.mxu0
      %v2406 = vadd.f32 0.0, %v2405
      %2407 = vmatmul.bf16.gmra.mxu0 %v2363
      %v2408 = vpop.f32.mrf.mxu0
      %v2409 = vadd.f32 0.0, %v2408
      %v2410 = vpop.f32.mrf.mxu0
      %v2411 = vadd.f32 0.0, %v2410
      %2412 = vmatmul.bf16.gmra.mxu0 %v2364
      %v2413 = vpop.f32.mrf.mxu0
      %v2414 = vadd.f32 0.0, %v2413
      %v2415 = vpop.f32.mrf.mxu0
      %v2416 = vadd.f32 0.0, %v2415
      %2417 = vmatmul.bf16.gmra.mxu0 %v2365
      %v2418 = vpop.f32.mrf.mxu0
      %v2419 = vadd.f32 0.0, %v2418
      %v2420 = vpop.f32.mrf.mxu0
      %v2421 = vadd.f32 0.0, %v2420
      %2422 = vmatmul.bf16.gmra.mxu0 %v2366
      %v2423 = vpop.f32.mrf.mxu0
      %v2424 = vadd.f32 0.0, %v2423
      %v2425 = vpop.f32.mrf.mxu0
      %v2426 = vadd.f32 0.0, %v2425
      %2427 = vmatmul.bf16.gmra.mxu0 %v2367
      %v2428 = vpop.f32.mrf.mxu0
      %v2429 = vadd.f32 0.0, %v2428
      %v2430 = vpop.f32.mrf.mxu0
      %v2431 = vadd.f32 0.0, %v2430
      %2432 = vmatmul.bf16.gmra.mxu0 %v2368
      %v2433 = vpop.f32.mrf.mxu0
      %v2434 = vadd.f32 0.0, %v2433
      %v2435 = vpop.f32.mrf.mxu0
      %v2436 = vadd.f32 0.0, %v2435
      %2437 = vmatmul.bf16.gmra.mxu0 %v2369
      %v2438 = vpop.f32.mrf.mxu0
      %v2439 = vadd.f32 0.0, %v2438
      %v2440 = vpop.f32.mrf.mxu0
      %v2441 = vadd.f32 0.0, %v2440
      %2442 = vdwg.mxu0
      %v2443 = vrcp.pop %v2331
      %v2444 = vmul.f32 %v2331, %v2443
      %v2445 = vsub.f32 1.0, %v2444
      %v2446 = vmul.f32 %v2443, %v2445
      %v2447 = vadd.f32 %v2443, %v2446
      %vm2448 = vweird.f32 %v2331
      %vm2449 = vweird.f32 %v2443
      %vm2450 = vmor %vm2448, %vm2449
      %v2451 = vsel %vm2450, %v2443, %v2447
      %v2452 = vand.u32 2147483647, %v2331
      %vm2453 = vcmp.eq.f32.partialorder %v2452, 8.507059e+37
      %v2454 = vand.u32 %v2331, 2147483648
      %v2455 = vor.u32 1.1754944e-38, %v2454
      %v2456 = vsel %vm2453, %v2455, %v2451
      %v2457 = vmul.f32 %v2404, %v2456
      %v2458 = vrcp.pop %v2333
      %v2459 = vmul.f32 %v2333, %v2458
      %v2460 = vsub.f32 1.0, %v2459
      %v2461 = vmul.f32 %v2458, %v2460
      %v2462 = vadd.f32 %v2458, %v2461
      %vm2463 = vweird.f32 %v2333
      %vm2464 = vweird.f32 %v2458
      %vm2465 = vmor %vm2463, %vm2464
      %v2466 = vsel %vm2465, %v2458, %v2462
      %v2467 = vand.u32 2147483647, %v2333
      %vm2468 = vcmp.eq.f32.partialorder %v2467, 8.507059e+37
      %v2469 = vand.u32 %v2333, 2147483648
      %v2470 = vor.u32 1.1754944e-38, %v2469
      %v2471 = vsel %vm2468, %v2470, %v2466
      %v2472 = vmul.f32 %v2406, %v2471
      %v2473 = vrcp.pop %v2335
      %v2474 = vmul.f32 %v2335, %v2473
      %v2475 = vsub.f32 1.0, %v2474
      %v2476 = vmul.f32 %v2473, %v2475
      %v2477 = vadd.f32 %v2473, %v2476
      %vm2478 = vweird.f32 %v2335
      %vm2479 = vweird.f32 %v2473
      %vm2480 = vmor %vm2478, %vm2479
      %v2481 = vsel %vm2480, %v2473, %v2477
      %v2482 = vand.u32 2147483647, %v2335
      %vm2483 = vcmp.eq.f32.partialorder %v2482, 8.507059e+37
      %v2484 = vand.u32 %v2335, 2147483648
      %v2485 = vor.u32 1.1754944e-38, %v2484
      %v2486 = vsel %vm2483, %v2485, %v2481
      %v2487 = vmul.f32 %v2409, %v2486
      %v2488 = vrcp.pop %v2337
      %v2489 = vmul.f32 %v2337, %v2488
      %v2490 = vsub.f32 1.0, %v2489
      %v2491 = vmul.f32 %v2488, %v2490
      %v2492 = vadd.f32 %v2488, %v2491
      %vm2493 = vweird.f32 %v2337
      %vm2494 = vweird.f32 %v2488
      %vm2495 = vmor %vm2493, %vm2494
      %v2496 = vsel %vm2495, %v2488, %v2492
      %v2497 = vand.u32 2147483647, %v2337
      %vm2498 = vcmp.eq.f32.partialorder %v2497, 8.507059e+37
      %v2499 = vand.u32 %v2337, 2147483648
      %v2500 = vor.u32 1.1754944e-38, %v2499
      %v2501 = vsel %vm2498, %v2500, %v2496
      %v2502 = vmul.f32 %v2411, %v2501
      %v2503 = vrcp.pop %v2339
      %v2504 = vmul.f32 %v2339, %v2503
      %v2505 = vsub.f32 1.0, %v2504
      %v2506 = vmul.f32 %v2503, %v2505
      %v2507 = vadd.f32 %v2503, %v2506
      %vm2508 = vweird.f32 %v2339
      %vm2509 = vweird.f32 %v2503
      %vm2510 = vmor %vm2508, %vm2509
      %v2511 = vsel %vm2510, %v2503, %v2507
      %v2512 = vand.u32 2147483647, %v2339
      %vm2513 = vcmp.eq.f32.partialorder %v2512, 8.507059e+37
      %v2514 = vand.u32 %v2339, 2147483648
      %v2515 = vor.u32 1.1754944e-38, %v2514
      %v2516 = vsel %vm2513, %v2515, %v2511
      %v2517 = vmul.f32 %v2414, %v2516
      %v2518 = vrcp.pop %v2341
      %v2519 = vmul.f32 %v2341, %v2518
      %v2520 = vsub.f32 1.0, %v2519
      %v2521 = vmul.f32 %v2518, %v2520
      %v2522 = vadd.f32 %v2518, %v2521
      %vm2523 = vweird.f32 %v2341
      %vm2524 = vweird.f32 %v2518
      %vm2525 = vmor %vm2523, %vm2524
      %v2526 = vsel %vm2525, %v2518, %v2522
      %v2527 = vand.u32 2147483647, %v2341
      %vm2528 = vcmp.eq.f32.partialorder %v2527, 8.507059e+37
      %v2529 = vand.u32 %v2341, 2147483648
      %v2530 = vor.u32 1.1754944e-38, %v2529
      %v2531 = vsel %vm2528, %v2530, %v2526
      %v2532 = vmul.f32 %v2416, %v2531
      %v2533 = vrcp.pop %v2343
      %v2534 = vmul.f32 %v2343, %v2533
      %v2535 = vsub.f32 1.0, %v2534
      %v2536 = vmul.f32 %v2533, %v2535
      %v2537 = vadd.f32 %v2533, %v2536
      %vm2538 = vweird.f32 %v2343
      %vm2539 = vweird.f32 %v2533
      %vm2540 = vmor %vm2538, %vm2539
      %v2541 = vsel %vm2540, %v2533, %v2537
      %v2542 = vand.u32 2147483647, %v2343
      %vm2543 = vcmp.eq.f32.partialorder %v2542, 8.507059e+37
      %v2544 = vand.u32 %v2343, 2147483648
      %v2545 = vor.u32 1.1754944e-38, %v2544
      %v2546 = vsel %vm2543, %v2545, %v2541
      %v2547 = vmul.f32 %v2419, %v2546
      %v2548 = vrcp.pop %v2345
      %v2549 = vmul.f32 %v2345, %v2548
      %v2550 = vsub.f32 1.0, %v2549
      %v2551 = vmul.f32 %v2548, %v2550
      %v2552 = vadd.f32 %v2548, %v2551
      %vm2553 = vweird.f32 %v2345
      %vm2554 = vweird.f32 %v2548
      %vm2555 = vmor %vm2553, %vm2554
      %v2556 = vsel %vm2555, %v2548, %v2552
      %v2557 = vand.u32 2147483647, %v2345
      %vm2558 = vcmp.eq.f32.partialorder %v2557, 8.507059e+37
      %v2559 = vand.u32 %v2345, 2147483648
      %v2560 = vor.u32 1.1754944e-38, %v2559
      %v2561 = vsel %vm2558, %v2560, %v2556
      %v2562 = vmul.f32 %v2421, %v2561
      %v2563 = vrcp.pop %v2347
      %v2564 = vmul.f32 %v2347, %v2563
      %v2565 = vsub.f32 1.0, %v2564
      %v2566 = vmul.f32 %v2563, %v2565
      %v2567 = vadd.f32 %v2563, %v2566
      %vm2568 = vweird.f32 %v2347
      %vm2569 = vweird.f32 %v2563
      %vm2570 = vmor %vm2568, %vm2569
      %v2571 = vsel %vm2570, %v2563, %v2567
      %v2572 = vand.u32 2147483647, %v2347
      %vm2573 = vcmp.eq.f32.partialorder %v2572, 8.507059e+37
      %v2574 = vand.u32 %v2347, 2147483648
      %v2575 = vor.u32 1.1754944e-38, %v2574
      %v2576 = vsel %vm2573, %v2575, %v2571
      %v2577 = vmul.f32 %v2424, %v2576
      %v2578 = vrcp.pop %v2349
      %v2579 = vmul.f32 %v2349, %v2578
      %v2580 = vsub.f32 1.0, %v2579
      %v2581 = vmul.f32 %v2578, %v2580
      %v2582 = vadd.f32 %v2578, %v2581
      %vm2583 = vweird.f32 %v2349
      %vm2584 = vweird.f32 %v2578
      %vm2585 = vmor %vm2583, %vm2584
      %v2586 = vsel %vm2585, %v2578, %v2582
      %v2587 = vand.u32 2147483647, %v2349
      %vm2588 = vcmp.eq.f32.partialorder %v2587, 8.507059e+37
      %v2589 = vand.u32 %v2349, 2147483648
      %v2590 = vor.u32 1.1754944e-38, %v2589
      %v2591 = vsel %vm2588, %v2590, %v2586
      %v2592 = vmul.f32 %v2426, %v2591
      %v2593 = vrcp.pop %v2351
      %v2594 = vmul.f32 %v2351, %v2593
      %v2595 = vsub.f32 1.0, %v2594
      %v2596 = vmul.f32 %v2593, %v2595
      %v2597 = vadd.f32 %v2593, %v2596
      %vm2598 = vweird.f32 %v2351
      %vm2599 = vweird.f32 %v2593
      %vm2600 = vmor %vm2598, %vm2599
      %v2601 = vsel %vm2600, %v2593, %v2597
      %v2602 = vand.u32 2147483647, %v2351
      %vm2603 = vcmp.eq.f32.partialorder %v2602, 8.507059e+37
      %v2604 = vand.u32 %v2351, 2147483648
      %v2605 = vor.u32 1.1754944e-38, %v2604
      %v2606 = vsel %vm2603, %v2605, %v2601
      %v2607 = vmul.f32 %v2429, %v2606
      %v2608 = vrcp.pop %v2353
      %v2609 = vmul.f32 %v2353, %v2608
      %v2610 = vsub.f32 1.0, %v2609
      %v2611 = vmul.f32 %v2608, %v2610
      %v2612 = vadd.f32 %v2608, %v2611
      %vm2613 = vweird.f32 %v2353
      %vm2614 = vweird.f32 %v2608
      %vm2615 = vmor %vm2613, %vm2614
      %v2616 = vsel %vm2615, %v2608, %v2612
      %v2617 = vand.u32 2147483647, %v2353
      %vm2618 = vcmp.eq.f32.partialorder %v2617, 8.507059e+37
      %v2619 = vand.u32 %v2353, 2147483648
      %v2620 = vor.u32 1.1754944e-38, %v2619
      %v2621 = vsel %vm2618, %v2620, %v2616
      %v2622 = vmul.f32 %v2431, %v2621
      %v2623 = vrcp.pop %v2355
      %v2624 = vmul.f32 %v2355, %v2623
      %v2625 = vsub.f32 1.0, %v2624
      %v2626 = vmul.f32 %v2623, %v2625
      %v2627 = vadd.f32 %v2623, %v2626
      %vm2628 = vweird.f32 %v2355
      %vm2629 = vweird.f32 %v2623
      %vm2630 = vmor %vm2628, %vm2629
      %v2631 = vsel %vm2630, %v2623, %v2627
      %v2632 = vand.u32 2147483647, %v2355
      %vm2633 = vcmp.eq.f32.partialorder %v2632, 8.507059e+37
      %v2634 = vand.u32 %v2355, 2147483648
      %v2635 = vor.u32 1.1754944e-38, %v2634
      %v2636 = vsel %vm2633, %v2635, %v2631
      %v2637 = vmul.f32 %v2434, %v2636
      %v2638 = vrcp.pop %v2357
      %v2639 = vmul.f32 %v2357, %v2638
      %v2640 = vsub.f32 1.0, %v2639
      %v2641 = vmul.f32 %v2638, %v2640
      %v2642 = vadd.f32 %v2638, %v2641
      %vm2643 = vweird.f32 %v2357
      %vm2644 = vweird.f32 %v2638
      %vm2645 = vmor %vm2643, %vm2644
      %v2646 = vsel %vm2645, %v2638, %v2642
      %v2647 = vand.u32 2147483647, %v2357
      %vm2648 = vcmp.eq.f32.partialorder %v2647, 8.507059e+37
      %v2649 = vand.u32 %v2357, 2147483648
      %v2650 = vor.u32 1.1754944e-38, %v2649
      %v2651 = vsel %vm2648, %v2650, %v2646
      %v2652 = vmul.f32 %v2436, %v2651
      %v2653 = vrcp.pop %v2359
      %v2654 = vmul.f32 %v2359, %v2653
      %v2655 = vsub.f32 1.0, %v2654
      %v2656 = vmul.f32 %v2653, %v2655
      %v2657 = vadd.f32 %v2653, %v2656
      %vm2658 = vweird.f32 %v2359
      %vm2659 = vweird.f32 %v2653
      %vm2660 = vmor %vm2658, %vm2659
      %v2661 = vsel %vm2660, %v2653, %v2657
      %v2662 = vand.u32 2147483647, %v2359
      %vm2663 = vcmp.eq.f32.partialorder %v2662, 8.507059e+37
      %v2664 = vand.u32 %v2359, 2147483648
      %v2665 = vor.u32 1.1754944e-38, %v2664
      %v2666 = vsel %vm2663, %v2665, %v2661
      %v2667 = vmul.f32 %v2439, %v2666
      %v2668 = vrcp.pop %v2361
      %v2669 = vmul.f32 %v2361, %v2668
      %v2670 = vsub.f32 1.0, %v2669
      %v2671 = vmul.f32 %v2668, %v2670
      %v2672 = vadd.f32 %v2668, %v2671
      %vm2673 = vweird.f32 %v2361
      %vm2674 = vweird.f32 %v2668
      %vm2675 = vmor %vm2673, %vm2674
      %v2676 = vsel %vm2675, %v2668, %v2672
      %v2677 = vand.u32 2147483647, %v2361
      %vm2678 = vcmp.eq.f32.partialorder %v2677, 8.507059e+37
      %v2679 = vand.u32 %v2361, 2147483648
      %v2680 = vor.u32 1.1754944e-38, %v2679
      %v2681 = vsel %vm2678, %v2680, %v2676
      %v2682 = vmul.f32 %v2441, %v2681
      %2683 = vrot.lane.b32.xlu0 %v330, 64
      %v2684 = vpop.permute.xlu0 %2683
      %2685 = vrot.lane.b32.xlu0 %v331, 64
      %v2686 = vpop.permute.xlu0 %2685
      %2687 = vrot.lane.b32.xlu0 %v332, 64
      %v2688 = vpop.permute.xlu0 %2687
      %2689 = vrot.lane.b32.xlu0 %v333, 64
      %v2690 = vpop.permute.xlu0 %2689
      %2691 = vrot.lane.b32.xlu0 %v334, 64
      %v2692 = vpop.permute.xlu0 %2691
      %2693 = vrot.lane.b32.xlu0 %v335, 64
      %v2694 = vpop.permute.xlu0 %2693
      %2695 = vrot.lane.b32.xlu0 %v336, 64
      %v2696 = vpop.permute.xlu0 %2695
      %2697 = vrot.lane.b32.xlu0 %v337, 64
      %v2698 = vpop.permute.xlu0 %2697
      %2699 = vrot.lane.b32.xlu0 %v370, 64
      %v2700 = vpop.permute.xlu0 %2699
      %2701 = vrot.lane.b32.xlu0 %v371, 64
      %v2702 = vpop.permute.xlu0 %2701
      %2703 = vrot.lane.b32.xlu0 %v372, 64
      %v2704 = vpop.permute.xlu0 %2703
      %2705 = vrot.lane.b32.xlu0 %v373, 64
      %v2706 = vpop.permute.xlu0 %2705
      %2707 = vrot.lane.b32.xlu0 %v374, 64
      %v2708 = vpop.permute.xlu0 %2707
      %2709 = vrot.lane.b32.xlu0 %v375, 64
      %v2710 = vpop.permute.xlu0 %2709
      %2711 = vrot.lane.b32.xlu0 %v376, 64
      %v2712 = vpop.permute.xlu0 %2711
      %2713 = vrot.lane.b32.xlu0 %v377, 64
      %v2714 = vpop.permute.xlu0 %2713
      %v2716 = vsel %vm378, %v2684, 0
      %v2719 = vsel %vm378, %v2686, 0
      %v2722 = vsel %vm378, %v2688, 0
      %v2725 = vsel %vm378, %v2690, 0
      %v2728 = vsel %vm378, %v2692, 0
      %v2731 = vsel %vm378, %v2694, 0
      %v2734 = vsel %vm378, %v2696, 0
      %v2737 = vsel %vm378, %v2698, 0
      %v2740 = vsel %vm378, %v2700, 0
      %v2743 = vsel %vm378, %v2702, 0
      %v2746 = vsel %vm378, %v2704, 0
      %v2749 = vsel %vm378, %v2706, 0
      %v2752 = vsel %vm378, %v2708, 0
      %v2755 = vsel %vm378, %v2710, 0
      %v2758 = vsel %vm378, %v2712, 0
      %v2761 = vsel %vm378, %v2714, 0
      %2763 = vmatpush.bf16.xpose.msra.mxu0 %v2761
      %2764 = vmatpush.bf16.xpose.msra.mxu0 %v2758
      %2765 = vmatpush.bf16.xpose.msra.mxu0 %v2755
      %2766 = vmatpush.bf16.xpose.msra.mxu0 %v2752
      %2767 = vmatpush.bf16.xpose.msra.mxu0 %v2749
      %2768 = vmatpush.bf16.xpose.msra.mxu0 %v2746
      %2769 = vmatpush.bf16.xpose.msra.mxu0 %v2743
      %2770 = vmatpush.bf16.xpose.msra.mxu0 %v2740
      %2771 = vmatmul.bf16.gmra.mxu0 %v2716
      %v2772 = vpop.f32.mrf.mxu0
      %v2773 = vadd.f32 0.0, %v2772
      %v2774 = vpop.f32.mrf.mxu0
      %v2775 = vadd.f32 0.0, %v2774
      %2776 = vmatmul.bf16.gmra.mxu0 %v2719
      %v2777 = vpop.f32.mrf.mxu0
      %v2778 = vadd.f32 0.0, %v2777
      %v2779 = vpop.f32.mrf.mxu0
      %v2780 = vadd.f32 0.0, %v2779
      %2781 = vmatmul.bf16.gmra.mxu0 %v2722
      %v2782 = vpop.f32.mrf.mxu0
      %v2783 = vadd.f32 0.0, %v2782
      %v2784 = vpop.f32.mrf.mxu0
      %v2785 = vadd.f32 0.0, %v2784
      %2786 = vmatmul.bf16.gmra.mxu0 %v2725
      %v2787 = vpop.f32.mrf.mxu0
      %v2788 = vadd.f32 0.0, %v2787
      %v2789 = vpop.f32.mrf.mxu0
      %v2790 = vadd.f32 0.0, %v2789
      %2791 = vmatmul.bf16.gmra.mxu0 %v2728
      %v2792 = vpop.f32.mrf.mxu0
      %v2793 = vadd.f32 0.0, %v2792
      %v2794 = vpop.f32.mrf.mxu0
      %v2795 = vadd.f32 0.0, %v2794
      %2796 = vmatmul.bf16.gmra.mxu0 %v2731
      %v2797 = vpop.f32.mrf.mxu0
      %v2798 = vadd.f32 0.0, %v2797
      %v2799 = vpop.f32.mrf.mxu0
      %v2800 = vadd.f32 0.0, %v2799
      %2801 = vmatmul.bf16.gmra.mxu0 %v2734
      %v2802 = vpop.f32.mrf.mxu0
      %v2803 = vadd.f32 0.0, %v2802
      %v2804 = vpop.f32.mrf.mxu0
      %v2805 = vadd.f32 0.0, %v2804
      %2806 = vmatmul.bf16.gmra.mxu0 %v2737
      %v2807 = vpop.f32.mrf.mxu0
      %v2808 = vadd.f32 0.0, %v2807
      %v2809 = vpop.f32.mrf.mxu0
      %v2810 = vadd.f32 0.0, %v2809
      %2811 = vdwg.mxu0
      %v2812 = vmul.f32 %v2773, 0.25
      %v2813 = vmul.f32 %v2775, 0.25
      %v2814 = vmul.f32 %v2778, 0.25
      %v2815 = vmul.f32 %v2780, 0.25
      %v2816 = vmul.f32 %v2783, 0.25
      %v2817 = vmul.f32 %v2785, 0.25
      %v2818 = vmul.f32 %v2788, 0.25
      %v2819 = vmul.f32 %v2790, 0.25
      %v2820 = vmul.f32 %v2793, 0.25
      %v2821 = vmul.f32 %v2795, 0.25
      %v2822 = vmul.f32 %v2798, 0.25
      %v2823 = vmul.f32 %v2800, 0.25
      %v2824 = vmul.f32 %v2803, 0.25
      %v2825 = vmul.f32 %v2805, 0.25
      %v2826 = vmul.f32 %v2808, 0.25
      %v2827 = vmul.f32 %v2810, 0.25
      %2828 = vmax.xlane.f32.xlu0 %v2812
      %v2829 = vpop.xlane.xlu0 %2828
      %2830 = vmax.xlane.f32.xlu0 %v2813
      %v2831 = vpop.xlane.xlu0 %2830
      %2832 = vmax.xlane.f32.xlu0 %v2814
      %v2833 = vpop.xlane.xlu0 %2832
      %2834 = vmax.xlane.f32.xlu0 %v2815
      %v2835 = vpop.xlane.xlu0 %2834
      %2836 = vmax.xlane.f32.xlu0 %v2816
      %v2837 = vpop.xlane.xlu0 %2836
      %2838 = vmax.xlane.f32.xlu0 %v2817
      %v2839 = vpop.xlane.xlu0 %2838
      %2840 = vmax.xlane.f32.xlu0 %v2818
      %v2841 = vpop.xlane.xlu0 %2840
      %2842 = vmax.xlane.f32.xlu0 %v2819
      %v2843 = vpop.xlane.xlu0 %2842
      %2844 = vmax.xlane.f32.xlu0 %v2820
      %v2845 = vpop.xlane.xlu0 %2844
      %2846 = vmax.xlane.f32.xlu0 %v2821
      %v2847 = vpop.xlane.xlu0 %2846
      %2848 = vmax.xlane.f32.xlu0 %v2822
      %v2849 = vpop.xlane.xlu0 %2848
      %2850 = vmax.xlane.f32.xlu0 %v2823
      %v2851 = vpop.xlane.xlu0 %2850
      %2852 = vmax.xlane.f32.xlu0 %v2824
      %v2853 = vpop.xlane.xlu0 %2852
      %2854 = vmax.xlane.f32.xlu0 %v2825
      %v2855 = vpop.xlane.xlu0 %2854
      %2856 = vmax.xlane.f32.xlu0 %v2826
      %v2857 = vpop.xlane.xlu0 %2856
      %2858 = vmax.xlane.f32.xlu0 %v2827
      %v2859 = vpop.xlane.xlu0 %2858
      %v2860 = vsub.f32 %v2812, %v2829
      %v2861 = vsub.f32 %v2813, %v2831
      %v2862 = vsub.f32 %v2814, %v2833
      %v2863 = vsub.f32 %v2815, %v2835
      %v2864 = vsub.f32 %v2816, %v2837
      %v2865 = vsub.f32 %v2817, %v2839
      %v2866 = vsub.f32 %v2818, %v2841
      %v2867 = vsub.f32 %v2819, %v2843
      %v2868 = vsub.f32 %v2820, %v2845
      %v2869 = vsub.f32 %v2821, %v2847
      %v2870 = vsub.f32 %v2822, %v2849
      %v2871 = vsub.f32 %v2823, %v2851
      %v2872 = vsub.f32 %v2824, %v2853
      %v2873 = vsub.f32 %v2825, %v2855
      %v2874 = vsub.f32 %v2826, %v2857
      %v2875 = vsub.f32 %v2827, %v2859
      %v2876 = vmul.f32 %v2860, 1.442695
      %v2877 = vpow.pop %v2876
      %v2878 = vmul.f32 %v2861, 1.442695
      %v2879 = vpow.pop %v2878
      %v2880 = vmul.f32 %v2862, 1.442695
      %v2881 = vpow.pop %v2880
      %v2882 = vmul.f32 %v2863, 1.442695
      %v2883 = vpow.pop %v2882
      %v2884 = vmul.f32 %v2864, 1.442695
      %v2885 = vpow.pop %v2884
      %v2886 = vmul.f32 %v2865, 1.442695
      %v2887 = vpow.pop %v2886
      %v2888 = vmul.f32 %v2866, 1.442695
      %v2889 = vpow.pop %v2888
      %v2890 = vmul.f32 %v2867, 1.442695
      %v2891 = vpow.pop %v2890
      %v2892 = vmul.f32 %v2868, 1.442695
      %v2893 = vpow.pop %v2892
      %v2894 = vmul.f32 %v2869, 1.442695
      %v2895 = vpow.pop %v2894
      %v2896 = vmul.f32 %v2870, 1.442695
      %v2897 = vpow.pop %v2896
      %v2898 = vmul.f32 %v2871, 1.442695
      %v2899 = vpow.pop %v2898
      %v2900 = vmul.f32 %v2872, 1.442695
      %v2901 = vpow.pop %v2900
      %v2902 = vmul.f32 %v2873, 1.442695
      %v2903 = vpow.pop %v2902
      %v2904 = vmul.f32 %v2874, 1.442695
      %v2905 = vpow.pop %v2904
      %v2906 = vmul.f32 %v2875, 1.442695
      %v2907 = vpow.pop %v2906
      %2908 = vadd.xlane.f32.xlu0 %v2877
      %v2909 = vpop.xlane.xlu0 %2908
      %2910 = vadd.xlane.f32.xlu0 %v2879
      %v2911 = vpop.xlane.xlu0 %2910
      %2912 = vadd.xlane.f32.xlu0 %v2881
      %v2913 = vpop.xlane.xlu0 %2912
      %2914 = vadd.xlane.f32.xlu0 %v2883
      %v2915 = vpop.xlane.xlu0 %2914
      %2916 = vadd.xlane.f32.xlu0 %v2885
      %v2917 = vpop.xlane.xlu0 %2916
      %2918 = vadd.xlane.f32.xlu0 %v2887
      %v2919 = vpop.xlane.xlu0 %2918
      %2920 = vadd.xlane.f32.xlu0 %v2889
      %v2921 = vpop.xlane.xlu0 %2920
      %2922 = vadd.xlane.f32.xlu0 %v2891
      %v2923 = vpop.xlane.xlu0 %2922
      %2924 = vadd.xlane.f32.xlu0 %v2893
      %v2925 = vpop.xlane.xlu0 %2924
      %2926 = vadd.xlane.f32.xlu0 %v2895
      %v2927 = vpop.xlane.xlu0 %2926
      %2928 = vadd.xlane.f32.xlu0 %v2897
      %v2929 = vpop.xlane.xlu0 %2928
      %2930 = vadd.xlane.f32.xlu0 %v2899
      %v2931 = vpop.xlane.xlu0 %2930
      %2932 = vadd.xlane.f32.xlu0 %v2901
      %v2933 = vpop.xlane.xlu0 %2932
      %2934 = vadd.xlane.f32.xlu0 %v2903
      %v2935 = vpop.xlane.xlu0 %2934
      %2936 = vadd.xlane.f32.xlu0 %v2905
      %v2937 = vpop.xlane.xlu0 %2936
      %2938 = vadd.xlane.f32.xlu0 %v2907
      %v2939 = vpop.xlane.xlu0 %2938
      %v2940 = vpack.c.bf16 %v2879, %v2877
      %v2941 = vpack.c.bf16 %v2883, %v2881
      %v2942 = vpack.c.bf16 %v2887, %v2885
      %v2943 = vpack.c.bf16 %v2891, %v2889
      %v2944 = vpack.c.bf16 %v2895, %v2893
      %v2945 = vpack.c.bf16 %v2899, %v2897
      %v2946 = vpack.c.bf16 %v2903, %v2901
      %v2947 = vpack.c.bf16 %v2907, %v2905
      %2948 = vrot.lane.b32.xlu0 %v644, 64
      %v2949 = vpop.permute.xlu0 %2948
      %2950 = vrot.lane.b32.xlu0 %v645, 64
      %v2951 = vpop.permute.xlu0 %2950
      %2952 = vrot.lane.b32.xlu0 %v646, 64
      %v2953 = vpop.permute.xlu0 %2952
      %2954 = vrot.lane.b32.xlu0 %v647, 64
      %v2955 = vpop.permute.xlu0 %2954
      %2956 = vrot.lane.b32.xlu0 %v648, 64
      %v2957 = vpop.permute.xlu0 %2956
      %2958 = vrot.lane.b32.xlu0 %v649, 64
      %v2959 = vpop.permute.xlu0 %2958
      %2960 = vrot.lane.b32.xlu0 %v650, 64
      %v2961 = vpop.permute.xlu0 %2960
      %2962 = vrot.lane.b32.xlu0 %v651, 64
      %v2963 = vpop.permute.xlu0 %2962
      %2972 = vmatpush.bf16.msra.mxu0 %v2963
      %2973 = vmatpush.bf16.msra.mxu0 %v2961
      %2974 = vmatpush.bf16.msra.mxu0 %v2959
      %2975 = vmatpush.bf16.msra.mxu0 %v2957
      %2976 = vmatpush.bf16.msra.mxu0 %v2955
      %2977 = vmatpush.bf16.msra.mxu0 %v2953
      %2978 = vmatpush.bf16.msra.mxu0 %v2951
      %2979 = vmatpush.bf16.msra.mxu0 %v2949
      %2980 = vmatmul.bf16.gmra.mxu0 %v2940
      %v2981 = vpop.f32.mrf.mxu0
      %v2982 = vadd.f32 0.0, %v2981
      %v2983 = vpop.f32.mrf.mxu0
      %v2984 = vadd.f32 0.0, %v2983
      %2985 = vmatmul.bf16.gmra.mxu0 %v2941
      %v2986 = vpop.f32.mrf.mxu0
      %v2987 = vadd.f32 0.0, %v2986
      %v2988 = vpop.f32.mrf.mxu0
      %v2989 = vadd.f32 0.0, %v2988
      %2990 = vmatmul.bf16.gmra.mxu0 %v2942
      %v2991 = vpop.f32.mrf.mxu0
      %v2992 = vadd.f32 0.0, %v2991
      %v2993 = vpop.f32.mrf.mxu0
      %v2994 = vadd.f32 0.0, %v2993
      %2995 = vmatmul.bf16.gmra.mxu0 %v2943
      %v2996 = vpop.f32.mrf.mxu0
      %v2997 = vadd.f32 0.0, %v2996
      %v2998 = vpop.f32.mrf.mxu0
      %v2999 = vadd.f32 0.0, %v2998
      %3000 = vmatmul.bf16.gmra.mxu0 %v2944
      %v3001 = vpop.f32.mrf.mxu0
      %v3002 = vadd.f32 0.0, %v3001
      %v3003 = vpop.f32.mrf.mxu0
      %v3004 = vadd.f32 0.0, %v3003
      %3005 = vmatmul.bf16.gmra.mxu0 %v2945
      %v3006 = vpop.f32.mrf.mxu0
      %v3007 = vadd.f32 0.0, %v3006
      %v3008 = vpop.f32.mrf.mxu0
      %v3009 = vadd.f32 0.0, %v3008
      %3010 = vmatmul.bf16.gmra.mxu0 %v2946
      %v3011 = vpop.f32.mrf.mxu0
      %v3012 = vadd.f32 0.0, %v3011
      %v3013 = vpop.f32.mrf.mxu0
      %v3014 = vadd.f32 0.0, %v3013
      %3015 = vmatmul.bf16.gmra.mxu0 %v2947
      %v3016 = vpop.f32.mrf.mxu0
      %v3017 = vadd.f32 0.0, %v3016
      %v3018 = vpop.f32.mrf.mxu0
      %v3019 = vadd.f32 0.0, %v3018
      %3020 = vdwg.mxu0
      %v3021 = vrcp.pop %v2909
      %v3022 = vmul.f32 %v2909, %v3021
      %v3023 = vsub.f32 1.0, %v3022
      %v3024 = vmul.f32 %v3021, %v3023
      %v3025 = vadd.f32 %v3021, %v3024
      %vm3026 = vweird.f32 %v2909
      %vm3027 = vweird.f32 %v3021
      %vm3028 = vmor %vm3026, %vm3027
      %v3029 = vsel %vm3028, %v3021, %v3025
      %v3030 = vand.u32 2147483647, %v2909
      %vm3031 = vcmp.eq.f32.partialorder %v3030, 8.507059e+37
      %v3032 = vand.u32 %v2909, 2147483648
      %v3033 = vor.u32 1.1754944e-38, %v3032
      %v3034 = vsel %vm3031, %v3033, %v3029
      %v3035 = vmul.f32 %v2982, %v3034
      %v3036 = vrcp.pop %v2911
      %v3037 = vmul.f32 %v2911, %v3036
      %v3038 = vsub.f32 1.0, %v3037
      %v3039 = vmul.f32 %v3036, %v3038
      %v3040 = vadd.f32 %v3036, %v3039
      %vm3041 = vweird.f32 %v2911
      %vm3042 = vweird.f32 %v3036
      %vm3043 = vmor %vm3041, %vm3042
      %v3044 = vsel %vm3043, %v3036, %v3040
      %v3045 = vand.u32 2147483647, %v2911
      %vm3046 = vcmp.eq.f32.partialorder %v3045, 8.507059e+37
      %v3047 = vand.u32 %v2911, 2147483648
      %v3048 = vor.u32 1.1754944e-38, %v3047
      %v3049 = vsel %vm3046, %v3048, %v3044
      %v3050 = vmul.f32 %v2984, %v3049
      %v3051 = vrcp.pop %v2913
      %v3052 = vmul.f32 %v2913, %v3051
      %v3053 = vsub.f32 1.0, %v3052
      %v3054 = vmul.f32 %v3051, %v3053
      %v3055 = vadd.f32 %v3051, %v3054
      %vm3056 = vweird.f32 %v2913
      %vm3057 = vweird.f32 %v3051
      %vm3058 = vmor %vm3056, %vm3057
      %v3059 = vsel %vm3058, %v3051, %v3055
      %v3060 = vand.u32 2147483647, %v2913
      %vm3061 = vcmp.eq.f32.partialorder %v3060, 8.507059e+37
      %v3062 = vand.u32 %v2913, 2147483648
      %v3063 = vor.u32 1.1754944e-38, %v3062
      %v3064 = vsel %vm3061, %v3063, %v3059
      %v3065 = vmul.f32 %v2987, %v3064
      %v3066 = vrcp.pop %v2915
      %v3067 = vmul.f32 %v2915, %v3066
      %v3068 = vsub.f32 1.0, %v3067
      %v3069 = vmul.f32 %v3066, %v3068
      %v3070 = vadd.f32 %v3066, %v3069
      %vm3071 = vweird.f32 %v2915
      %vm3072 = vweird.f32 %v3066
      %vm3073 = vmor %vm3071, %vm3072
      %v3074 = vsel %vm3073, %v3066, %v3070
      %v3075 = vand.u32 2147483647, %v2915
      %vm3076 = vcmp.eq.f32.partialorder %v3075, 8.507059e+37
      %v3077 = vand.u32 %v2915, 2147483648
      %v3078 = vor.u32 1.1754944e-38, %v3077
      %v3079 = vsel %vm3076, %v3078, %v3074
      %v3080 = vmul.f32 %v2989, %v3079
      %v3081 = vrcp.pop %v2917
      %v3082 = vmul.f32 %v2917, %v3081
      %v3083 = vsub.f32 1.0, %v3082
      %v3084 = vmul.f32 %v3081, %v3083
      %v3085 = vadd.f32 %v3081, %v3084
      %vm3086 = vweird.f32 %v2917
      %vm3087 = vweird.f32 %v3081
      %vm3088 = vmor %vm3086, %vm3087
      %v3089 = vsel %vm3088, %v3081, %v3085
      %v3090 = vand.u32 2147483647, %v2917
      %vm3091 = vcmp.eq.f32.partialorder %v3090, 8.507059e+37
      %v3092 = vand.u32 %v2917, 2147483648
      %v3093 = vor.u32 1.1754944e-38, %v3092
      %v3094 = vsel %vm3091, %v3093, %v3089
      %v3095 = vmul.f32 %v2992, %v3094
      %v3096 = vrcp.pop %v2919
      %v3097 = vmul.f32 %v2919, %v3096
      %v3098 = vsub.f32 1.0, %v3097
      %v3099 = vmul.f32 %v3096, %v3098
      %v3100 = vadd.f32 %v3096, %v3099
      %vm3101 = vweird.f32 %v2919
      %vm3102 = vweird.f32 %v3096
      %vm3103 = vmor %vm3101, %vm3102
      %v3104 = vsel %vm3103, %v3096, %v3100
      %v3105 = vand.u32 2147483647, %v2919
      %vm3106 = vcmp.eq.f32.partialorder %v3105, 8.507059e+37
      %v3107 = vand.u32 %v2919, 2147483648
      %v3108 = vor.u32 1.1754944e-38, %v3107
      %v3109 = vsel %vm3106, %v3108, %v3104
      %v3110 = vmul.f32 %v2994, %v3109
      %v3111 = vrcp.pop %v2921
      %v3112 = vmul.f32 %v2921, %v3111
      %v3113 = vsub.f32 1.0, %v3112
      %v3114 = vmul.f32 %v3111, %v3113
      %v3115 = vadd.f32 %v3111, %v3114
      %vm3116 = vweird.f32 %v2921
      %vm3117 = vweird.f32 %v3111
      %vm3118 = vmor %vm3116, %vm3117
      %v3119 = vsel %vm3118, %v3111, %v3115
      %v3120 = vand.u32 2147483647, %v2921
      %vm3121 = vcmp.eq.f32.partialorder %v3120, 8.507059e+37
      %v3122 = vand.u32 %v2921, 2147483648
      %v3123 = vor.u32 1.1754944e-38, %v3122
      %v3124 = vsel %vm3121, %v3123, %v3119
      %v3125 = vmul.f32 %v2997, %v3124
      %v3126 = vrcp.pop %v2923
      %v3127 = vmul.f32 %v2923, %v3126
      %v3128 = vsub.f32 1.0, %v3127
      %v3129 = vmul.f32 %v3126, %v3128
      %v3130 = vadd.f32 %v3126, %v3129
      %vm3131 = vweird.f32 %v2923
      %vm3132 = vweird.f32 %v3126
      %vm3133 = vmor %vm3131, %vm3132
      %v3134 = vsel %vm3133, %v3126, %v3130
      %v3135 = vand.u32 2147483647, %v2923
      %vm3136 = vcmp.eq.f32.partialorder %v3135, 8.507059e+37
      %v3137 = vand.u32 %v2923, 2147483648
      %v3138 = vor.u32 1.1754944e-38, %v3137
      %v3139 = vsel %vm3136, %v3138, %v3134
      %v3140 = vmul.f32 %v2999, %v3139
      %v3141 = vrcp.pop %v2925
      %v3142 = vmul.f32 %v2925, %v3141
      %v3143 = vsub.f32 1.0, %v3142
      %v3144 = vmul.f32 %v3141, %v3143
      %v3145 = vadd.f32 %v3141, %v3144
      %vm3146 = vweird.f32 %v2925
      %vm3147 = vweird.f32 %v3141
      %vm3148 = vmor %vm3146, %vm3147
      %v3149 = vsel %vm3148, %v3141, %v3145
      %v3150 = vand.u32 2147483647, %v2925
      %vm3151 = vcmp.eq.f32.partialorder %v3150, 8.507059e+37
      %v3152 = vand.u32 %v2925, 2147483648
      %v3153 = vor.u32 1.1754944e-38, %v3152
      %v3154 = vsel %vm3151, %v3153, %v3149
      %v3155 = vmul.f32 %v3002, %v3154
      %v3156 = vrcp.pop %v2927
      %v3157 = vmul.f32 %v2927, %v3156
      %v3158 = vsub.f32 1.0, %v3157
      %v3159 = vmul.f32 %v3156, %v3158
      %v3160 = vadd.f32 %v3156, %v3159
      %vm3161 = vweird.f32 %v2927
      %vm3162 = vweird.f32 %v3156
      %vm3163 = vmor %vm3161, %vm3162
      %v3164 = vsel %vm3163, %v3156, %v3160
      %v3165 = vand.u32 2147483647, %v2927
      %vm3166 = vcmp.eq.f32.partialorder %v3165, 8.507059e+37
      %v3167 = vand.u32 %v2927, 2147483648
      %v3168 = vor.u32 1.1754944e-38, %v3167
      %v3169 = vsel %vm3166, %v3168, %v3164
      %v3170 = vmul.f32 %v3004, %v3169
      %v3171 = vrcp.pop %v2929
      %v3172 = vmul.f32 %v2929, %v3171
      %v3173 = vsub.f32 1.0, %v3172
      %v3174 = vmul.f32 %v3171, %v3173
      %v3175 = vadd.f32 %v3171, %v3174
      %vm3176 = vweird.f32 %v2929
      %vm3177 = vweird.f32 %v3171
      %vm3178 = vmor %vm3176, %vm3177
      %v3179 = vsel %vm3178, %v3171, %v3175
      %v3180 = vand.u32 2147483647, %v2929
      %vm3181 = vcmp.eq.f32.partialorder %v3180, 8.507059e+37
      %v3182 = vand.u32 %v2929, 2147483648
      %v3183 = vor.u32 1.1754944e-38, %v3182
      %v3184 = vsel %vm3181, %v3183, %v3179
      %v3185 = vmul.f32 %v3007, %v3184
      %v3186 = vrcp.pop %v2931
      %v3187 = vmul.f32 %v2931, %v3186
      %v3188 = vsub.f32 1.0, %v3187
      %v3189 = vmul.f32 %v3186, %v3188
      %v3190 = vadd.f32 %v3186, %v3189
      %vm3191 = vweird.f32 %v2931
      %vm3192 = vweird.f32 %v3186
      %vm3193 = vmor %vm3191, %vm3192
      %v3194 = vsel %vm3193, %v3186, %v3190
      %v3195 = vand.u32 2147483647, %v2931
      %vm3196 = vcmp.eq.f32.partialorder %v3195, 8.507059e+37
      %v3197 = vand.u32 %v2931, 2147483648
      %v3198 = vor.u32 1.1754944e-38, %v3197
      %v3199 = vsel %vm3196, %v3198, %v3194
      %v3200 = vmul.f32 %v3009, %v3199
      %v3201 = vrcp.pop %v2933
      %v3202 = vmul.f32 %v2933, %v3201
      %v3203 = vsub.f32 1.0, %v3202
      %v3204 = vmul.f32 %v3201, %v3203
      %v3205 = vadd.f32 %v3201, %v3204
      %vm3206 = vweird.f32 %v2933
      %vm3207 = vweird.f32 %v3201
      %vm3208 = vmor %vm3206, %vm3207
      %v3209 = vsel %vm3208, %v3201, %v3205
      %v3210 = vand.u32 2147483647, %v2933
      %vm3211 = vcmp.eq.f32.partialorder %v3210, 8.507059e+37
      %v3212 = vand.u32 %v2933, 2147483648
      %v3213 = vor.u32 1.1754944e-38, %v3212
      %v3214 = vsel %vm3211, %v3213, %v3209
      %v3215 = vmul.f32 %v3012, %v3214
      %v3216 = vrcp.pop %v2935
      %v3217 = vmul.f32 %v2935, %v3216
      %v3218 = vsub.f32 1.0, %v3217
      %v3219 = vmul.f32 %v3216, %v3218
      %v3220 = vadd.f32 %v3216, %v3219
      %vm3221 = vweird.f32 %v2935
      %vm3222 = vweird.f32 %v3216
      %vm3223 = vmor %vm3221, %vm3222
      %v3224 = vsel %vm3223, %v3216, %v3220
      %v3225 = vand.u32 2147483647, %v2935
      %vm3226 = vcmp.eq.f32.partialorder %v3225, 8.507059e+37
      %v3227 = vand.u32 %v2935, 2147483648
      %v3228 = vor.u32 1.1754944e-38, %v3227
      %v3229 = vsel %vm3226, %v3228, %v3224
      %v3230 = vmul.f32 %v3014, %v3229
      %v3231 = vrcp.pop %v2937
      %v3232 = vmul.f32 %v2937, %v3231
      %v3233 = vsub.f32 1.0, %v3232
      %v3234 = vmul.f32 %v3231, %v3233
      %v3235 = vadd.f32 %v3231, %v3234
      %vm3236 = vweird.f32 %v2937
      %vm3237 = vweird.f32 %v3231
      %vm3238 = vmor %vm3236, %vm3237
      %v3239 = vsel %vm3238, %v3231, %v3235
      %v3240 = vand.u32 2147483647, %v2937
      %vm3241 = vcmp.eq.f32.partialorder %v3240, 8.507059e+37
      %v3242 = vand.u32 %v2937, 2147483648
      %v3243 = vor.u32 1.1754944e-38, %v3242
      %v3244 = vsel %vm3241, %v3243, %v3239
      %v3245 = vmul.f32 %v3017, %v3244
      %v3246 = vrcp.pop %v2939
      %v3247 = vmul.f32 %v2939, %v3246
      %v3248 = vsub.f32 1.0, %v3247
      %v3249 = vmul.f32 %v3246, %v3248
      %v3250 = vadd.f32 %v3246, %v3249
      %vm3251 = vweird.f32 %v2939
      %vm3252 = vweird.f32 %v3246
      %vm3253 = vmor %vm3251, %vm3252
      %v3254 = vsel %vm3253, %v3246, %v3250
      %v3255 = vand.u32 2147483647, %v2939
      %vm3256 = vcmp.eq.f32.partialorder %v3255, 8.507059e+37
      %v3257 = vand.u32 %v2939, 2147483648
      %v3258 = vor.u32 1.1754944e-38, %v3257
      %v3259 = vsel %vm3256, %v3258, %v3254
      %v3260 = vmul.f32 %v3019, %v3259
      %3261 = vrot.lane.b32.xlu0 %v330, 48
      %v3262 = vpop.permute.xlu0 %3261
      %3263 = vrot.lane.b32.xlu0 %v331, 48
      %v3264 = vpop.permute.xlu0 %3263
      %3265 = vrot.lane.b32.xlu0 %v332, 48
      %v3266 = vpop.permute.xlu0 %3265
      %3267 = vrot.lane.b32.xlu0 %v333, 48
      %v3268 = vpop.permute.xlu0 %3267
      %3269 = vrot.lane.b32.xlu0 %v334, 48
      %v3270 = vpop.permute.xlu0 %3269
      %3271 = vrot.lane.b32.xlu0 %v335, 48
      %v3272 = vpop.permute.xlu0 %3271
      %3273 = vrot.lane.b32.xlu0 %v336, 48
      %v3274 = vpop.permute.xlu0 %3273
      %3275 = vrot.lane.b32.xlu0 %v337, 48
      %v3276 = vpop.permute.xlu0 %3275
      %3277 = vrot.lane.b32.xlu0 %v370, 48
      %v3278 = vpop.permute.xlu0 %3277
      %3279 = vrot.lane.b32.xlu0 %v371, 48
      %v3280 = vpop.permute.xlu0 %3279
      %3281 = vrot.lane.b32.xlu0 %v372, 48
      %v3282 = vpop.permute.xlu0 %3281
      %3283 = vrot.lane.b32.xlu0 %v373, 48
      %v3284 = vpop.permute.xlu0 %3283
      %3285 = vrot.lane.b32.xlu0 %v374, 48
      %v3286 = vpop.permute.xlu0 %3285
      %3287 = vrot.lane.b32.xlu0 %v375, 48
      %v3288 = vpop.permute.xlu0 %3287
      %3289 = vrot.lane.b32.xlu0 %v376, 48
      %v3290 = vpop.permute.xlu0 %3289
      %3291 = vrot.lane.b32.xlu0 %v377, 48
      %v3292 = vpop.permute.xlu0 %3291
      %v3294 = vsel %vm378, %v3262, 0
      %v3297 = vsel %vm378, %v3264, 0
      %v3300 = vsel %vm378, %v3266, 0
      %v3303 = vsel %vm378, %v3268, 0
      %v3306 = vsel %vm378, %v3270, 0
      %v3309 = vsel %vm378, %v3272, 0
      %v3312 = vsel %vm378, %v3274, 0
      %v3315 = vsel %vm378, %v3276, 0
      %v3318 = vsel %vm378, %v3278, 0
      %v3321 = vsel %vm378, %v3280, 0
      %v3324 = vsel %vm378, %v3282, 0
      %v3327 = vsel %vm378, %v3284, 0
      %v3330 = vsel %vm378, %v3286, 0
      %v3333 = vsel %vm378, %v3288, 0
      %v3336 = vsel %vm378, %v3290, 0
      %v3339 = vsel %vm378, %v3292, 0
      %3341 = vmatpush.bf16.xpose.msra.mxu0 %v3339
      %3342 = vmatpush.bf16.xpose.msra.mxu0 %v3336
      %3343 = vmatpush.bf16.xpose.msra.mxu0 %v3333
      %3344 = vmatpush.bf16.xpose.msra.mxu0 %v3330
      %3345 = vmatpush.bf16.xpose.msra.mxu0 %v3327
      %3346 = vmatpush.bf16.xpose.msra.mxu0 %v3324
      %3347 = vmatpush.bf16.xpose.msra.mxu0 %v3321
      %3348 = vmatpush.bf16.xpose.msra.mxu0 %v3318
      %3349 = vmatmul.bf16.gmra.mxu0 %v3294
      %v3350 = vpop.f32.mrf.mxu0
      %v3351 = vadd.f32 0.0, %v3350
      %v3352 = vpop.f32.mrf.mxu0
      %v3353 = vadd.f32 0.0, %v3352
      %3354 = vmatmul.bf16.gmra.mxu0 %v3297
      %v3355 = vpop.f32.mrf.mxu0
      %v3356 = vadd.f32 0.0, %v3355
      %v3357 = vpop.f32.mrf.mxu0
      %v3358 = vadd.f32 0.0, %v3357
      %3359 = vmatmul.bf16.gmra.mxu0 %v3300
      %v3360 = vpop.f32.mrf.mxu0
      %v3361 = vadd.f32 0.0, %v3360
      %v3362 = vpop.f32.mrf.mxu0
      %v3363 = vadd.f32 0.0, %v3362
      %3364 = vmatmul.bf16.gmra.mxu0 %v3303
      %v3365 = vpop.f32.mrf.mxu0
      %v3366 = vadd.f32 0.0, %v3365
      %v3367 = vpop.f32.mrf.mxu0
      %v3368 = vadd.f32 0.0, %v3367
      %3369 = vmatmul.bf16.gmra.mxu0 %v3306
      %v3370 = vpop.f32.mrf.mxu0
      %v3371 = vadd.f32 0.0, %v3370
      %v3372 = vpop.f32.mrf.mxu0
      %v3373 = vadd.f32 0.0, %v3372
      %3374 = vmatmul.bf16.gmra.mxu0 %v3309
      %v3375 = vpop.f32.mrf.mxu0
      %v3376 = vadd.f32 0.0, %v3375
      %v3377 = vpop.f32.mrf.mxu0
      %v3378 = vadd.f32 0.0, %v3377
      %3379 = vmatmul.bf16.gmra.mxu0 %v3312
      %v3380 = vpop.f32.mrf.mxu0
      %v3381 = vadd.f32 0.0, %v3380
      %v3382 = vpop.f32.mrf.mxu0
      %v3383 = vadd.f32 0.0, %v3382
      %3384 = vmatmul.bf16.gmra.mxu0 %v3315
      %v3385 = vpop.f32.mrf.mxu0
      %v3386 = vadd.f32 0.0, %v3385
      %v3387 = vpop.f32.mrf.mxu0
      %v3388 = vadd.f32 0.0, %v3387
      %3389 = vdwg.mxu0
      %v3390 = vmul.f32 %v3351, 0.25
      %v3391 = vmul.f32 %v3353, 0.25
      %v3392 = vmul.f32 %v3356, 0.25
      %v3393 = vmul.f32 %v3358, 0.25
      %v3394 = vmul.f32 %v3361, 0.25
      %v3395 = vmul.f32 %v3363, 0.25
      %v3396 = vmul.f32 %v3366, 0.25
      %v3397 = vmul.f32 %v3368, 0.25
      %v3398 = vmul.f32 %v3371, 0.25
      %v3399 = vmul.f32 %v3373, 0.25
      %v3400 = vmul.f32 %v3376, 0.25
      %v3401 = vmul.f32 %v3378, 0.25
      %v3402 = vmul.f32 %v3381, 0.25
      %v3403 = vmul.f32 %v3383, 0.25
      %v3404 = vmul.f32 %v3386, 0.25
      %v3405 = vmul.f32 %v3388, 0.25
      %3406 = vmax.xlane.f32.xlu0 %v3390
      %v3407 = vpop.xlane.xlu0 %3406
      %3408 = vmax.xlane.f32.xlu0 %v3391
      %v3409 = vpop.xlane.xlu0 %3408
      %3410 = vmax.xlane.f32.xlu0 %v3392
      %v3411 = vpop.xlane.xlu0 %3410
      %3412 = vmax.xlane.f32.xlu0 %v3393
      %v3413 = vpop.xlane.xlu0 %3412
      %3414 = vmax.xlane.f32.xlu0 %v3394
      %v3415 = vpop.xlane.xlu0 %3414
      %3416 = vmax.xlane.f32.xlu0 %v3395
      %v3417 = vpop.xlane.xlu0 %3416
      %3418 = vmax.xlane.f32.xlu0 %v3396
      %v3419 = vpop.xlane.xlu0 %3418
      %3420 = vmax.xlane.f32.xlu0 %v3397
      %v3421 = vpop.xlane.xlu0 %3420
      %3422 = vmax.xlane.f32.xlu0 %v3398
      %v3423 = vpop.xlane.xlu0 %3422
      %3424 = vmax.xlane.f32.xlu0 %v3399
      %v3425 = vpop.xlane.xlu0 %3424
      %3426 = vmax.xlane.f32.xlu0 %v3400
      %v3427 = vpop.xlane.xlu0 %3426
      %3428 = vmax.xlane.f32.xlu0 %v3401
      %v3429 = vpop.xlane.xlu0 %3428
      %3430 = vmax.xlane.f32.xlu0 %v3402
      %v3431 = vpop.xlane.xlu0 %3430
      %3432 = vmax.xlane.f32.xlu0 %v3403
      %v3433 = vpop.xlane.xlu0 %3432
      %3434 = vmax.xlane.f32.xlu0 %v3404
      %v3435 = vpop.xlane.xlu0 %3434
      %3436 = vmax.xlane.f32.xlu0 %v3405
      %v3437 = vpop.xlane.xlu0 %3436
      %v3438 = vsub.f32 %v3390, %v3407
      %v3439 = vsub.f32 %v3391, %v3409
      %v3440 = vsub.f32 %v3392, %v3411
      %v3441 = vsub.f32 %v3393, %v3413
      %v3442 = vsub.f32 %v3394, %v3415
      %v3443 = vsub.f32 %v3395, %v3417
      %v3444 = vsub.f32 %v3396, %v3419
      %v3445 = vsub.f32 %v3397, %v3421
      %v3446 = vsub.f32 %v3398, %v3423
      %v3447 = vsub.f32 %v3399, %v3425
      %v3448 = vsub.f32 %v3400, %v3427
      %v3449 = vsub.f32 %v3401, %v3429
      %v3450 = vsub.f32 %v3402, %v3431
      %v3451 = vsub.f32 %v3403, %v3433
      %v3452 = vsub.f32 %v3404, %v3435
      %v3453 = vsub.f32 %v3405, %v3437
      %v3454 = vmul.f32 %v3438, 1.442695
      %v3455 = vpow.pop %v3454
      %v3456 = vmul.f32 %v3439, 1.442695
      %v3457 = vpow.pop %v3456
      %v3458 = vmul.f32 %v3440, 1.442695
      %v3459 = vpow.pop %v3458
      %v3460 = vmul.f32 %v3441, 1.442695
      %v3461 = vpow.pop %v3460
      %v3462 = vmul.f32 %v3442, 1.442695
      %v3463 = vpow.pop %v3462
      %v3464 = vmul.f32 %v3443, 1.442695
      %v3465 = vpow.pop %v3464
      %v3466 = vmul.f32 %v3444, 1.442695
      %v3467 = vpow.pop %v3466
      %v3468 = vmul.f32 %v3445, 1.442695
      %v3469 = vpow.pop %v3468
      %v3470 = vmul.f32 %v3446, 1.442695
      %v3471 = vpow.pop %v3470
      %v3472 = vmul.f32 %v3447, 1.442695
      %v3473 = vpow.pop %v3472
      %v3474 = vmul.f32 %v3448, 1.442695
      %v3475 = vpow.pop %v3474
      %v3476 = vmul.f32 %v3449, 1.442695
      %v3477 = vpow.pop %v3476
      %v3478 = vmul.f32 %v3450, 1.442695
      %v3479 = vpow.pop %v3478
      %v3480 = vmul.f32 %v3451, 1.442695
      %v3481 = vpow.pop %v3480
      %v3482 = vmul.f32 %v3452, 1.442695
      %v3483 = vpow.pop %v3482
      %v3484 = vmul.f32 %v3453, 1.442695
      %v3485 = vpow.pop %v3484
      %3486 = vadd.xlane.f32.xlu0 %v3455
      %v3487 = vpop.xlane.xlu0 %3486
      %3488 = vadd.xlane.f32.xlu0 %v3457
      %v3489 = vpop.xlane.xlu0 %3488
      %3490 = vadd.xlane.f32.xlu0 %v3459
      %v3491 = vpop.xlane.xlu0 %3490
      %3492 = vadd.xlane.f32.xlu0 %v3461
      %v3493 = vpop.xlane.xlu0 %3492
      %3494 = vadd.xlane.f32.xlu0 %v3463
      %v3495 = vpop.xlane.xlu0 %3494
      %3496 = vadd.xlane.f32.xlu0 %v3465
      %v3497 = vpop.xlane.xlu0 %3496
      %3498 = vadd.xlane.f32.xlu0 %v3467
      %v3499 = vpop.xlane.xlu0 %3498
      %3500 = vadd.xlane.f32.xlu0 %v3469
      %v3501 = vpop.xlane.xlu0 %3500
      %3502 = vadd.xlane.f32.xlu0 %v3471
      %v3503 = vpop.xlane.xlu0 %3502
      %3504 = vadd.xlane.f32.xlu0 %v3473
      %v3505 = vpop.xlane.xlu0 %3504
      %3506 = vadd.xlane.f32.xlu0 %v3475
      %v3507 = vpop.xlane.xlu0 %3506
      %3508 = vadd.xlane.f32.xlu0 %v3477
      %v3509 = vpop.xlane.xlu0 %3508
      %3510 = vadd.xlane.f32.xlu0 %v3479
      %v3511 = vpop.xlane.xlu0 %3510
      %3512 = vadd.xlane.f32.xlu0 %v3481
      %v3513 = vpop.xlane.xlu0 %3512
      %3514 = vadd.xlane.f32.xlu0 %v3483
      %v3515 = vpop.xlane.xlu0 %3514
      %3516 = vadd.xlane.f32.xlu0 %v3485
      %v3517 = vpop.xlane.xlu0 %3516
      %v3518 = vpack.c.bf16 %v3457, %v3455
      %v3519 = vpack.c.bf16 %v3461, %v3459
      %v3520 = vpack.c.bf16 %v3465, %v3463
      %v3521 = vpack.c.bf16 %v3469, %v3467
      %v3522 = vpack.c.bf16 %v3473, %v3471
      %v3523 = vpack.c.bf16 %v3477, %v3475
      %v3524 = vpack.c.bf16 %v3481, %v3479
      %v3525 = vpack.c.bf16 %v3485, %v3483
      %3526 = vrot.lane.b32.xlu0 %v644, 48
      %v3527 = vpop.permute.xlu0 %3526
      %3528 = vrot.lane.b32.xlu0 %v645, 48
      %v3529 = vpop.permute.xlu0 %3528
      %3530 = vrot.lane.b32.xlu0 %v646, 48
      %v3531 = vpop.permute.xlu0 %3530
      %3532 = vrot.lane.b32.xlu0 %v647, 48
      %v3533 = vpop.permute.xlu0 %3532
      %3534 = vrot.lane.b32.xlu0 %v648, 48
      %v3535 = vpop.permute.xlu0 %3534
      %3536 = vrot.lane.b32.xlu0 %v649, 48
      %v3537 = vpop.permute.xlu0 %3536
      %3538 = vrot.lane.b32.xlu0 %v650, 48
      %v3539 = vpop.permute.xlu0 %3538
      %3540 = vrot.lane.b32.xlu0 %v651, 48
      %v3541 = vpop.permute.xlu0 %3540
      %3550 = vmatpush.bf16.msra.mxu0 %v3541
      %3551 = vmatpush.bf16.msra.mxu0 %v3539
      %3552 = vmatpush.bf16.msra.mxu0 %v3537
      %3553 = vmatpush.bf16.msra.mxu0 %v3535
      %3554 = vmatpush.bf16.msra.mxu0 %v3533
      %3555 = vmatpush.bf16.msra.mxu0 %v3531
      %3556 = vmatpush.bf16.msra.mxu0 %v3529
      %3557 = vmatpush.bf16.msra.mxu0 %v3527
      %3558 = vmatmul.bf16.gmra.mxu0 %v3518
      %v3559 = vpop.f32.mrf.mxu0
      %v3560 = vadd.f32 0.0, %v3559
      %v3561 = vpop.f32.mrf.mxu0
      %v3562 = vadd.f32 0.0, %v3561
      %3563 = vmatmul.bf16.gmra.mxu0 %v3519
      %v3564 = vpop.f32.mrf.mxu0
      %v3565 = vadd.f32 0.0, %v3564
      %v3566 = vpop.f32.mrf.mxu0
      %v3567 = vadd.f32 0.0, %v3566
      %3568 = vmatmul.bf16.gmra.mxu0 %v3520
      %v3569 = vpop.f32.mrf.mxu0
      %v3570 = vadd.f32 0.0, %v3569
      %v3571 = vpop.f32.mrf.mxu0
      %v3572 = vadd.f32 0.0, %v3571
      %3573 = vmatmul.bf16.gmra.mxu0 %v3521
      %v3574 = vpop.f32.mrf.mxu0
      %v3575 = vadd.f32 0.0, %v3574
      %v3576 = vpop.f32.mrf.mxu0
      %v3577 = vadd.f32 0.0, %v3576
      %3578 = vmatmul.bf16.gmra.mxu0 %v3522
      %v3579 = vpop.f32.mrf.mxu0
      %v3580 = vadd.f32 0.0, %v3579
      %v3581 = vpop.f32.mrf.mxu0
      %v3582 = vadd.f32 0.0, %v3581
      %3583 = vmatmul.bf16.gmra.mxu0 %v3523
      %v3584 = vpop.f32.mrf.mxu0
      %v3585 = vadd.f32 0.0, %v3584
      %v3586 = vpop.f32.mrf.mxu0
      %v3587 = vadd.f32 0.0, %v3586
      %3588 = vmatmul.bf16.gmra.mxu0 %v3524
      %v3589 = vpop.f32.mrf.mxu0
      %v3590 = vadd.f32 0.0, %v3589
      %v3591 = vpop.f32.mrf.mxu0
      %v3592 = vadd.f32 0.0, %v3591
      %3593 = vmatmul.bf16.gmra.mxu0 %v3525
      %v3594 = vpop.f32.mrf.mxu0
      %v3595 = vadd.f32 0.0, %v3594
      %v3596 = vpop.f32.mrf.mxu0
      %v3597 = vadd.f32 0.0, %v3596
      %3598 = vdwg.mxu0
      %v3599 = vrcp.pop %v3487
      %v3600 = vmul.f32 %v3487, %v3599
      %v3601 = vsub.f32 1.0, %v3600
      %v3602 = vmul.f32 %v3599, %v3601
      %v3603 = vadd.f32 %v3599, %v3602
      %vm3604 = vweird.f32 %v3487
      %vm3605 = vweird.f32 %v3599
      %vm3606 = vmor %vm3604, %vm3605
      %v3607 = vsel %vm3606, %v3599, %v3603
      %v3608 = vand.u32 2147483647, %v3487
      %vm3609 = vcmp.eq.f32.partialorder %v3608, 8.507059e+37
      %v3610 = vand.u32 %v3487, 2147483648
      %v3611 = vor.u32 1.1754944e-38, %v3610
      %v3612 = vsel %vm3609, %v3611, %v3607
      %v3613 = vmul.f32 %v3560, %v3612
      %v3614 = vrcp.pop %v3489
      %v3615 = vmul.f32 %v3489, %v3614
      %v3616 = vsub.f32 1.0, %v3615
      %v3617 = vmul.f32 %v3614, %v3616
      %v3618 = vadd.f32 %v3614, %v3617
      %vm3619 = vweird.f32 %v3489
      %vm3620 = vweird.f32 %v3614
      %vm3621 = vmor %vm3619, %vm3620
      %v3622 = vsel %vm3621, %v3614, %v3618
      %v3623 = vand.u32 2147483647, %v3489
      %vm3624 = vcmp.eq.f32.partialorder %v3623, 8.507059e+37
      %v3625 = vand.u32 %v3489, 2147483648
      %v3626 = vor.u32 1.1754944e-38, %v3625
      %v3627 = vsel %vm3624, %v3626, %v3622
      %v3628 = vmul.f32 %v3562, %v3627
      %v3629 = vrcp.pop %v3491
      %v3630 = vmul.f32 %v3491, %v3629
      %v3631 = vsub.f32 1.0, %v3630
      %v3632 = vmul.f32 %v3629, %v3631
      %v3633 = vadd.f32 %v3629, %v3632
      %vm3634 = vweird.f32 %v3491
      %vm3635 = vweird.f32 %v3629
      %vm3636 = vmor %vm3634, %vm3635
      %v3637 = vsel %vm3636, %v3629, %v3633
      %v3638 = vand.u32 2147483647, %v3491
      %vm3639 = vcmp.eq.f32.partialorder %v3638, 8.507059e+37
      %v3640 = vand.u32 %v3491, 2147483648
      %v3641 = vor.u32 1.1754944e-38, %v3640
      %v3642 = vsel %vm3639, %v3641, %v3637
      %v3643 = vmul.f32 %v3565, %v3642
      %v3644 = vrcp.pop %v3493
      %v3645 = vmul.f32 %v3493, %v3644
      %v3646 = vsub.f32 1.0, %v3645
      %v3647 = vmul.f32 %v3644, %v3646
      %v3648 = vadd.f32 %v3644, %v3647
      %vm3649 = vweird.f32 %v3493
      %vm3650 = vweird.f32 %v3644
      %vm3651 = vmor %vm3649, %vm3650
      %v3652 = vsel %vm3651, %v3644, %v3648
      %v3653 = vand.u32 2147483647, %v3493
      %vm3654 = vcmp.eq.f32.partialorder %v3653, 8.507059e+37
      %v3655 = vand.u32 %v3493, 2147483648
      %v3656 = vor.u32 1.1754944e-38, %v3655
      %v3657 = vsel %vm3654, %v3656, %v3652
      %v3658 = vmul.f32 %v3567, %v3657
      %v3659 = vrcp.pop %v3495
      %v3660 = vmul.f32 %v3495, %v3659
      %v3661 = vsub.f32 1.0, %v3660
      %v3662 = vmul.f32 %v3659, %v3661
      %v3663 = vadd.f32 %v3659, %v3662
      %vm3664 = vweird.f32 %v3495
      %vm3665 = vweird.f32 %v3659
      %vm3666 = vmor %vm3664, %vm3665
      %v3667 = vsel %vm3666, %v3659, %v3663
      %v3668 = vand.u32 2147483647, %v3495
      %vm3669 = vcmp.eq.f32.partialorder %v3668, 8.507059e+37
      %v3670 = vand.u32 %v3495, 2147483648
      %v3671 = vor.u32 1.1754944e-38, %v3670
      %v3672 = vsel %vm3669, %v3671, %v3667
      %v3673 = vmul.f32 %v3570, %v3672
      %v3674 = vrcp.pop %v3497
      %v3675 = vmul.f32 %v3497, %v3674
      %v3676 = vsub.f32 1.0, %v3675
      %v3677 = vmul.f32 %v3674, %v3676
      %v3678 = vadd.f32 %v3674, %v3677
      %vm3679 = vweird.f32 %v3497
      %vm3680 = vweird.f32 %v3674
      %vm3681 = vmor %vm3679, %vm3680
      %v3682 = vsel %vm3681, %v3674, %v3678
      %v3683 = vand.u32 2147483647, %v3497
      %vm3684 = vcmp.eq.f32.partialorder %v3683, 8.507059e+37
      %v3685 = vand.u32 %v3497, 2147483648
      %v3686 = vor.u32 1.1754944e-38, %v3685
      %v3687 = vsel %vm3684, %v3686, %v3682
      %v3688 = vmul.f32 %v3572, %v3687
      %v3689 = vrcp.pop %v3499
      %v3690 = vmul.f32 %v3499, %v3689
      %v3691 = vsub.f32 1.0, %v3690
      %v3692 = vmul.f32 %v3689, %v3691
      %v3693 = vadd.f32 %v3689, %v3692
      %vm3694 = vweird.f32 %v3499
      %vm3695 = vweird.f32 %v3689
      %vm3696 = vmor %vm3694, %vm3695
      %v3697 = vsel %vm3696, %v3689, %v3693
      %v3698 = vand.u32 2147483647, %v3499
      %vm3699 = vcmp.eq.f32.partialorder %v3698, 8.507059e+37
      %v3700 = vand.u32 %v3499, 2147483648
      %v3701 = vor.u32 1.1754944e-38, %v3700
      %v3702 = vsel %vm3699, %v3701, %v3697
      %v3703 = vmul.f32 %v3575, %v3702
      %v3704 = vrcp.pop %v3501
      %v3705 = vmul.f32 %v3501, %v3704
      %v3706 = vsub.f32 1.0, %v3705
      %v3707 = vmul.f32 %v3704, %v3706
      %v3708 = vadd.f32 %v3704, %v3707
      %vm3709 = vweird.f32 %v3501
      %vm3710 = vweird.f32 %v3704
      %vm3711 = vmor %vm3709, %vm3710
      %v3712 = vsel %vm3711, %v3704, %v3708
      %v3713 = vand.u32 2147483647, %v3501
      %vm3714 = vcmp.eq.f32.partialorder %v3713, 8.507059e+37
      %v3715 = vand.u32 %v3501, 2147483648
      %v3716 = vor.u32 1.1754944e-38, %v3715
      %v3717 = vsel %vm3714, %v3716, %v3712
      %v3718 = vmul.f32 %v3577, %v3717
      %v3719 = vrcp.pop %v3503
      %v3720 = vmul.f32 %v3503, %v3719
      %v3721 = vsub.f32 1.0, %v3720
      %v3722 = vmul.f32 %v3719, %v3721
      %v3723 = vadd.f32 %v3719, %v3722
      %vm3724 = vweird.f32 %v3503
      %vm3725 = vweird.f32 %v3719
      %vm3726 = vmor %vm3724, %vm3725
      %v3727 = vsel %vm3726, %v3719, %v3723
      %v3728 = vand.u32 2147483647, %v3503
      %vm3729 = vcmp.eq.f32.partialorder %v3728, 8.507059e+37
      %v3730 = vand.u32 %v3503, 2147483648
      %v3731 = vor.u32 1.1754944e-38, %v3730
      %v3732 = vsel %vm3729, %v3731, %v3727
      %v3733 = vmul.f32 %v3580, %v3732
      %v3734 = vrcp.pop %v3505
      %v3735 = vmul.f32 %v3505, %v3734
      %v3736 = vsub.f32 1.0, %v3735
      %v3737 = vmul.f32 %v3734, %v3736
      %v3738 = vadd.f32 %v3734, %v3737
      %vm3739 = vweird.f32 %v3505
      %vm3740 = vweird.f32 %v3734
      %vm3741 = vmor %vm3739, %vm3740
      %v3742 = vsel %vm3741, %v3734, %v3738
      %v3743 = vand.u32 2147483647, %v3505
      %vm3744 = vcmp.eq.f32.partialorder %v3743, 8.507059e+37
      %v3745 = vand.u32 %v3505, 2147483648
      %v3746 = vor.u32 1.1754944e-38, %v3745
      %v3747 = vsel %vm3744, %v3746, %v3742
      %v3748 = vmul.f32 %v3582, %v3747
      %v3749 = vrcp.pop %v3507
      %v3750 = vmul.f32 %v3507, %v3749
      %v3751 = vsub.f32 1.0, %v3750
      %v3752 = vmul.f32 %v3749, %v3751
      %v3753 = vadd.f32 %v3749, %v3752
      %vm3754 = vweird.f32 %v3507
      %vm3755 = vweird.f32 %v3749
      %vm3756 = vmor %vm3754, %vm3755
      %v3757 = vsel %vm3756, %v3749, %v3753
      %v3758 = vand.u32 2147483647, %v3507
      %vm3759 = vcmp.eq.f32.partialorder %v3758, 8.507059e+37
      %v3760 = vand.u32 %v3507, 2147483648
      %v3761 = vor.u32 1.1754944e-38, %v3760
      %v3762 = vsel %vm3759, %v3761, %v3757
      %v3763 = vmul.f32 %v3585, %v3762
      %v3764 = vrcp.pop %v3509
      %v3765 = vmul.f32 %v3509, %v3764
      %v3766 = vsub.f32 1.0, %v3765
      %v3767 = vmul.f32 %v3764, %v3766
      %v3768 = vadd.f32 %v3764, %v3767
      %vm3769 = vweird.f32 %v3509
      %vm3770 = vweird.f32 %v3764
      %vm3771 = vmor %vm3769, %vm3770
      %v3772 = vsel %vm3771, %v3764, %v3768
      %v3773 = vand.u32 2147483647, %v3509
      %vm3774 = vcmp.eq.f32.partialorder %v3773, 8.507059e+37
      %v3775 = vand.u32 %v3509, 2147483648
      %v3776 = vor.u32 1.1754944e-38, %v3775
      %v3777 = vsel %vm3774, %v3776, %v3772
      %v3778 = vmul.f32 %v3587, %v3777
      %v3779 = vrcp.pop %v3511
      %v3780 = vmul.f32 %v3511, %v3779
      %v3781 = vsub.f32 1.0, %v3780
      %v3782 = vmul.f32 %v3779, %v3781
      %v3783 = vadd.f32 %v3779, %v3782
      %vm3784 = vweird.f32 %v3511
      %vm3785 = vweird.f32 %v3779
      %vm3786 = vmor %vm3784, %vm3785
      %v3787 = vsel %vm3786, %v3779, %v3783
      %v3788 = vand.u32 2147483647, %v3511
      %vm3789 = vcmp.eq.f32.partialorder %v3788, 8.507059e+37
      %v3790 = vand.u32 %v3511, 2147483648
      %v3791 = vor.u32 1.1754944e-38, %v3790
      %v3792 = vsel %vm3789, %v3791, %v3787
      %v3793 = vmul.f32 %v3590, %v3792
      %v3794 = vrcp.pop %v3513
      %v3795 = vmul.f32 %v3513, %v3794
      %v3796 = vsub.f32 1.0, %v3795
      %v3797 = vmul.f32 %v3794, %v3796
      %v3798 = vadd.f32 %v3794, %v3797
      %vm3799 = vweird.f32 %v3513
      %vm3800 = vweird.f32 %v3794
      %vm3801 = vmor %vm3799, %vm3800
      %v3802 = vsel %vm3801, %v3794, %v3798
      %v3803 = vand.u32 2147483647, %v3513
      %vm3804 = vcmp.eq.f32.partialorder %v3803, 8.507059e+37
      %v3805 = vand.u32 %v3513, 2147483648
      %v3806 = vor.u32 1.1754944e-38, %v3805
      %v3807 = vsel %vm3804, %v3806, %v3802
      %v3808 = vmul.f32 %v3592, %v3807
      %v3809 = vrcp.pop %v3515
      %v3810 = vmul.f32 %v3515, %v3809
      %v3811 = vsub.f32 1.0, %v3810
      %v3812 = vmul.f32 %v3809, %v3811
      %v3813 = vadd.f32 %v3809, %v3812
      %vm3814 = vweird.f32 %v3515
      %vm3815 = vweird.f32 %v3809
      %vm3816 = vmor %vm3814, %vm3815
      %v3817 = vsel %vm3816, %v3809, %v3813
      %v3818 = vand.u32 2147483647, %v3515
      %vm3819 = vcmp.eq.f32.partialorder %v3818, 8.507059e+37
      %v3820 = vand.u32 %v3515, 2147483648
      %v3821 = vor.u32 1.1754944e-38, %v3820
      %v3822 = vsel %vm3819, %v3821, %v3817
      %v3823 = vmul.f32 %v3595, %v3822
      %v3824 = vrcp.pop %v3517
      %v3825 = vmul.f32 %v3517, %v3824
      %v3826 = vsub.f32 1.0, %v3825
      %v3827 = vmul.f32 %v3824, %v3826
      %v3828 = vadd.f32 %v3824, %v3827
      %vm3829 = vweird.f32 %v3517
      %vm3830 = vweird.f32 %v3824
      %vm3831 = vmor %vm3829, %vm3830
      %v3832 = vsel %vm3831, %v3824, %v3828
      %v3833 = vand.u32 2147483647, %v3517
      %vm3834 = vcmp.eq.f32.partialorder %v3833, 8.507059e+37
      %v3835 = vand.u32 %v3517, 2147483648
      %v3836 = vor.u32 1.1754944e-38, %v3835
      %v3837 = vsel %vm3834, %v3836, %v3832
      %v3838 = vmul.f32 %v3597, %v3837
      %3839 = vrot.lane.b32.xlu0 %v330, 32
      %v3840 = vpop.permute.xlu0 %3839
      %3841 = vrot.lane.b32.xlu0 %v331, 32
      %v3842 = vpop.permute.xlu0 %3841
      %3843 = vrot.lane.b32.xlu0 %v332, 32
      %v3844 = vpop.permute.xlu0 %3843
      %3845 = vrot.lane.b32.xlu0 %v333, 32
      %v3846 = vpop.permute.xlu0 %3845
      %3847 = vrot.lane.b32.xlu0 %v334, 32
      %v3848 = vpop.permute.xlu0 %3847
      %3849 = vrot.lane.b32.xlu0 %v335, 32
      %v3850 = vpop.permute.xlu0 %3849
      %3851 = vrot.lane.b32.xlu0 %v336, 32
      %v3852 = vpop.permute.xlu0 %3851
      %3853 = vrot.lane.b32.xlu0 %v337, 32
      %v3854 = vpop.permute.xlu0 %3853
      %3855 = vrot.lane.b32.xlu0 %v370, 32
      %v3856 = vpop.permute.xlu0 %3855
      %3857 = vrot.lane.b32.xlu0 %v371, 32
      %v3858 = vpop.permute.xlu0 %3857
      %3859 = vrot.lane.b32.xlu0 %v372, 32
      %v3860 = vpop.permute.xlu0 %3859
      %3861 = vrot.lane.b32.xlu0 %v373, 32
      %v3862 = vpop.permute.xlu0 %3861
      %3863 = vrot.lane.b32.xlu0 %v374, 32
      %v3864 = vpop.permute.xlu0 %3863
      %3865 = vrot.lane.b32.xlu0 %v375, 32
      %v3866 = vpop.permute.xlu0 %3865
      %3867 = vrot.lane.b32.xlu0 %v376, 32
      %v3868 = vpop.permute.xlu0 %3867
      %3869 = vrot.lane.b32.xlu0 %v377, 32
      %v3870 = vpop.permute.xlu0 %3869
      %v3872 = vsel %vm378, %v3840, 0
      %v3875 = vsel %vm378, %v3842, 0
      %v3878 = vsel %vm378, %v3844, 0
      %v3881 = vsel %vm378, %v3846, 0
      %v3884 = vsel %vm378, %v3848, 0
      %v3887 = vsel %vm378, %v3850, 0
      %v3890 = vsel %vm378, %v3852, 0
      %v3893 = vsel %vm378, %v3854, 0
      %v3896 = vsel %vm378, %v3856, 0
      %v3899 = vsel %vm378, %v3858, 0
      %v3902 = vsel %vm378, %v3860, 0
      %v3905 = vsel %vm378, %v3862, 0
      %v3908 = vsel %vm378, %v3864, 0
      %v3911 = vsel %vm378, %v3866, 0
      %v3914 = vsel %vm378, %v3868, 0
      %v3917 = vsel %vm378, %v3870, 0
      %3919 = vmatpush.bf16.xpose.msra.mxu0 %v3917
      %3920 = vmatpush.bf16.xpose.msra.mxu0 %v3914
      %3921 = vmatpush.bf16.xpose.msra.mxu0 %v3911
      %3922 = vmatpush.bf16.xpose.msra.mxu0 %v3908
      %3923 = vmatpush.bf16.xpose.msra.mxu0 %v3905
      %3924 = vmatpush.bf16.xpose.msra.mxu0 %v3902
      %3925 = vmatpush.bf16.xpose.msra.mxu0 %v3899
      %3926 = vmatpush.bf16.xpose.msra.mxu0 %v3896
      %3927 = vmatmul.bf16.gmra.mxu0 %v3872
      %v3928 = vpop.f32.mrf.mxu0
      %v3929 = vadd.f32 0.0, %v3928
      %v3930 = vpop.f32.mrf.mxu0
      %v3931 = vadd.f32 0.0, %v3930
      %3932 = vmatmul.bf16.gmra.mxu0 %v3875
      %v3933 = vpop.f32.mrf.mxu0
      %v3934 = vadd.f32 0.0, %v3933
      %v3935 = vpop.f32.mrf.mxu0
      %v3936 = vadd.f32 0.0, %v3935
      %3937 = vmatmul.bf16.gmra.mxu0 %v3878
      %v3938 = vpop.f32.mrf.mxu0
      %v3939 = vadd.f32 0.0, %v3938
      %v3940 = vpop.f32.mrf.mxu0
      %v3941 = vadd.f32 0.0, %v3940
      %3942 = vmatmul.bf16.gmra.mxu0 %v3881
      %v3943 = vpop.f32.mrf.mxu0
      %v3944 = vadd.f32 0.0, %v3943
      %v3945 = vpop.f32.mrf.mxu0
      %v3946 = vadd.f32 0.0, %v3945
      %3947 = vmatmul.bf16.gmra.mxu0 %v3884
      %v3948 = vpop.f32.mrf.mxu0
      %v3949 = vadd.f32 0.0, %v3948
      %v3950 = vpop.f32.mrf.mxu0
      %v3951 = vadd.f32 0.0, %v3950
      %3952 = vmatmul.bf16.gmra.mxu0 %v3887
      %v3953 = vpop.f32.mrf.mxu0
      %v3954 = vadd.f32 0.0, %v3953
      %v3955 = vpop.f32.mrf.mxu0
      %v3956 = vadd.f32 0.0, %v3955
      %3957 = vmatmul.bf16.gmra.mxu0 %v3890
      %v3958 = vpop.f32.mrf.mxu0
      %v3959 = vadd.f32 0.0, %v3958
      %v3960 = vpop.f32.mrf.mxu0
      %v3961 = vadd.f32 0.0, %v3960
      %3962 = vmatmul.bf16.gmra.mxu0 %v3893
      %v3963 = vpop.f32.mrf.mxu0
      %v3964 = vadd.f32 0.0, %v3963
      %v3965 = vpop.f32.mrf.mxu0
      %v3966 = vadd.f32 0.0, %v3965
      %3967 = vdwg.mxu0
      %v3968 = vmul.f32 %v3929, 0.25
      %v3969 = vmul.f32 %v3931, 0.25
      %v3970 = vmul.f32 %v3934, 0.25
      %v3971 = vmul.f32 %v3936, 0.25
      %v3972 = vmul.f32 %v3939, 0.25
      %v3973 = vmul.f32 %v3941, 0.25
      %v3974 = vmul.f32 %v3944, 0.25
      %v3975 = vmul.f32 %v3946, 0.25
      %v3976 = vmul.f32 %v3949, 0.25
      %v3977 = vmul.f32 %v3951, 0.25
      %v3978 = vmul.f32 %v3954, 0.25
      %v3979 = vmul.f32 %v3956, 0.25
      %v3980 = vmul.f32 %v3959, 0.25
      %v3981 = vmul.f32 %v3961, 0.25
      %v3982 = vmul.f32 %v3964, 0.25
      %v3983 = vmul.f32 %v3966, 0.25
      %3984 = vmax.xlane.f32.xlu0 %v3968
      %v3985 = vpop.xlane.xlu0 %3984
      %3986 = vmax.xlane.f32.xlu0 %v3969
      %v3987 = vpop.xlane.xlu0 %3986
      %3988 = vmax.xlane.f32.xlu0 %v3970
      %v3989 = vpop.xlane.xlu0 %3988
      %3990 = vmax.xlane.f32.xlu0 %v3971
      %v3991 = vpop.xlane.xlu0 %3990
      %3992 = vmax.xlane.f32.xlu0 %v3972
      %v3993 = vpop.xlane.xlu0 %3992
      %3994 = vmax.xlane.f32.xlu0 %v3973
      %v3995 = vpop.xlane.xlu0 %3994
      %3996 = vmax.xlane.f32.xlu0 %v3974
      %v3997 = vpop.xlane.xlu0 %3996
      %3998 = vmax.xlane.f32.xlu0 %v3975
      %v3999 = vpop.xlane.xlu0 %3998
      %4000 = vmax.xlane.f32.xlu0 %v3976
      %v4001 = vpop.xlane.xlu0 %4000
      %4002 = vmax.xlane.f32.xlu0 %v3977
      %v4003 = vpop.xlane.xlu0 %4002
      %4004 = vmax.xlane.f32.xlu0 %v3978
      %v4005 = vpop.xlane.xlu0 %4004
      %4006 = vmax.xlane.f32.xlu0 %v3979
      %v4007 = vpop.xlane.xlu0 %4006
      %4008 = vmax.xlane.f32.xlu0 %v3980
      %v4009 = vpop.xlane.xlu0 %4008
      %4010 = vmax.xlane.f32.xlu0 %v3981
      %v4011 = vpop.xlane.xlu0 %4010
      %4012 = vmax.xlane.f32.xlu0 %v3982
      %v4013 = vpop.xlane.xlu0 %4012
      %4014 = vmax.xlane.f32.xlu0 %v3983
      %v4015 = vpop.xlane.xlu0 %4014
      %v4016 = vsub.f32 %v3968, %v3985
      %v4017 = vsub.f32 %v3969, %v3987
      %v4018 = vsub.f32 %v3970, %v3989
      %v4019 = vsub.f32 %v3971, %v3991
      %v4020 = vsub.f32 %v3972, %v3993
      %v4021 = vsub.f32 %v3973, %v3995
      %v4022 = vsub.f32 %v3974, %v3997
      %v4023 = vsub.f32 %v3975, %v3999
      %v4024 = vsub.f32 %v3976, %v4001
      %v4025 = vsub.f32 %v3977, %v4003
      %v4026 = vsub.f32 %v3978, %v4005
      %v4027 = vsub.f32 %v3979, %v4007
      %v4028 = vsub.f32 %v3980, %v4009
      %v4029 = vsub.f32 %v3981, %v4011
      %v4030 = vsub.f32 %v3982, %v4013
      %v4031 = vsub.f32 %v3983, %v4015
      %v4032 = vmul.f32 %v4016, 1.442695
      %v4033 = vpow.pop %v4032
      %v4034 = vmul.f32 %v4017, 1.442695
      %v4035 = vpow.pop %v4034
      %v4036 = vmul.f32 %v4018, 1.442695
      %v4037 = vpow.pop %v4036
      %v4038 = vmul.f32 %v4019, 1.442695
      %v4039 = vpow.pop %v4038
      %v4040 = vmul.f32 %v4020, 1.442695
      %v4041 = vpow.pop %v4040
      %v4042 = vmul.f32 %v4021, 1.442695
      %v4043 = vpow.pop %v4042
      %v4044 = vmul.f32 %v4022, 1.442695
      %v4045 = vpow.pop %v4044
      %v4046 = vmul.f32 %v4023, 1.442695
      %v4047 = vpow.pop %v4046
      %v4048 = vmul.f32 %v4024, 1.442695
      %v4049 = vpow.pop %v4048
      %v4050 = vmul.f32 %v4025, 1.442695
      %v4051 = vpow.pop %v4050
      %v4052 = vmul.f32 %v4026, 1.442695
      %v4053 = vpow.pop %v4052
      %v4054 = vmul.f32 %v4027, 1.442695
      %v4055 = vpow.pop %v4054
      %v4056 = vmul.f32 %v4028, 1.442695
      %v4057 = vpow.pop %v4056
      %v4058 = vmul.f32 %v4029, 1.442695
      %v4059 = vpow.pop %v4058
      %v4060 = vmul.f32 %v4030, 1.442695
      %v4061 = vpow.pop %v4060
      %v4062 = vmul.f32 %v4031, 1.442695
      %v4063 = vpow.pop %v4062
      %4064 = vadd.xlane.f32.xlu0 %v4033
      %v4065 = vpop.xlane.xlu0 %4064
      %4066 = vadd.xlane.f32.xlu0 %v4035
      %v4067 = vpop.xlane.xlu0 %4066
      %4068 = vadd.xlane.f32.xlu0 %v4037
      %v4069 = vpop.xlane.xlu0 %4068
      %4070 = vadd.xlane.f32.xlu0 %v4039
      %v4071 = vpop.xlane.xlu0 %4070
      %4072 = vadd.xlane.f32.xlu0 %v4041
      %v4073 = vpop.xlane.xlu0 %4072
      %4074 = vadd.xlane.f32.xlu0 %v4043
      %v4075 = vpop.xlane.xlu0 %4074
      %4076 = vadd.xlane.f32.xlu0 %v4045
      %v4077 = vpop.xlane.xlu0 %4076
      %4078 = vadd.xlane.f32.xlu0 %v4047
      %v4079 = vpop.xlane.xlu0 %4078
      %4080 = vadd.xlane.f32.xlu0 %v4049
      %v4081 = vpop.xlane.xlu0 %4080
      %4082 = vadd.xlane.f32.xlu0 %v4051
      %v4083 = vpop.xlane.xlu0 %4082
      %4084 = vadd.xlane.f32.xlu0 %v4053
      %v4085 = vpop.xlane.xlu0 %4084
      %4086 = vadd.xlane.f32.xlu0 %v4055
      %v4087 = vpop.xlane.xlu0 %4086
      %4088 = vadd.xlane.f32.xlu0 %v4057
      %v4089 = vpop.xlane.xlu0 %4088
      %4090 = vadd.xlane.f32.xlu0 %v4059
      %v4091 = vpop.xlane.xlu0 %4090
      %4092 = vadd.xlane.f32.xlu0 %v4061
      %v4093 = vpop.xlane.xlu0 %4092
      %4094 = vadd.xlane.f32.xlu0 %v4063
      %v4095 = vpop.xlane.xlu0 %4094
      %v4096 = vpack.c.bf16 %v4035, %v4033
      %v4097 = vpack.c.bf16 %v4039, %v4037
      %v4098 = vpack.c.bf16 %v4043, %v4041
      %v4099 = vpack.c.bf16 %v4047, %v4045
      %v4100 = vpack.c.bf16 %v4051, %v4049
      %v4101 = vpack.c.bf16 %v4055, %v4053
      %v4102 = vpack.c.bf16 %v4059, %v4057
      %v4103 = vpack.c.bf16 %v4063, %v4061
      %4104 = vrot.lane.b32.xlu0 %v644, 32
      %v4105 = vpop.permute.xlu0 %4104
      %4106 = vrot.lane.b32.xlu0 %v645, 32
      %v4107 = vpop.permute.xlu0 %4106
      %4108 = vrot.lane.b32.xlu0 %v646, 32
      %v4109 = vpop.permute.xlu0 %4108
      %4110 = vrot.lane.b32.xlu0 %v647, 32
      %v4111 = vpop.permute.xlu0 %4110
      %4112 = vrot.lane.b32.xlu0 %v648, 32
      %v4113 = vpop.permute.xlu0 %4112
      %4114 = vrot.lane.b32.xlu0 %v649, 32
      %v4115 = vpop.permute.xlu0 %4114
      %4116 = vrot.lane.b32.xlu0 %v650, 32
      %v4117 = vpop.permute.xlu0 %4116
      %4118 = vrot.lane.b32.xlu0 %v651, 32
      %v4119 = vpop.permute.xlu0 %4118
      %4128 = vmatpush.bf16.msra.mxu0 %v4119
      %4129 = vmatpush.bf16.msra.mxu0 %v4117
      %4130 = vmatpush.bf16.msra.mxu0 %v4115
      %4131 = vmatpush.bf16.msra.mxu0 %v4113
      %4132 = vmatpush.bf16.msra.mxu0 %v4111
      %4133 = vmatpush.bf16.msra.mxu0 %v4109
      %4134 = vmatpush.bf16.msra.mxu0 %v4107
      %4135 = vmatpush.bf16.msra.mxu0 %v4105
      %4136 = vmatmul.bf16.gmra.mxu0 %v4096
      %v4137 = vpop.f32.mrf.mxu0
      %v4138 = vadd.f32 0.0, %v4137
      %v4139 = vpop.f32.mrf.mxu0
      %v4140 = vadd.f32 0.0, %v4139
      %4141 = vmatmul.bf16.gmra.mxu0 %v4097
      %v4142 = vpop.f32.mrf.mxu0
      %v4143 = vadd.f32 0.0, %v4142
      %v4144 = vpop.f32.mrf.mxu0
      %v4145 = vadd.f32 0.0, %v4144
      %4146 = vmatmul.bf16.gmra.mxu0 %v4098
      %v4147 = vpop.f32.mrf.mxu0
      %v4148 = vadd.f32 0.0, %v4147
      %v4149 = vpop.f32.mrf.mxu0
      %v4150 = vadd.f32 0.0, %v4149
      %4151 = vmatmul.bf16.gmra.mxu0 %v4099
      %v4152 = vpop.f32.mrf.mxu0
      %v4153 = vadd.f32 0.0, %v4152
      %v4154 = vpop.f32.mrf.mxu0
      %v4155 = vadd.f32 0.0, %v4154
      %4156 = vmatmul.bf16.gmra.mxu0 %v4100
      %v4157 = vpop.f32.mrf.mxu0
      %v4158 = vadd.f32 0.0, %v4157
      %v4159 = vpop.f32.mrf.mxu0
      %v4160 = vadd.f32 0.0, %v4159
      %4161 = vmatmul.bf16.gmra.mxu0 %v4101
      %v4162 = vpop.f32.mrf.mxu0
      %v4163 = vadd.f32 0.0, %v4162
      %v4164 = vpop.f32.mrf.mxu0
      %v4165 = vadd.f32 0.0, %v4164
      %4166 = vmatmul.bf16.gmra.mxu0 %v4102
      %v4167 = vpop.f32.mrf.mxu0
      %v4168 = vadd.f32 0.0, %v4167
      %v4169 = vpop.f32.mrf.mxu0
      %v4170 = vadd.f32 0.0, %v4169
      %4171 = vmatmul.bf16.gmra.mxu0 %v4103
      %v4172 = vpop.f32.mrf.mxu0
      %v4173 = vadd.f32 0.0, %v4172
      %v4174 = vpop.f32.mrf.mxu0
      %v4175 = vadd.f32 0.0, %v4174
      %4176 = vdwg.mxu0
      %v4177 = vrcp.pop %v4065
      %v4178 = vmul.f32 %v4065, %v4177
      %v4179 = vsub.f32 1.0, %v4178
      %v4180 = vmul.f32 %v4177, %v4179
      %v4181 = vadd.f32 %v4177, %v4180
      %vm4182 = vweird.f32 %v4065
      %vm4183 = vweird.f32 %v4177
      %vm4184 = vmor %vm4182, %vm4183
      %v4185 = vsel %vm4184, %v4177, %v4181
      %v4186 = vand.u32 2147483647, %v4065
      %vm4187 = vcmp.eq.f32.partialorder %v4186, 8.507059e+37
      %v4188 = vand.u32 %v4065, 2147483648
      %v4189 = vor.u32 1.1754944e-38, %v4188
      %v4190 = vsel %vm4187, %v4189, %v4185
      %v4191 = vmul.f32 %v4138, %v4190
      %v4192 = vrcp.pop %v4067
      %v4193 = vmul.f32 %v4067, %v4192
      %v4194 = vsub.f32 1.0, %v4193
      %v4195 = vmul.f32 %v4192, %v4194
      %v4196 = vadd.f32 %v4192, %v4195
      %vm4197 = vweird.f32 %v4067
      %vm4198 = vweird.f32 %v4192
      %vm4199 = vmor %vm4197, %vm4198
      %v4200 = vsel %vm4199, %v4192, %v4196
      %v4201 = vand.u32 2147483647, %v4067
      %vm4202 = vcmp.eq.f32.partialorder %v4201, 8.507059e+37
      %v4203 = vand.u32 %v4067, 2147483648
      %v4204 = vor.u32 1.1754944e-38, %v4203
      %v4205 = vsel %vm4202, %v4204, %v4200
      %v4206 = vmul.f32 %v4140, %v4205
      %v4207 = vrcp.pop %v4069
      %v4208 = vmul.f32 %v4069, %v4207
      %v4209 = vsub.f32 1.0, %v4208
      %v4210 = vmul.f32 %v4207, %v4209
      %v4211 = vadd.f32 %v4207, %v4210
      %vm4212 = vweird.f32 %v4069
      %vm4213 = vweird.f32 %v4207
      %vm4214 = vmor %vm4212, %vm4213
      %v4215 = vsel %vm4214, %v4207, %v4211
      %v4216 = vand.u32 2147483647, %v4069
      %vm4217 = vcmp.eq.f32.partialorder %v4216, 8.507059e+37
      %v4218 = vand.u32 %v4069, 2147483648
      %v4219 = vor.u32 1.1754944e-38, %v4218
      %v4220 = vsel %vm4217, %v4219, %v4215
      %v4221 = vmul.f32 %v4143, %v4220
      %v4222 = vrcp.pop %v4071
      %v4223 = vmul.f32 %v4071, %v4222
      %v4224 = vsub.f32 1.0, %v4223
      %v4225 = vmul.f32 %v4222, %v4224
      %v4226 = vadd.f32 %v4222, %v4225
      %vm4227 = vweird.f32 %v4071
      %vm4228 = vweird.f32 %v4222
      %vm4229 = vmor %vm4227, %vm4228
      %v4230 = vsel %vm4229, %v4222, %v4226
      %v4231 = vand.u32 2147483647, %v4071
      %vm4232 = vcmp.eq.f32.partialorder %v4231, 8.507059e+37
      %v4233 = vand.u32 %v4071, 2147483648
      %v4234 = vor.u32 1.1754944e-38, %v4233
      %v4235 = vsel %vm4232, %v4234, %v4230
      %v4236 = vmul.f32 %v4145, %v4235
      %v4237 = vrcp.pop %v4073
      %v4238 = vmul.f32 %v4073, %v4237
      %v4239 = vsub.f32 1.0, %v4238
      %v4240 = vmul.f32 %v4237, %v4239
      %v4241 = vadd.f32 %v4237, %v4240
      %vm4242 = vweird.f32 %v4073
      %vm4243 = vweird.f32 %v4237
      %vm4244 = vmor %vm4242, %vm4243
      %v4245 = vsel %vm4244, %v4237, %v4241
      %v4246 = vand.u32 2147483647, %v4073
      %vm4247 = vcmp.eq.f32.partialorder %v4246, 8.507059e+37
      %v4248 = vand.u32 %v4073, 2147483648
      %v4249 = vor.u32 1.1754944e-38, %v4248
      %v4250 = vsel %vm4247, %v4249, %v4245
      %v4251 = vmul.f32 %v4148, %v4250
      %v4252 = vrcp.pop %v4075
      %v4253 = vmul.f32 %v4075, %v4252
      %v4254 = vsub.f32 1.0, %v4253
      %v4255 = vmul.f32 %v4252, %v4254
      %v4256 = vadd.f32 %v4252, %v4255
      %vm4257 = vweird.f32 %v4075
      %vm4258 = vweird.f32 %v4252
      %vm4259 = vmor %vm4257, %vm4258
      %v4260 = vsel %vm4259, %v4252, %v4256
      %v4261 = vand.u32 2147483647, %v4075
      %vm4262 = vcmp.eq.f32.partialorder %v4261, 8.507059e+37
      %v4263 = vand.u32 %v4075, 2147483648
      %v4264 = vor.u32 1.1754944e-38, %v4263
      %v4265 = vsel %vm4262, %v4264, %v4260
      %v4266 = vmul.f32 %v4150, %v4265
      %v4267 = vrcp.pop %v4077
      %v4268 = vmul.f32 %v4077, %v4267
      %v4269 = vsub.f32 1.0, %v4268
      %v4270 = vmul.f32 %v4267, %v4269
      %v4271 = vadd.f32 %v4267, %v4270
      %vm4272 = vweird.f32 %v4077
      %vm4273 = vweird.f32 %v4267
      %vm4274 = vmor %vm4272, %vm4273
      %v4275 = vsel %vm4274, %v4267, %v4271
      %v4276 = vand.u32 2147483647, %v4077
      %vm4277 = vcmp.eq.f32.partialorder %v4276, 8.507059e+37
      %v4278 = vand.u32 %v4077, 2147483648
      %v4279 = vor.u32 1.1754944e-38, %v4278
      %v4280 = vsel %vm4277, %v4279, %v4275
      %v4281 = vmul.f32 %v4153, %v4280
      %v4282 = vrcp.pop %v4079
      %v4283 = vmul.f32 %v4079, %v4282
      %v4284 = vsub.f32 1.0, %v4283
      %v4285 = vmul.f32 %v4282, %v4284
      %v4286 = vadd.f32 %v4282, %v4285
      %vm4287 = vweird.f32 %v4079
      %vm4288 = vweird.f32 %v4282
      %vm4289 = vmor %vm4287, %vm4288
      %v4290 = vsel %vm4289, %v4282, %v4286
      %v4291 = vand.u32 2147483647, %v4079
      %vm4292 = vcmp.eq.f32.partialorder %v4291, 8.507059e+37
      %v4293 = vand.u32 %v4079, 2147483648
      %v4294 = vor.u32 1.1754944e-38, %v4293
      %v4295 = vsel %vm4292, %v4294, %v4290
      %v4296 = vmul.f32 %v4155, %v4295
      %v4297 = vrcp.pop %v4081
      %v4298 = vmul.f32 %v4081, %v4297
      %v4299 = vsub.f32 1.0, %v4298
      %v4300 = vmul.f32 %v4297, %v4299
      %v4301 = vadd.f32 %v4297, %v4300
      %vm4302 = vweird.f32 %v4081
      %vm4303 = vweird.f32 %v4297
      %vm4304 = vmor %vm4302, %vm4303
      %v4305 = vsel %vm4304, %v4297, %v4301
      %v4306 = vand.u32 2147483647, %v4081
      %vm4307 = vcmp.eq.f32.partialorder %v4306, 8.507059e+37
      %v4308 = vand.u32 %v4081, 2147483648
      %v4309 = vor.u32 1.1754944e-38, %v4308
      %v4310 = vsel %vm4307, %v4309, %v4305
      %v4311 = vmul.f32 %v4158, %v4310
      %v4312 = vrcp.pop %v4083
      %v4313 = vmul.f32 %v4083, %v4312
      %v4314 = vsub.f32 1.0, %v4313
      %v4315 = vmul.f32 %v4312, %v4314
      %v4316 = vadd.f32 %v4312, %v4315
      %vm4317 = vweird.f32 %v4083
      %vm4318 = vweird.f32 %v4312
      %vm4319 = vmor %vm4317, %vm4318
      %v4320 = vsel %vm4319, %v4312, %v4316
      %v4321 = vand.u32 2147483647, %v4083
      %vm4322 = vcmp.eq.f32.partialorder %v4321, 8.507059e+37
      %v4323 = vand.u32 %v4083, 2147483648
      %v4324 = vor.u32 1.1754944e-38, %v4323
      %v4325 = vsel %vm4322, %v4324, %v4320
      %v4326 = vmul.f32 %v4160, %v4325
      %v4327 = vrcp.pop %v4085
      %v4328 = vmul.f32 %v4085, %v4327
      %v4329 = vsub.f32 1.0, %v4328
      %v4330 = vmul.f32 %v4327, %v4329
      %v4331 = vadd.f32 %v4327, %v4330
      %vm4332 = vweird.f32 %v4085
      %vm4333 = vweird.f32 %v4327
      %vm4334 = vmor %vm4332, %vm4333
      %v4335 = vsel %vm4334, %v4327, %v4331
      %v4336 = vand.u32 2147483647, %v4085
      %vm4337 = vcmp.eq.f32.partialorder %v4336, 8.507059e+37
      %v4338 = vand.u32 %v4085, 2147483648
      %v4339 = vor.u32 1.1754944e-38, %v4338
      %v4340 = vsel %vm4337, %v4339, %v4335
      %v4341 = vmul.f32 %v4163, %v4340
      %v4342 = vrcp.pop %v4087
      %v4343 = vmul.f32 %v4087, %v4342
      %v4344 = vsub.f32 1.0, %v4343
      %v4345 = vmul.f32 %v4342, %v4344
      %v4346 = vadd.f32 %v4342, %v4345
      %vm4347 = vweird.f32 %v4087
      %vm4348 = vweird.f32 %v4342
      %vm4349 = vmor %vm4347, %vm4348
      %v4350 = vsel %vm4349, %v4342, %v4346
      %v4351 = vand.u32 2147483647, %v4087
      %vm4352 = vcmp.eq.f32.partialorder %v4351, 8.507059e+37
      %v4353 = vand.u32 %v4087, 2147483648
      %v4354 = vor.u32 1.1754944e-38, %v4353
      %v4355 = vsel %vm4352, %v4354, %v4350
      %v4356 = vmul.f32 %v4165, %v4355
      %v4357 = vrcp.pop %v4089
      %v4358 = vmul.f32 %v4089, %v4357
      %v4359 = vsub.f32 1.0, %v4358
      %v4360 = vmul.f32 %v4357, %v4359
      %v4361 = vadd.f32 %v4357, %v4360
      %vm4362 = vweird.f32 %v4089
      %vm4363 = vweird.f32 %v4357
      %vm4364 = vmor %vm4362, %vm4363
      %v4365 = vsel %vm4364, %v4357, %v4361
      %v4366 = vand.u32 2147483647, %v4089
      %vm4367 = vcmp.eq.f32.partialorder %v4366, 8.507059e+37
      %v4368 = vand.u32 %v4089, 2147483648
      %v4369 = vor.u32 1.1754944e-38, %v4368
      %v4370 = vsel %vm4367, %v4369, %v4365
      %v4371 = vmul.f32 %v4168, %v4370
      %v4372 = vrcp.pop %v4091
      %v4373 = vmul.f32 %v4091, %v4372
      %v4374 = vsub.f32 1.0, %v4373
      %v4375 = vmul.f32 %v4372, %v4374
      %v4376 = vadd.f32 %v4372, %v4375
      %vm4377 = vweird.f32 %v4091
      %vm4378 = vweird.f32 %v4372
      %vm4379 = vmor %vm4377, %vm4378
      %v4380 = vsel %vm4379, %v4372, %v4376
      %v4381 = vand.u32 2147483647, %v4091
      %vm4382 = vcmp.eq.f32.partialorder %v4381, 8.507059e+37
      %v4383 = vand.u32 %v4091, 2147483648
      %v4384 = vor.u32 1.1754944e-38, %v4383
      %v4385 = vsel %vm4382, %v4384, %v4380
      %v4386 = vmul.f32 %v4170, %v4385
      %v4387 = vrcp.pop %v4093
      %v4388 = vmul.f32 %v4093, %v4387
      %v4389 = vsub.f32 1.0, %v4388
      %v4390 = vmul.f32 %v4387, %v4389
      %v4391 = vadd.f32 %v4387, %v4390
      %vm4392 = vweird.f32 %v4093
      %vm4393 = vweird.f32 %v4387
      %vm4394 = vmor %vm4392, %vm4393
      %v4395 = vsel %vm4394, %v4387, %v4391
      %v4396 = vand.u32 2147483647, %v4093
      %vm4397 = vcmp.eq.f32.partialorder %v4396, 8.507059e+37
      %v4398 = vand.u32 %v4093, 2147483648
      %v4399 = vor.u32 1.1754944e-38, %v4398
      %v4400 = vsel %vm4397, %v4399, %v4395
      %v4401 = vmul.f32 %v4173, %v4400
      %v4402 = vrcp.pop %v4095
      %v4403 = vmul.f32 %v4095, %v4402
      %v4404 = vsub.f32 1.0, %v4403
      %v4405 = vmul.f32 %v4402, %v4404
      %v4406 = vadd.f32 %v4402, %v4405
      %vm4407 = vweird.f32 %v4095
      %vm4408 = vweird.f32 %v4402
      %vm4409 = vmor %vm4407, %vm4408
      %v4410 = vsel %vm4409, %v4402, %v4406
      %v4411 = vand.u32 2147483647, %v4095
      %vm4412 = vcmp.eq.f32.partialorder %v4411, 8.507059e+37
      %v4413 = vand.u32 %v4095, 2147483648
      %v4414 = vor.u32 1.1754944e-38, %v4413
      %v4415 = vsel %vm4412, %v4414, %v4410
      %v4416 = vmul.f32 %v4175, %v4415
      %4417 = vrot.lane.b32.xlu0 %v330, 16
      %v4418 = vpop.permute.xlu0 %4417
      %4419 = vrot.lane.b32.xlu0 %v331, 16
      %v4420 = vpop.permute.xlu0 %4419
      %4421 = vrot.lane.b32.xlu0 %v332, 16
      %v4422 = vpop.permute.xlu0 %4421
      %4423 = vrot.lane.b32.xlu0 %v333, 16
      %v4424 = vpop.permute.xlu0 %4423
      %4425 = vrot.lane.b32.xlu0 %v334, 16
      %v4426 = vpop.permute.xlu0 %4425
      %4427 = vrot.lane.b32.xlu0 %v335, 16
      %v4428 = vpop.permute.xlu0 %4427
      %4429 = vrot.lane.b32.xlu0 %v336, 16
      %v4430 = vpop.permute.xlu0 %4429
      %4431 = vrot.lane.b32.xlu0 %v337, 16
      %v4432 = vpop.permute.xlu0 %4431
      %4433 = vrot.lane.b32.xlu0 %v370, 16
      %v4434 = vpop.permute.xlu0 %4433
      %4435 = vrot.lane.b32.xlu0 %v371, 16
      %v4436 = vpop.permute.xlu0 %4435
      %4437 = vrot.lane.b32.xlu0 %v372, 16
      %v4438 = vpop.permute.xlu0 %4437
      %4439 = vrot.lane.b32.xlu0 %v373, 16
      %v4440 = vpop.permute.xlu0 %4439
      %4441 = vrot.lane.b32.xlu0 %v374, 16
      %v4442 = vpop.permute.xlu0 %4441
      %4443 = vrot.lane.b32.xlu0 %v375, 16
      %v4444 = vpop.permute.xlu0 %4443
      %4445 = vrot.lane.b32.xlu0 %v376, 16
      %v4446 = vpop.permute.xlu0 %4445
      %4447 = vrot.lane.b32.xlu0 %v377, 16
      %v4448 = vpop.permute.xlu0 %4447
      %v4450 = vsel %vm378, %v4418, 0
      %v4453 = vsel %vm378, %v4420, 0
      %v4456 = vsel %vm378, %v4422, 0
      %v4459 = vsel %vm378, %v4424, 0
      %v4462 = vsel %vm378, %v4426, 0
      %v4465 = vsel %vm378, %v4428, 0
      %v4468 = vsel %vm378, %v4430, 0
      %v4471 = vsel %vm378, %v4432, 0
      %v4474 = vsel %vm378, %v4434, 0
      %v4477 = vsel %vm378, %v4436, 0
      %v4480 = vsel %vm378, %v4438, 0
      %v4483 = vsel %vm378, %v4440, 0
      %v4486 = vsel %vm378, %v4442, 0
      %v4489 = vsel %vm378, %v4444, 0
      %v4492 = vsel %vm378, %v4446, 0
      %v4495 = vsel %vm378, %v4448, 0
      %4497 = vmatpush.bf16.xpose.msra.mxu0 %v4495
      %4498 = vmatpush.bf16.xpose.msra.mxu0 %v4492
      %4499 = vmatpush.bf16.xpose.msra.mxu0 %v4489
      %4500 = vmatpush.bf16.xpose.msra.mxu0 %v4486
      %4501 = vmatpush.bf16.xpose.msra.mxu0 %v4483
      %4502 = vmatpush.bf16.xpose.msra.mxu0 %v4480
      %4503 = vmatpush.bf16.xpose.msra.mxu0 %v4477
      %4504 = vmatpush.bf16.xpose.msra.mxu0 %v4474
      %4505 = vmatmul.bf16.gmra.mxu0 %v4450
      %v4506 = vpop.f32.mrf.mxu0
      %v4507 = vadd.f32 0.0, %v4506
      %v4508 = vpop.f32.mrf.mxu0
      %v4509 = vadd.f32 0.0, %v4508
      %4510 = vmatmul.bf16.gmra.mxu0 %v4453
      %v4511 = vpop.f32.mrf.mxu0
      %v4512 = vadd.f32 0.0, %v4511
      %v4513 = vpop.f32.mrf.mxu0
      %v4514 = vadd.f32 0.0, %v4513
      %4515 = vmatmul.bf16.gmra.mxu0 %v4456
      %v4516 = vpop.f32.mrf.mxu0
      %v4517 = vadd.f32 0.0, %v4516
      %v4518 = vpop.f32.mrf.mxu0
      %v4519 = vadd.f32 0.0, %v4518
      %4520 = vmatmul.bf16.gmra.mxu0 %v4459
      %v4521 = vpop.f32.mrf.mxu0
      %v4522 = vadd.f32 0.0, %v4521
      %v4523 = vpop.f32.mrf.mxu0
      %v4524 = vadd.f32 0.0, %v4523
      %4525 = vmatmul.bf16.gmra.mxu0 %v4462
      %v4526 = vpop.f32.mrf.mxu0
      %v4527 = vadd.f32 0.0, %v4526
      %v4528 = vpop.f32.mrf.mxu0
      %v4529 = vadd.f32 0.0, %v4528
      %4530 = vmatmul.bf16.gmra.mxu0 %v4465
      %v4531 = vpop.f32.mrf.mxu0
      %v4532 = vadd.f32 0.0, %v4531
      %v4533 = vpop.f32.mrf.mxu0
      %v4534 = vadd.f32 0.0, %v4533
      %4535 = vmatmul.bf16.gmra.mxu0 %v4468
      %v4536 = vpop.f32.mrf.mxu0
      %v4537 = vadd.f32 0.0, %v4536
      %v4538 = vpop.f32.mrf.mxu0
      %v4539 = vadd.f32 0.0, %v4538
      %4540 = vmatmul.bf16.gmra.mxu0 %v4471
      %v4541 = vpop.f32.mrf.mxu0
      %v4542 = vadd.f32 0.0, %v4541
      %v4543 = vpop.f32.mrf.mxu0
      %v4544 = vadd.f32 0.0, %v4543
      %4545 = vdwg.mxu0
      %v4546 = vmul.f32 %v4507, 0.25
      %v4547 = vmul.f32 %v4509, 0.25
      %v4548 = vmul.f32 %v4512, 0.25
      %v4549 = vmul.f32 %v4514, 0.25
      %v4550 = vmul.f32 %v4517, 0.25
      %v4551 = vmul.f32 %v4519, 0.25
      %v4552 = vmul.f32 %v4522, 0.25
      %v4553 = vmul.f32 %v4524, 0.25
      %v4554 = vmul.f32 %v4527, 0.25
      %v4555 = vmul.f32 %v4529, 0.25
      %v4556 = vmul.f32 %v4532, 0.25
      %v4557 = vmul.f32 %v4534, 0.25
      %v4558 = vmul.f32 %v4537, 0.25
      %v4559 = vmul.f32 %v4539, 0.25
      %v4560 = vmul.f32 %v4542, 0.25
      %v4561 = vmul.f32 %v4544, 0.25
      %4562 = vmax.xlane.f32.xlu0 %v4546
      %v4563 = vpop.xlane.xlu0 %4562
      %4564 = vmax.xlane.f32.xlu0 %v4547
      %v4565 = vpop.xlane.xlu0 %4564
      %4566 = vmax.xlane.f32.xlu0 %v4548
      %v4567 = vpop.xlane.xlu0 %4566
      %4568 = vmax.xlane.f32.xlu0 %v4549
      %v4569 = vpop.xlane.xlu0 %4568
      %4570 = vmax.xlane.f32.xlu0 %v4550
      %v4571 = vpop.xlane.xlu0 %4570
      %4572 = vmax.xlane.f32.xlu0 %v4551
      %v4573 = vpop.xlane.xlu0 %4572
      %4574 = vmax.xlane.f32.xlu0 %v4552
      %v4575 = vpop.xlane.xlu0 %4574
      %4576 = vmax.xlane.f32.xlu0 %v4553
      %v4577 = vpop.xlane.xlu0 %4576
      %4578 = vmax.xlane.f32.xlu0 %v4554
      %v4579 = vpop.xlane.xlu0 %4578
      %4580 = vmax.xlane.f32.xlu0 %v4555
      %v4581 = vpop.xlane.xlu0 %4580
      %4582 = vmax.xlane.f32.xlu0 %v4556
      %v4583 = vpop.xlane.xlu0 %4582
      %4584 = vmax.xlane.f32.xlu0 %v4557
      %v4585 = vpop.xlane.xlu0 %4584
      %4586 = vmax.xlane.f32.xlu0 %v4558
      %v4587 = vpop.xlane.xlu0 %4586
      %4588 = vmax.xlane.f32.xlu0 %v4559
      %v4589 = vpop.xlane.xlu0 %4588
      %4590 = vmax.xlane.f32.xlu0 %v4560
      %v4591 = vpop.xlane.xlu0 %4590
      %4592 = vmax.xlane.f32.xlu0 %v4561
      %v4593 = vpop.xlane.xlu0 %4592
      %v4594 = vsub.f32 %v4546, %v4563
      %v4595 = vsub.f32 %v4547, %v4565
      %v4596 = vsub.f32 %v4548, %v4567
      %v4597 = vsub.f32 %v4549, %v4569
      %v4598 = vsub.f32 %v4550, %v4571
      %v4599 = vsub.f32 %v4551, %v4573
      %v4600 = vsub.f32 %v4552, %v4575
      %v4601 = vsub.f32 %v4553, %v4577
      %v4602 = vsub.f32 %v4554, %v4579
      %v4603 = vsub.f32 %v4555, %v4581
      %v4604 = vsub.f32 %v4556, %v4583
      %v4605 = vsub.f32 %v4557, %v4585
      %v4606 = vsub.f32 %v4558, %v4587
      %v4607 = vsub.f32 %v4559, %v4589
      %v4608 = vsub.f32 %v4560, %v4591
      %v4609 = vsub.f32 %v4561, %v4593
      %v4610 = vmul.f32 %v4594, 1.442695
      %v4611 = vpow.pop %v4610
      %v4612 = vmul.f32 %v4595, 1.442695
      %v4613 = vpow.pop %v4612
      %v4614 = vmul.f32 %v4596, 1.442695
      %v4615 = vpow.pop %v4614
      %v4616 = vmul.f32 %v4597, 1.442695
      %v4617 = vpow.pop %v4616
      %v4618 = vmul.f32 %v4598, 1.442695
      %v4619 = vpow.pop %v4618
      %v4620 = vmul.f32 %v4599, 1.442695
      %v4621 = vpow.pop %v4620
      %v4622 = vmul.f32 %v4600, 1.442695
      %v4623 = vpow.pop %v4622
      %v4624 = vmul.f32 %v4601, 1.442695
      %v4625 = vpow.pop %v4624
      %v4626 = vmul.f32 %v4602, 1.442695
      %v4627 = vpow.pop %v4626
      %v4628 = vmul.f32 %v4603, 1.442695
      %v4629 = vpow.pop %v4628
      %v4630 = vmul.f32 %v4604, 1.442695
      %v4631 = vpow.pop %v4630
      %v4632 = vmul.f32 %v4605, 1.442695
      %v4633 = vpow.pop %v4632
      %v4634 = vmul.f32 %v4606, 1.442695
      %v4635 = vpow.pop %v4634
      %v4636 = vmul.f32 %v4607, 1.442695
      %v4637 = vpow.pop %v4636
      %v4638 = vmul.f32 %v4608, 1.442695
      %v4639 = vpow.pop %v4638
      %v4640 = vmul.f32 %v4609, 1.442695
      %v4641 = vpow.pop %v4640
      %4642 = vadd.xlane.f32.xlu0 %v4611
      %v4643 = vpop.xlane.xlu0 %4642
      %4644 = vadd.xlane.f32.xlu0 %v4613
      %v4645 = vpop.xlane.xlu0 %4644
      %4646 = vadd.xlane.f32.xlu0 %v4615
      %v4647 = vpop.xlane.xlu0 %4646
      %4648 = vadd.xlane.f32.xlu0 %v4617
      %v4649 = vpop.xlane.xlu0 %4648
      %4650 = vadd.xlane.f32.xlu0 %v4619
      %v4651 = vpop.xlane.xlu0 %4650
      %4652 = vadd.xlane.f32.xlu0 %v4621
      %v4653 = vpop.xlane.xlu0 %4652
      %4654 = vadd.xlane.f32.xlu0 %v4623
      %v4655 = vpop.xlane.xlu0 %4654
      %4656 = vadd.xlane.f32.xlu0 %v4625
      %v4657 = vpop.xlane.xlu0 %4656
      %4658 = vadd.xlane.f32.xlu0 %v4627
      %v4659 = vpop.xlane.xlu0 %4658
      %4660 = vadd.xlane.f32.xlu0 %v4629
      %v4661 = vpop.xlane.xlu0 %4660
      %4662 = vadd.xlane.f32.xlu0 %v4631
      %v4663 = vpop.xlane.xlu0 %4662
      %4664 = vadd.xlane.f32.xlu0 %v4633
      %v4665 = vpop.xlane.xlu0 %4664
      %4666 = vadd.xlane.f32.xlu0 %v4635
      %v4667 = vpop.xlane.xlu0 %4666
      %4668 = vadd.xlane.f32.xlu0 %v4637
      %v4669 = vpop.xlane.xlu0 %4668
      %4670 = vadd.xlane.f32.xlu0 %v4639
      %v4671 = vpop.xlane.xlu0 %4670
      %4672 = vadd.xlane.f32.xlu0 %v4641
      %v4673 = vpop.xlane.xlu0 %4672
      %v4674 = vpack.c.bf16 %v4613, %v4611
      %v4675 = vpack.c.bf16 %v4617, %v4615
      %v4676 = vpack.c.bf16 %v4621, %v4619
      %v4677 = vpack.c.bf16 %v4625, %v4623
      %v4678 = vpack.c.bf16 %v4629, %v4627
      %v4679 = vpack.c.bf16 %v4633, %v4631
      %v4680 = vpack.c.bf16 %v4637, %v4635
      %v4681 = vpack.c.bf16 %v4641, %v4639
      %4682 = vrot.lane.b32.xlu0 %v644, 16
      %v4683 = vpop.permute.xlu0 %4682
      %4684 = vrot.lane.b32.xlu0 %v645, 16
      %v4685 = vpop.permute.xlu0 %4684
      %4686 = vrot.lane.b32.xlu0 %v646, 16
      %v4687 = vpop.permute.xlu0 %4686
      %4688 = vrot.lane.b32.xlu0 %v647, 16
      %v4689 = vpop.permute.xlu0 %4688
      %4690 = vrot.lane.b32.xlu0 %v648, 16
      %v4691 = vpop.permute.xlu0 %4690
      %4692 = vrot.lane.b32.xlu0 %v649, 16
      %v4693 = vpop.permute.xlu0 %4692
      %4694 = vrot.lane.b32.xlu0 %v650, 16
      %v4695 = vpop.permute.xlu0 %4694
      %4696 = vrot.lane.b32.xlu0 %v651, 16
      %v4697 = vpop.permute.xlu0 %4696
      %4706 = vmatpush.bf16.msra.mxu0 %v4697
      %4707 = vmatpush.bf16.msra.mxu0 %v4695
      %4708 = vmatpush.bf16.msra.mxu0 %v4693
      %4709 = vmatpush.bf16.msra.mxu0 %v4691
      %4710 = vmatpush.bf16.msra.mxu0 %v4689
      %4711 = vmatpush.bf16.msra.mxu0 %v4687
      %4712 = vmatpush.bf16.msra.mxu0 %v4685
      %4713 = vmatpush.bf16.msra.mxu0 %v4683
      %4714 = vmatmul.bf16.gmra.mxu0 %v4674
      %v4715 = vpop.f32.mrf.mxu0
      %v4716 = vadd.f32 0.0, %v4715
      %v4717 = vpop.f32.mrf.mxu0
      %v4718 = vadd.f32 0.0, %v4717
      %4719 = vmatmul.bf16.gmra.mxu0 %v4675
      %v4720 = vpop.f32.mrf.mxu0
      %v4721 = vadd.f32 0.0, %v4720
      %v4722 = vpop.f32.mrf.mxu0
      %v4723 = vadd.f32 0.0, %v4722
      %4724 = vmatmul.bf16.gmra.mxu0 %v4676
      %v4725 = vpop.f32.mrf.mxu0
      %v4726 = vadd.f32 0.0, %v4725
      %v4727 = vpop.f32.mrf.mxu0
      %v4728 = vadd.f32 0.0, %v4727
      %4729 = vmatmul.bf16.gmra.mxu0 %v4677
      %v4730 = vpop.f32.mrf.mxu0
      %v4731 = vadd.f32 0.0, %v4730
      %v4732 = vpop.f32.mrf.mxu0
      %v4733 = vadd.f32 0.0, %v4732
      %4734 = vmatmul.bf16.gmra.mxu0 %v4678
      %v4735 = vpop.f32.mrf.mxu0
      %v4736 = vadd.f32 0.0, %v4735
      %v4737 = vpop.f32.mrf.mxu0
      %v4738 = vadd.f32 0.0, %v4737
      %4739 = vmatmul.bf16.gmra.mxu0 %v4679
      %v4740 = vpop.f32.mrf.mxu0
      %v4741 = vadd.f32 0.0, %v4740
      %v4742 = vpop.f32.mrf.mxu0
      %v4743 = vadd.f32 0.0, %v4742
      %4744 = vmatmul.bf16.gmra.mxu0 %v4680
      %v4745 = vpop.f32.mrf.mxu0
      %v4746 = vadd.f32 0.0, %v4745
      %v4747 = vpop.f32.mrf.mxu0
      %v4748 = vadd.f32 0.0, %v4747
      %4749 = vmatmul.bf16.gmra.mxu0 %v4681
      %v4750 = vpop.f32.mrf.mxu0
      %v4751 = vadd.f32 0.0, %v4750
      %v4752 = vpop.f32.mrf.mxu0
      %v4753 = vadd.f32 0.0, %v4752
      %4754 = vdwg.mxu0
      %v4755 = vrcp.pop %v4643
      %v4756 = vmul.f32 %v4643, %v4755
      %v4757 = vsub.f32 1.0, %v4756
      %v4758 = vmul.f32 %v4755, %v4757
      %v4759 = vadd.f32 %v4755, %v4758
      %vm4760 = vweird.f32 %v4643
      %vm4761 = vweird.f32 %v4755
      %vm4762 = vmor %vm4760, %vm4761
      %v4763 = vsel %vm4762, %v4755, %v4759
      %v4764 = vand.u32 2147483647, %v4643
      %vm4765 = vcmp.eq.f32.partialorder %v4764, 8.507059e+37
      %v4766 = vand.u32 %v4643, 2147483648
      %v4767 = vor.u32 1.1754944e-38, %v4766
      %v4768 = vsel %vm4765, %v4767, %v4763
      %v4769 = vmul.f32 %v4716, %v4768
      %v4770 = vrcp.pop %v4645
      %v4771 = vmul.f32 %v4645, %v4770
      %v4772 = vsub.f32 1.0, %v4771
      %v4773 = vmul.f32 %v4770, %v4772
      %v4774 = vadd.f32 %v4770, %v4773
      %vm4775 = vweird.f32 %v4645
      %vm4776 = vweird.f32 %v4770
      %vm4777 = vmor %vm4775, %vm4776
      %v4778 = vsel %vm4777, %v4770, %v4774
      %v4779 = vand.u32 2147483647, %v4645
      %vm4780 = vcmp.eq.f32.partialorder %v4779, 8.507059e+37
      %v4781 = vand.u32 %v4645, 2147483648
      %v4782 = vor.u32 1.1754944e-38, %v4781
      %v4783 = vsel %vm4780, %v4782, %v4778
      %v4784 = vmul.f32 %v4718, %v4783
      %v4785 = vrcp.pop %v4647
      %v4786 = vmul.f32 %v4647, %v4785
      %v4787 = vsub.f32 1.0, %v4786
      %v4788 = vmul.f32 %v4785, %v4787
      %v4789 = vadd.f32 %v4785, %v4788
      %vm4790 = vweird.f32 %v4647
      %vm4791 = vweird.f32 %v4785
      %vm4792 = vmor %vm4790, %vm4791
      %v4793 = vsel %vm4792, %v4785, %v4789
      %v4794 = vand.u32 2147483647, %v4647
      %vm4795 = vcmp.eq.f32.partialorder %v4794, 8.507059e+37
      %v4796 = vand.u32 %v4647, 2147483648
      %v4797 = vor.u32 1.1754944e-38, %v4796
      %v4798 = vsel %vm4795, %v4797, %v4793
      %v4799 = vmul.f32 %v4721, %v4798
      %v4800 = vrcp.pop %v4649
      %v4801 = vmul.f32 %v4649, %v4800
      %v4802 = vsub.f32 1.0, %v4801
      %v4803 = vmul.f32 %v4800, %v4802
      %v4804 = vadd.f32 %v4800, %v4803
      %vm4805 = vweird.f32 %v4649
      %vm4806 = vweird.f32 %v4800
      %vm4807 = vmor %vm4805, %vm4806
      %v4808 = vsel %vm4807, %v4800, %v4804
      %v4809 = vand.u32 2147483647, %v4649
      %vm4810 = vcmp.eq.f32.partialorder %v4809, 8.507059e+37
      %v4811 = vand.u32 %v4649, 2147483648
      %v4812 = vor.u32 1.1754944e-38, %v4811
      %v4813 = vsel %vm4810, %v4812, %v4808
      %v4814 = vmul.f32 %v4723, %v4813
      %v4815 = vrcp.pop %v4651
      %v4816 = vmul.f32 %v4651, %v4815
      %v4817 = vsub.f32 1.0, %v4816
      %v4818 = vmul.f32 %v4815, %v4817
      %v4819 = vadd.f32 %v4815, %v4818
      %vm4820 = vweird.f32 %v4651
      %vm4821 = vweird.f32 %v4815
      %vm4822 = vmor %vm4820, %vm4821
      %v4823 = vsel %vm4822, %v4815, %v4819
      %v4824 = vand.u32 2147483647, %v4651
      %vm4825 = vcmp.eq.f32.partialorder %v4824, 8.507059e+37
      %v4826 = vand.u32 %v4651, 2147483648
      %v4827 = vor.u32 1.1754944e-38, %v4826
      %v4828 = vsel %vm4825, %v4827, %v4823
      %v4829 = vmul.f32 %v4726, %v4828
      %v4830 = vrcp.pop %v4653
      %v4831 = vmul.f32 %v4653, %v4830
      %v4832 = vsub.f32 1.0, %v4831
      %v4833 = vmul.f32 %v4830, %v4832
      %v4834 = vadd.f32 %v4830, %v4833
      %vm4835 = vweird.f32 %v4653
      %vm4836 = vweird.f32 %v4830
      %vm4837 = vmor %vm4835, %vm4836
      %v4838 = vsel %vm4837, %v4830, %v4834
      %v4839 = vand.u32 2147483647, %v4653
      %vm4840 = vcmp.eq.f32.partialorder %v4839, 8.507059e+37
      %v4841 = vand.u32 %v4653, 2147483648
      %v4842 = vor.u32 1.1754944e-38, %v4841
      %v4843 = vsel %vm4840, %v4842, %v4838
      %v4844 = vmul.f32 %v4728, %v4843
      %v4845 = vrcp.pop %v4655
      %v4846 = vmul.f32 %v4655, %v4845
      %v4847 = vsub.f32 1.0, %v4846
      %v4848 = vmul.f32 %v4845, %v4847
      %v4849 = vadd.f32 %v4845, %v4848
      %vm4850 = vweird.f32 %v4655
      %vm4851 = vweird.f32 %v4845
      %vm4852 = vmor %vm4850, %vm4851
      %v4853 = vsel %vm4852, %v4845, %v4849
      %v4854 = vand.u32 2147483647, %v4655
      %vm4855 = vcmp.eq.f32.partialorder %v4854, 8.507059e+37
      %v4856 = vand.u32 %v4655, 2147483648
      %v4857 = vor.u32 1.1754944e-38, %v4856
      %v4858 = vsel %vm4855, %v4857, %v4853
      %v4859 = vmul.f32 %v4731, %v4858
      %v4860 = vrcp.pop %v4657
      %v4861 = vmul.f32 %v4657, %v4860
      %v4862 = vsub.f32 1.0, %v4861
      %v4863 = vmul.f32 %v4860, %v4862
      %v4864 = vadd.f32 %v4860, %v4863
      %vm4865 = vweird.f32 %v4657
      %vm4866 = vweird.f32 %v4860
      %vm4867 = vmor %vm4865, %vm4866
      %v4868 = vsel %vm4867, %v4860, %v4864
      %v4869 = vand.u32 2147483647, %v4657
      %vm4870 = vcmp.eq.f32.partialorder %v4869, 8.507059e+37
      %v4871 = vand.u32 %v4657, 2147483648
      %v4872 = vor.u32 1.1754944e-38, %v4871
      %v4873 = vsel %vm4870, %v4872, %v4868
      %v4874 = vmul.f32 %v4733, %v4873
      %v4875 = vrcp.pop %v4659
      %v4876 = vmul.f32 %v4659, %v4875
      %v4877 = vsub.f32 1.0, %v4876
      %v4878 = vmul.f32 %v4875, %v4877
      %v4879 = vadd.f32 %v4875, %v4878
      %vm4880 = vweird.f32 %v4659
      %vm4881 = vweird.f32 %v4875
      %vm4882 = vmor %vm4880, %vm4881
      %v4883 = vsel %vm4882, %v4875, %v4879
      %v4884 = vand.u32 2147483647, %v4659
      %vm4885 = vcmp.eq.f32.partialorder %v4884, 8.507059e+37
      %v4886 = vand.u32 %v4659, 2147483648
      %v4887 = vor.u32 1.1754944e-38, %v4886
      %v4888 = vsel %vm4885, %v4887, %v4883
      %v4889 = vmul.f32 %v4736, %v4888
      %v4890 = vrcp.pop %v4661
      %v4891 = vmul.f32 %v4661, %v4890
      %v4892 = vsub.f32 1.0, %v4891
      %v4893 = vmul.f32 %v4890, %v4892
      %v4894 = vadd.f32 %v4890, %v4893
      %vm4895 = vweird.f32 %v4661
      %vm4896 = vweird.f32 %v4890
      %vm4897 = vmor %vm4895, %vm4896
      %v4898 = vsel %vm4897, %v4890, %v4894
      %v4899 = vand.u32 2147483647, %v4661
      %vm4900 = vcmp.eq.f32.partialorder %v4899, 8.507059e+37
      %v4901 = vand.u32 %v4661, 2147483648
      %v4902 = vor.u32 1.1754944e-38, %v4901
      %v4903 = vsel %vm4900, %v4902, %v4898
      %v4904 = vmul.f32 %v4738, %v4903
      %v4905 = vrcp.pop %v4663
      %v4906 = vmul.f32 %v4663, %v4905
      %v4907 = vsub.f32 1.0, %v4906
      %v4908 = vmul.f32 %v4905, %v4907
      %v4909 = vadd.f32 %v4905, %v4908
      %vm4910 = vweird.f32 %v4663
      %vm4911 = vweird.f32 %v4905
      %vm4912 = vmor %vm4910, %vm4911
      %v4913 = vsel %vm4912, %v4905, %v4909
      %v4914 = vand.u32 2147483647, %v4663
      %vm4915 = vcmp.eq.f32.partialorder %v4914, 8.507059e+37
      %v4916 = vand.u32 %v4663, 2147483648
      %v4917 = vor.u32 1.1754944e-38, %v4916
      %v4918 = vsel %vm4915, %v4917, %v4913
      %v4919 = vmul.f32 %v4741, %v4918
      %v4920 = vrcp.pop %v4665
      %v4921 = vmul.f32 %v4665, %v4920
      %v4922 = vsub.f32 1.0, %v4921
      %v4923 = vmul.f32 %v4920, %v4922
      %v4924 = vadd.f32 %v4920, %v4923
      %vm4925 = vweird.f32 %v4665
      %vm4926 = vweird.f32 %v4920
      %vm4927 = vmor %vm4925, %vm4926
      %v4928 = vsel %vm4927, %v4920, %v4924
      %v4929 = vand.u32 2147483647, %v4665
      %vm4930 = vcmp.eq.f32.partialorder %v4929, 8.507059e+37
      %v4931 = vand.u32 %v4665, 2147483648
      %v4932 = vor.u32 1.1754944e-38, %v4931
      %v4933 = vsel %vm4930, %v4932, %v4928
      %v4934 = vmul.f32 %v4743, %v4933
      %v4935 = vrcp.pop %v4667
      %v4936 = vmul.f32 %v4667, %v4935
      %v4937 = vsub.f32 1.0, %v4936
      %v4938 = vmul.f32 %v4935, %v4937
      %v4939 = vadd.f32 %v4935, %v4938
      %vm4940 = vweird.f32 %v4667
      %vm4941 = vweird.f32 %v4935
      %vm4942 = vmor %vm4940, %vm4941
      %v4943 = vsel %vm4942, %v4935, %v4939
      %v4944 = vand.u32 2147483647, %v4667
      %vm4945 = vcmp.eq.f32.partialorder %v4944, 8.507059e+37
      %v4946 = vand.u32 %v4667, 2147483648
      %v4947 = vor.u32 1.1754944e-38, %v4946
      %v4948 = vsel %vm4945, %v4947, %v4943
      %v4949 = vmul.f32 %v4746, %v4948
      %v4950 = vrcp.pop %v4669
      %v4951 = vmul.f32 %v4669, %v4950
      %v4952 = vsub.f32 1.0, %v4951
      %v4953 = vmul.f32 %v4950, %v4952
      %v4954 = vadd.f32 %v4950, %v4953
      %vm4955 = vweird.f32 %v4669
      %vm4956 = vweird.f32 %v4950
      %vm4957 = vmor %vm4955, %vm4956
      %v4958 = vsel %vm4957, %v4950, %v4954
      %v4959 = vand.u32 2147483647, %v4669
      %vm4960 = vcmp.eq.f32.partialorder %v4959, 8.507059e+37
      %v4961 = vand.u32 %v4669, 2147483648
      %v4962 = vor.u32 1.1754944e-38, %v4961
      %v4963 = vsel %vm4960, %v4962, %v4958
      %v4964 = vmul.f32 %v4748, %v4963
      %v4965 = vrcp.pop %v4671
      %v4966 = vmul.f32 %v4671, %v4965
      %v4967 = vsub.f32 1.0, %v4966
      %v4968 = vmul.f32 %v4965, %v4967
      %v4969 = vadd.f32 %v4965, %v4968
      %vm4970 = vweird.f32 %v4671
      %vm4971 = vweird.f32 %v4965
      %vm4972 = vmor %vm4970, %vm4971
      %v4973 = vsel %vm4972, %v4965, %v4969
      %v4974 = vand.u32 2147483647, %v4671
      %vm4975 = vcmp.eq.f32.partialorder %v4974, 8.507059e+37
      %v4976 = vand.u32 %v4671, 2147483648
      %v4977 = vor.u32 1.1754944e-38, %v4976
      %v4978 = vsel %vm4975, %v4977, %v4973
      %v4979 = vmul.f32 %v4751, %v4978
      %v4980 = vrcp.pop %v4673
      %v4981 = vmul.f32 %v4673, %v4980
      %v4982 = vsub.f32 1.0, %v4981
      %v4983 = vmul.f32 %v4980, %v4982
      %v4984 = vadd.f32 %v4980, %v4983
      %vm4985 = vweird.f32 %v4673
      %vm4986 = vweird.f32 %v4980
      %vm4987 = vmor %vm4985, %vm4986
      %v4988 = vsel %vm4987, %v4980, %v4984
      %v4989 = vand.u32 2147483647, %v4673
      %vm4990 = vcmp.eq.f32.partialorder %v4989, 8.507059e+37
      %v4991 = vand.u32 %v4673, 2147483648
      %v4992 = vor.u32 1.1754944e-38, %v4991
      %v4993 = vsel %vm4990, %v4992, %v4988
      %v4994 = vmul.f32 %v4753, %v4993
      %5011 = vrot.lane.b32.xlu0 %v1301, 16
      %v5012 = vpop.permute.xlu0 %5011
      %5013 = vrot.lane.b32.xlu0 %v1316, 16
      %v5014 = vpop.permute.xlu0 %5013
      %5015 = vrot.lane.b32.xlu0 %v1331, 16
      %v5016 = vpop.permute.xlu0 %5015
      %5017 = vrot.lane.b32.xlu0 %v1346, 16
      %v5018 = vpop.permute.xlu0 %5017
      %5019 = vrot.lane.b32.xlu0 %v1361, 16
      %v5020 = vpop.permute.xlu0 %5019
      %5021 = vrot.lane.b32.xlu0 %v1376, 16
      %v5022 = vpop.permute.xlu0 %5021
      %5023 = vrot.lane.b32.xlu0 %v1391, 16
      %v5024 = vpop.permute.xlu0 %5023
      %5025 = vrot.lane.b32.xlu0 %v1406, 16
      %v5026 = vpop.permute.xlu0 %5025
      %5027 = vrot.lane.b32.xlu0 %v1421, 16
      %v5028 = vpop.permute.xlu0 %5027
      %5029 = vrot.lane.b32.xlu0 %v1436, 16
      %v5030 = vpop.permute.xlu0 %5029
      %5031 = vrot.lane.b32.xlu0 %v1451, 16
      %v5032 = vpop.permute.xlu0 %5031
      %5033 = vrot.lane.b32.xlu0 %v1466, 16
      %v5034 = vpop.permute.xlu0 %5033
      %5035 = vrot.lane.b32.xlu0 %v1481, 16
      %v5036 = vpop.permute.xlu0 %5035
      %5037 = vrot.lane.b32.xlu0 %v1496, 16
      %v5038 = vpop.permute.xlu0 %5037
      %5039 = vrot.lane.b32.xlu0 %v1511, 16
      %v5040 = vpop.permute.xlu0 %5039
      %5041 = vrot.lane.b32.xlu0 %v1526, 16
      %v5042 = vpop.permute.xlu0 %5041
      %5075 = vrot.lane.b32.xlu0 %v1879, 32
      %v5076 = vpop.permute.xlu0 %5075
      %5077 = vrot.lane.b32.xlu0 %v1894, 32
      %v5078 = vpop.permute.xlu0 %5077
      %5079 = vrot.lane.b32.xlu0 %v1909, 32
      %v5080 = vpop.permute.xlu0 %5079
      %5081 = vrot.lane.b32.xlu0 %v1924, 32
      %v5082 = vpop.permute.xlu0 %5081
      %5083 = vrot.lane.b32.xlu0 %v1939, 32
      %v5084 = vpop.permute.xlu0 %5083
      %5085 = vrot.lane.b32.xlu0 %v1954, 32
      %v5086 = vpop.permute.xlu0 %5085
      %5087 = vrot.lane.b32.xlu0 %v1969, 32
      %v5088 = vpop.permute.xlu0 %5087
      %5089 = vrot.lane.b32.xlu0 %v1984, 32
      %v5090 = vpop.permute.xlu0 %5089
      %5091 = vrot.lane.b32.xlu0 %v1999, 32
      %v5092 = vpop.permute.xlu0 %5091
      %5093 = vrot.lane.b32.xlu0 %v2014, 32
      %v5094 = vpop.permute.xlu0 %5093
      %5095 = vrot.lane.b32.xlu0 %v2029, 32
      %v5096 = vpop.permute.xlu0 %5095
      %5097 = vrot.lane.b32.xlu0 %v2044, 32
      %v5098 = vpop.permute.xlu0 %5097
      %5099 = vrot.lane.b32.xlu0 %v2059, 32
      %v5100 = vpop.permute.xlu0 %5099
      %5101 = vrot.lane.b32.xlu0 %v2074, 32
      %v5102 = vpop.permute.xlu0 %5101
      %5103 = vrot.lane.b32.xlu0 %v2089, 32
      %v5104 = vpop.permute.xlu0 %5103
      %5105 = vrot.lane.b32.xlu0 %v2104, 32
      %v5106 = vpop.permute.xlu0 %5105
      %5139 = vrot.lane.b32.xlu0 %v2457, 48
      %v5140 = vpop.permute.xlu0 %5139
      %5141 = vrot.lane.b32.xlu0 %v2472, 48
      %v5142 = vpop.permute.xlu0 %5141
      %5143 = vrot.lane.b32.xlu0 %v2487, 48
      %v5144 = vpop.permute.xlu0 %5143
      %5145 = vrot.lane.b32.xlu0 %v2502, 48
      %v5146 = vpop.permute.xlu0 %5145
      %5147 = vrot.lane.b32.xlu0 %v2517, 48
      %v5148 = vpop.permute.xlu0 %5147
      %5149 = vrot.lane.b32.xlu0 %v2532, 48
      %v5150 = vpop.permute.xlu0 %5149
      %5151 = vrot.lane.b32.xlu0 %v2547, 48
      %v5152 = vpop.permute.xlu0 %5151
      %5153 = vrot.lane.b32.xlu0 %v2562, 48
      %v5154 = vpop.permute.xlu0 %5153
      %5155 = vrot.lane.b32.xlu0 %v2577, 48
      %v5156 = vpop.permute.xlu0 %5155
      %5157 = vrot.lane.b32.xlu0 %v2592, 48
      %v5158 = vpop.permute.xlu0 %5157
      %5159 = vrot.lane.b32.xlu0 %v2607, 48
      %v5160 = vpop.permute.xlu0 %5159
      %5161 = vrot.lane.b32.xlu0 %v2622, 48
      %v5162 = vpop.permute.xlu0 %5161
      %5163 = vrot.lane.b32.xlu0 %v2637, 48
      %v5164 = vpop.permute.xlu0 %5163
      %5165 = vrot.lane.b32.xlu0 %v2652, 48
      %v5166 = vpop.permute.xlu0 %5165
      %5167 = vrot.lane.b32.xlu0 %v2667, 48
      %v5168 = vpop.permute.xlu0 %5167
      %5169 = vrot.lane.b32.xlu0 %v2682, 48
      %v5170 = vpop.permute.xlu0 %5169
      %5203 = vrot.lane.b32.xlu0 %v3035, 64
      %v5204 = vpop.permute.xlu0 %5203
      %5205 = vrot.lane.b32.xlu0 %v3050, 64
      %v5206 = vpop.permute.xlu0 %5205
      %5207 = vrot.lane.b32.xlu0 %v3065, 64
      %v5208 = vpop.permute.xlu0 %5207
      %5209 = vrot.lane.b32.xlu0 %v3080, 64
      %v5210 = vpop.permute.xlu0 %5209
      %5211 = vrot.lane.b32.xlu0 %v3095, 64
      %v5212 = vpop.permute.xlu0 %5211
      %5213 = vrot.lane.b32.xlu0 %v3110, 64
      %v5214 = vpop.permute.xlu0 %5213
      %5215 = vrot.lane.b32.xlu0 %v3125, 64
      %v5216 = vpop.permute.xlu0 %5215
      %5217 = vrot.lane.b32.xlu0 %v3140, 64
      %v5218 = vpop.permute.xlu0 %5217
      %5219 = vrot.lane.b32.xlu0 %v3155, 64
      %v5220 = vpop.permute.xlu0 %5219
      %5221 = vrot.lane.b32.xlu0 %v3170, 64
      %v5222 = vpop.permute.xlu0 %5221
      %5223 = vrot.lane.b32.xlu0 %v3185, 64
      %v5224 = vpop.permute.xlu0 %5223
      %5225 = vrot.lane.b32.xlu0 %v3200, 64
      %v5226 = vpop.permute.xlu0 %5225
      %5227 = vrot.lane.b32.xlu0 %v3215, 64
      %v5228 = vpop.permute.xlu0 %5227
      %5229 = vrot.lane.b32.xlu0 %v3230, 64
      %v5230 = vpop.permute.xlu0 %5229
      %5231 = vrot.lane.b32.xlu0 %v3245, 64
      %v5232 = vpop.permute.xlu0 %5231
      %5233 = vrot.lane.b32.xlu0 %v3260, 64
      %v5234 = vpop.permute.xlu0 %5233
      %5267 = vrot.lane.b32.xlu0 %v3613, 80
      %v5268 = vpop.permute.xlu0 %5267
      %5269 = vrot.lane.b32.xlu0 %v3628, 80
      %v5270 = vpop.permute.xlu0 %5269
      %5271 = vrot.lane.b32.xlu0 %v3643, 80
      %v5272 = vpop.permute.xlu0 %5271
      %5273 = vrot.lane.b32.xlu0 %v3658, 80
      %v5274 = vpop.permute.xlu0 %5273
      %5275 = vrot.lane.b32.xlu0 %v3673, 80
      %v5276 = vpop.permute.xlu0 %5275
      %5277 = vrot.lane.b32.xlu0 %v3688, 80
      %v5278 = vpop.permute.xlu0 %5277
      %5279 = vrot.lane.b32.xlu0 %v3703, 80
      %v5280 = vpop.permute.xlu0 %5279
      %5281 = vrot.lane.b32.xlu0 %v3718, 80
      %v5282 = vpop.permute.xlu0 %5281
      %5283 = vrot.lane.b32.xlu0 %v3733, 80
      %v5284 = vpop.permute.xlu0 %5283
      %5285 = vrot.lane.b32.xlu0 %v3748, 80
      %v5286 = vpop.permute.xlu0 %5285
      %5287 = vrot.lane.b32.xlu0 %v3763, 80
      %v5288 = vpop.permute.xlu0 %5287
      %5289 = vrot.lane.b32.xlu0 %v3778, 80
      %v5290 = vpop.permute.xlu0 %5289
      %5291 = vrot.lane.b32.xlu0 %v3793, 80
      %v5292 = vpop.permute.xlu0 %5291
      %5293 = vrot.lane.b32.xlu0 %v3808, 80
      %v5294 = vpop.permute.xlu0 %5293
      %5295 = vrot.lane.b32.xlu0 %v3823, 80
      %v5296 = vpop.permute.xlu0 %5295
      %5297 = vrot.lane.b32.xlu0 %v3838, 80
      %v5298 = vpop.permute.xlu0 %5297
      %5331 = vrot.lane.b32.xlu0 %v4191, 96
      %v5332 = vpop.permute.xlu0 %5331
      %5333 = vrot.lane.b32.xlu0 %v4206, 96
      %v5334 = vpop.permute.xlu0 %5333
      %5335 = vrot.lane.b32.xlu0 %v4221, 96
      %v5336 = vpop.permute.xlu0 %5335
      %5337 = vrot.lane.b32.xlu0 %v4236, 96
      %v5338 = vpop.permute.xlu0 %5337
      %5339 = vrot.lane.b32.xlu0 %v4251, 96
      %v5340 = vpop.permute.xlu0 %5339
      %5341 = vrot.lane.b32.xlu0 %v4266, 96
      %v5342 = vpop.permute.xlu0 %5341
      %5343 = vrot.lane.b32.xlu0 %v4281, 96
      %v5344 = vpop.permute.xlu0 %5343
      %5345 = vrot.lane.b32.xlu0 %v4296, 96
      %v5346 = vpop.permute.xlu0 %5345
      %5347 = vrot.lane.b32.xlu0 %v4311, 96
      %v5348 = vpop.permute.xlu0 %5347
      %5349 = vrot.lane.b32.xlu0 %v4326, 96
      %v5350 = vpop.permute.xlu0 %5349
      %5351 = vrot.lane.b32.xlu0 %v4341, 96
      %v5352 = vpop.permute.xlu0 %5351
      %5353 = vrot.lane.b32.xlu0 %v4356, 96
      %v5354 = vpop.permute.xlu0 %5353
      %5355 = vrot.lane.b32.xlu0 %v4371, 96
      %v5356 = vpop.permute.xlu0 %5355
      %5357 = vrot.lane.b32.xlu0 %v4386, 96
      %v5358 = vpop.permute.xlu0 %5357
      %5359 = vrot.lane.b32.xlu0 %v4401, 96
      %v5360 = vpop.permute.xlu0 %5359
      %5361 = vrot.lane.b32.xlu0 %v4416, 96
      %v5362 = vpop.permute.xlu0 %5361
      %5395 = vrot.lane.b32.xlu0 %v4769, 112
      %v5396 = vpop.permute.xlu0 %5395
      %5397 = vrot.lane.b32.xlu0 %v4784, 112
      %v5398 = vpop.permute.xlu0 %5397
      %5399 = vrot.lane.b32.xlu0 %v4799, 112
      %v5400 = vpop.permute.xlu0 %5399
      %5401 = vrot.lane.b32.xlu0 %v4814, 112
      %v5402 = vpop.permute.xlu0 %5401
      %5403 = vrot.lane.b32.xlu0 %v4829, 112
      %v5404 = vpop.permute.xlu0 %5403
      %5405 = vrot.lane.b32.xlu0 %v4844, 112
      %v5406 = vpop.permute.xlu0 %5405
      %5407 = vrot.lane.b32.xlu0 %v4859, 112
      %v5408 = vpop.permute.xlu0 %5407
      %5409 = vrot.lane.b32.xlu0 %v4874, 112
      %v5410 = vpop.permute.xlu0 %5409
      %5411 = vrot.lane.b32.xlu0 %v4889, 112
      %v5412 = vpop.permute.xlu0 %5411
      %5413 = vrot.lane.b32.xlu0 %v4904, 112
      %v5414 = vpop.permute.xlu0 %5413
      %5415 = vrot.lane.b32.xlu0 %v4919, 112
      %v5416 = vpop.permute.xlu0 %5415
      %5417 = vrot.lane.b32.xlu0 %v4934, 112
      %v5418 = vpop.permute.xlu0 %5417
      %5419 = vrot.lane.b32.xlu0 %v4949, 112
      %v5420 = vpop.permute.xlu0 %5419
      %5421 = vrot.lane.b32.xlu0 %v4964, 112
      %v5422 = vpop.permute.xlu0 %5421
      %5423 = vrot.lane.b32.xlu0 %v4979, 112
      %v5424 = vpop.permute.xlu0 %5423
      %5425 = vrot.lane.b32.xlu0 %v4994, 112
      %v5426 = vpop.permute.xlu0 %5425
      %v5443 = vsel %vm378, %v723, %v5012
      %v5444 = vsel %vm378, %v738, %v5014
      %v5445 = vsel %vm378, %v753, %v5016
      %v5446 = vsel %vm378, %v768, %v5018
      %v5447 = vsel %vm378, %v783, %v5020
      %v5448 = vsel %vm378, %v798, %v5022
      %v5449 = vsel %vm378, %v813, %v5024
      %v5450 = vsel %vm378, %v828, %v5026
      %v5451 = vsel %vm378, %v843, %v5028
      %v5452 = vsel %vm378, %v858, %v5030
      %v5453 = vsel %vm378, %v873, %v5032
      %v5454 = vsel %vm378, %v888, %v5034
      %v5455 = vsel %vm378, %v903, %v5036
      %v5456 = vsel %vm378, %v918, %v5038
      %v5457 = vsel %vm378, %v933, %v5040
      %v5458 = vsel %vm378, %v948, %v5042
      %vm5459 = vcmask 261120
      %v5460 = vsel %vm5459, %v5443, %v5076
      %v5461 = vsel %vm5459, %v5444, %v5078
      %v5462 = vsel %vm5459, %v5445, %v5080
      %v5463 = vsel %vm5459, %v5446, %v5082
      %v5464 = vsel %vm5459, %v5447, %v5084
      %v5465 = vsel %vm5459, %v5448, %v5086
      %v5466 = vsel %vm5459, %v5449, %v5088
      %v5467 = vsel %vm5459, %v5450, %v5090
      %v5468 = vsel %vm5459, %v5451, %v5092
      %v5469 = vsel %vm5459, %v5452, %v5094
      %v5470 = vsel %vm5459, %v5453, %v5096
      %v5471 = vsel %vm5459, %v5454, %v5098
      %v5472 = vsel %vm5459, %v5455, %v5100
      %v5473 = vsel %vm5459, %v5456, %v5102
      %v5474 = vsel %vm5459, %v5457, %v5104
      %v5475 = vsel %vm5459, %v5458, %v5106
      %vm5476 = vcmask 392192
      %v5477 = vsel %vm5476, %v5460, %v5140
      %v5478 = vsel %vm5476, %v5461, %v5142
      %v5479 = vsel %vm5476, %v5462, %v5144
      %v5480 = vsel %vm5476, %v5463, %v5146
      %v5481 = vsel %vm5476, %v5464, %v5148
      %v5482 = vsel %vm5476, %v5465, %v5150
      %v5483 = vsel %vm5476, %v5466, %v5152
      %v5484 = vsel %vm5476, %v5467, %v5154
      %v5485 = vsel %vm5476, %v5468, %v5156
      %v5486 = vsel %vm5476, %v5469, %v5158
      %v5487 = vsel %vm5476, %v5470, %v5160
      %v5488 = vsel %vm5476, %v5471, %v5162
      %v5489 = vsel %vm5476, %v5472, %v5164
      %v5490 = vsel %vm5476, %v5473, %v5166
      %v5491 = vsel %vm5476, %v5474, %v5168
      %v5492 = vsel %vm5476, %v5475, %v5170
      %vm5493 = vcmask 523264
      %v5494 = vsel %vm5493, %v5477, %v5204
      %v5495 = vsel %vm5493, %v5478, %v5206
      %v5496 = vsel %vm5493, %v5479, %v5208
      %v5497 = vsel %vm5493, %v5480, %v5210
      %v5498 = vsel %vm5493, %v5481, %v5212
      %v5499 = vsel %vm5493, %v5482, %v5214
      %v5500 = vsel %vm5493, %v5483, %v5216
      %v5501 = vsel %vm5493, %v5484, %v5218
      %v5502 = vsel %vm5493, %v5485, %v5220
      %v5503 = vsel %vm5493, %v5486, %v5222
      %v5504 = vsel %vm5493, %v5487, %v5224
      %v5505 = vsel %vm5493, %v5488, %v5226
      %v5506 = vsel %vm5493, %v5489, %v5228
      %v5507 = vsel %vm5493, %v5490, %v5230
      %v5508 = vsel %vm5493, %v5491, %v5232
      %v5509 = vsel %vm5493, %v5492, %v5234
      %vm5510 = vcmask 654336
      %v5511 = vsel %vm5510, %v5494, %v5268
      %v5512 = vsel %vm5510, %v5495, %v5270
      %v5513 = vsel %vm5510, %v5496, %v5272
      %v5514 = vsel %vm5510, %v5497, %v5274
      %v5515 = vsel %vm5510, %v5498, %v5276
      %v5516 = vsel %vm5510, %v5499, %v5278
      %v5517 = vsel %vm5510, %v5500, %v5280
      %v5518 = vsel %vm5510, %v5501, %v5282
      %v5519 = vsel %vm5510, %v5502, %v5284
      %v5520 = vsel %vm5510, %v5503, %v5286
      %v5521 = vsel %vm5510, %v5504, %v5288
      %v5522 = vsel %vm5510, %v5505, %v5290
      %v5523 = vsel %vm5510, %v5506, %v5292
      %v5524 = vsel %vm5510, %v5507, %v5294
      %v5525 = vsel %vm5510, %v5508, %v5296
      %v5526 = vsel %vm5510, %v5509, %v5298
      %vm5527 = vcmask 785408
      %v5528 = vsel %vm5527, %v5511, %v5332
      %v5529 = vsel %vm5527, %v5512, %v5334
      %v5530 = vsel %vm5527, %v5513, %v5336
      %v5531 = vsel %vm5527, %v5514, %v5338
      %v5532 = vsel %vm5527, %v5515, %v5340
      %v5533 = vsel %vm5527, %v5516, %v5342
      %v5534 = vsel %vm5527, %v5517, %v5344
      %v5535 = vsel %vm5527, %v5518, %v5346
      %v5536 = vsel %vm5527, %v5519, %v5348
      %v5537 = vsel %vm5527, %v5520, %v5350
      %v5538 = vsel %vm5527, %v5521, %v5352
      %v5539 = vsel %vm5527, %v5522, %v5354
      %v5540 = vsel %vm5527, %v5523, %v5356
      %v5541 = vsel %vm5527, %v5524, %v5358
      %v5542 = vsel %vm5527, %v5525, %v5360
      %v5543 = vsel %vm5527, %v5526, %v5362
      %vm5544 = vcmask 916480
      %v5545 = vsel %vm5544, %v5528, %v5396
      %v5546 = vsel %vm5544, %v5529, %v5398
      %v5547 = vsel %vm5544, %v5530, %v5400
      %v5548 = vsel %vm5544, %v5531, %v5402
      %v5549 = vsel %vm5544, %v5532, %v5404
      %v5550 = vsel %vm5544, %v5533, %v5406
      %v5551 = vsel %vm5544, %v5534, %v5408
      %v5552 = vsel %vm5544, %v5535, %v5410
      %v5553 = vsel %vm5544, %v5536, %v5412
      %v5554 = vsel %vm5544, %v5537, %v5414
      %v5555 = vsel %vm5544, %v5538, %v5416
      %v5556 = vsel %vm5544, %v5539, %v5418
      %v5557 = vsel %vm5544, %v5540, %v5420
      %v5558 = vsel %vm5544, %v5541, %v5422
      %v5559 = vsel %vm5544, %v5542, %v5424
      %v5560 = vsel %vm5544, %v5543, %v5426
      %v5561 = vpack.c.bf16 %v5545, %v5545
      %v5562 = vpack.c.bf16 %v5546, %v5546
      %v5563 = vpack.c.bf16 %v5547, %v5547
      %v5564 = vpack.c.bf16 %v5548, %v5548
      %v5565 = vpack.c.bf16 %v5549, %v5549
      %v5566 = vpack.c.bf16 %v5550, %v5550
      %v5567 = vpack.c.bf16 %v5551, %v5551
      %v5568 = vpack.c.bf16 %v5552, %v5552
      %v5569 = vpack.c.bf16 %v5553, %v5553
      %v5570 = vpack.c.bf16 %v5554, %v5554
      %v5571 = vpack.c.bf16 %v5555, %v5555
      %v5572 = vpack.c.bf16 %v5556, %v5556
      %v5573 = vpack.c.bf16 %v5557, %v5557
      %v5574 = vpack.c.bf16 %v5558, %v5558
      %v5575 = vpack.c.bf16 %v5559, %v5559
      %v5576 = vpack.c.bf16 %v5560, %v5560
      %5577 = vst [vmem:[%s248] sm:$0xf] %v5561
      %5578 = vst [vmem:[%s248 + $0x4] sm:$0xf] %v5562
      %5579 = vst [vmem:[%s248 + $0x8] sm:$0xf] %v5563
      %5580 = vst [vmem:[%s248 + $0xc] sm:$0xf] %v5564
      %5581 = vst [vmem:[%s248 + $0x10] sm:$0xf] %v5565
      %5582 = vst [vmem:[%s248 + $0x14] sm:$0xf] %v5566
      %5583 = vst [vmem:[%s248 + $0x18] sm:$0xf] %v5567
      %5584 = vst [vmem:[%s248 + $0x1c] sm:$0xf] %v5568
      %5585 = vst [vmem:[%s248 + $0x20] sm:$0xf] %v5569
      %5586 = vst [vmem:[%s248 + $0x24] sm:$0xf] %v5570
      %5587 = vst [vmem:[%s248 + $0x28] sm:$0xf] %v5571
      %5588 = vst [vmem:[%s248 + $0x2c] sm:$0xf] %v5572
      %5589 = vst [vmem:[%s248 + $0x30] sm:$0xf] %v5573
      %5590 = vst [vmem:[%s248 + $0x34] sm:$0xf] %v5574
      %5591 = vst [vmem:[%s248 + $0x38] sm:$0xf] %v5575
      %5592 = vst [vmem:[%s248 + $0x3c] sm:$0xf] %v5576
      %s5593 = smul.u32 16, %s19
      %p5594 = scmp.lt.s32.totalorder %s18, 1
      %s5595 = scalar_select %p5594, %s18, 1
      %p5596 = scmp.lt.s32.totalorder %s5593, 15
      %s5597 = scalar_select %p5596, %s5593, 15
      %s5598 = smul.addr %s5595, 16
      %s5599 = sadd.s32 %s5597, %s5598
      %s5600 = smul.addr %s5599, 4
      %s5601 = scalar_lea.vmem %s3, %s5600
      // Predicated region
      $region33: #{attention_forward.4} parent=31 // pred_check
        %p5602 = pneg %p126
      $region34: #{attention_forward.4} parent=31 // pred_check_branch
        %5604 = sbr.rel (%p5602) target = $region36
      $region35: #{attention_forward.4} parent=31 // pred_region
        %s5605 = smul.u32 16, %s19
      $region36: #{attention_forward.4} parent=31 // pred_fallthru
        _
    $region32: #{attention_forward.4} parent=5 // pred_fallthru
      _
    %p5606 = scmp.le.s32.totalorder 2, %s9
    // Predicated region
    $region37: #{attention_forward.4} parent=5 // pred_check
      %p5607 = pneg %p5606
    $region38: #{attention_forward.4} parent=5 // pred_check_branch
      %5609 = sbr.rel (%p5607) target = $region40
    $region39: #{attention_forward.4} parent=5 // pred_region
      %s5610 = ssub.s32 %s9, 2
      // Predicated region
      $region41: #{attention_forward.4} parent=39 // pred_check
        %p5611 = pneg %p132
      $region42: #{attention_forward.4} parent=39 // pred_check_branch
        %5613 = sbr.rel (%p5611) target = $region44
      $region43: #{attention_forward.4} parent=39 // pred_region
        %s5614 = smul.u32 16, %s21
        %p5615 = scmp.lt.s32.totalorder %s20, 1
        %s5616 = scalar_select %p5615, %s20, 1
        %p5617 = scmp.lt.s32.totalorder %s5614, 15
        %s5618 = scalar_select %p5617, %s5614, 15
        %s5619 = smul.addr %s5616, 16
        %s5620 = sadd.s32 %s5618, %s5619
        %s5621 = smul.addr %s5620, 4
        %s5622 = scalar_lea.vmem %s3, %s5621
      $region44: #{attention_forward.4} parent=39 // pred_fallthru
        _
    $region40: #{attention_forward.4} parent=5 // pred_fallthru
      _
  $region6: #{attention_forward.4} parent=0 // loop_footer
    %s13 = sadd.s32 1, %s9
  $region7: #{attention_forward.4} parent=0 // loop_footer_branch
    %8 = sbr.rel target = $region3
  $region8: #{attention_forward.4} parent=0 // loop_exit
    _

</llo_original>
